<compile_context>
chip_gen: v5e
topology: v5e:2x2
jax: 0.10.0
libtpu: 0.0.40
codegen_flags: <defaults>
</compile_context>

<pallas_src>
import jax
import jax.numpy as jnp
from jax.experimental import pallas as pl
from jax.experimental.pallas import tpu as pltpu

HIDDEN = 1024
HALF = HIDDEN // 2


def mlp_generator_kernel(x_ref, w1_ref, b1_ref, w2_ref, s2_ref, b2_ref,
                         w3_ref, s3_ref, b3_ref, o_ref, h2_ref):
    # Layers 1/2 are independent of the output-column tile: compute them once on
    # the first grid step and cache the bf16 result in VMEM scratch.
    @pl.when(pl.program_id(0) == 0)
    def _():
        # Layer 1: Linear -> ReLU   (BN1 folded into layer 2; Dropout = id in eval)
        h = jnp.dot(x_ref[...], w1_ref[...],
                    preferred_element_type=jnp.float32) + b1_ref[...]
        h = jnp.maximum(h, 0.0)
        # Layer 2: Linear with int8 weight (BN1-folded, per-column scale) -> ReLU
        w2 = w2_ref[...].astype(jnp.float32).astype(jnp.bfloat16)   # exact for int8
        h2 = jnp.dot(h.astype(jnp.bfloat16), w2,
                     preferred_element_type=jnp.float32)
        h2 = jnp.maximum(h2 * s2_ref[...] + b2_ref[...], 0.0)
        h2_ref[...] = h2.astype(jnp.bfloat16)

    # Layer 3 (this output-column tile): Linear with int8 weight (BN2-folded) -> Tanh
    w3 = w3_ref[...].astype(jnp.float32).astype(jnp.bfloat16)       # exact for int8
    y = jnp.dot(h2_ref[...], w3, preferred_element_type=jnp.float32)
    o_ref[...] = jnp.tanh(y * s3_ref[...] + b3_ref[...])


def mlp_generator(x, folded_params, *, num_channels, image_dim, tile_n=None):
    """x: (B, noise_dim) f32. Returns (B, num_channels, image_dim, image_dim) f32."""
    B, noise_dim = x.shape
    w1, b1, w2q, s2, b2, w3q, s3, b3 = folded_params
    out_dim = num_channels * image_dim * image_dim
    out_dim_p = w3q.shape[1]                      # lane-dense padded output dim
    if tile_n is None:
        tile_n = out_dim_p                        # single grid step (no overhead)
    assert out_dim_p >= out_dim
    assert out_dim_p % tile_n == 0 and tile_n % 128 == 0, (tile_n, out_dim_p)
    grid = (out_dim_p // tile_n,)

    x_bf16 = x.astype(jnp.bfloat16)               # pre-cast once in the wrapper

    # Per-step VMEM working set; x4 covers double-buffering + compiler scratch,
    # clamped safely under v7x's 64 MiB physical VMEM.
    per_step = (x_bf16.nbytes + w1.nbytes + b1.nbytes
                + w2q.nbytes + s2.nbytes + b2.nbytes
                + HALF * tile_n                    # W3' int8 tile
                + 2 * tile_n * 4                   # s3 / b3 tiles
                + B * tile_n * 4                   # output tile
                + B * HALF * 2)                    # h2 scratch
    vmem_limit = int(min(48 * 2**20, max(8 * 2**20, 4 * per_step)))

    flops = 2 * B * (noise_dim * HIDDEN + HIDDEN * HALF + HALF * out_dim_p)
    bytes_accessed = (x_bf16.nbytes + w1.nbytes + b1.nbytes + w2q.nbytes
                      + s2.nbytes + b2.nbytes + w3q.nbytes + s3.nbytes
                      + b3.nbytes + B * out_dim_p * 4)

    out_flat = pl.pallas_call(
        mlp_generator_kernel,
        out_shape=jax.ShapeDtypeStruct((B, out_dim_p), jnp.float32),
        grid=grid,
        in_specs=[
            pl.BlockSpec((B, noise_dim), lambda j: (0, 0)),       # x (resident)
            pl.BlockSpec((noise_dim, HIDDEN), lambda j: (0, 0)),  # W1 bf16 (resident)
            pl.BlockSpec((1, HIDDEN), lambda j: (0, 0)),          # b1
            pl.BlockSpec((HIDDEN, HALF), lambda j: (0, 0)),       # W2' int8 (resident)
            pl.BlockSpec((1, HALF), lambda j: (0, 0)),            # s2
            pl.BlockSpec((1, HALF), lambda j: (0, 0)),            # b2'
            pl.BlockSpec((HALF, tile_n), lambda j: (0, j)),       # W3' int8 column tile
            pl.BlockSpec((1, tile_n), lambda j: (0, j)),          # s3 tile
            pl.BlockSpec((1, tile_n), lambda j: (0, j)),          # b3' tile
        ],
        out_specs=pl.BlockSpec((B, tile_n), lambda j: (0, j)),
        scratch_shapes=[pltpu.VMEM((B, HALF), jnp.bfloat16)],     # cached h2
        compiler_params=pltpu.CompilerParams(
            # Scratch-carried h2 across output tiles -> sequential semantics.
            dimension_semantics=("arbitrary",),
            vmem_limit_bytes=vmem_limit),
        cost_estimate=pl.CostEstimate(
            flops=flops,
            transcendentals=B * out_dim_p,
            bytes_accessed=bytes_accessed),
    )(x_bf16, w1, b1, w2q, s2, b2, w3q, s3, b3)

    if out_dim_p != out_dim:
        out_flat = out_flat[:, :out_dim]
    return out_flat.reshape(B, num_channels, image_dim, image_dim)


# ----------------------------- parameter helpers -----------------------------

def _linear_init(key, fan_in, fan_out):
    """nn.Linear-style U(-1/sqrt(fan_in), 1/sqrt(fan_in)); W stored (in, out)."""
    kw, kb = jax.random.split(key)
    bound = 1.0 / jnp.sqrt(jnp.float32(fan_in))
    w = jax.random.uniform(kw, (fan_in, fan_out), jnp.float32, -bound, bound)
    b = jax.random.uniform(kb, (fan_out,), jnp.float32, -bound, bound)
    return w, b


def _bn_init(key, dim):
    """Deterministic non-trivial BatchNorm1d eval-mode stats (gamma, beta, mean, var)."""
    kg, kb, km, kv = jax.random.split(key, 4)
    gamma = 1.0 + 0.1 * jax.random.normal(kg, (dim,), jnp.float32)
    beta = 0.1 * jax.random.normal(kb, (dim,), jnp.float32)
    mean = 0.05 * jax.random.normal(km, (dim,), jnp.float32)
    var = 1.0 + 0.1 * jax.random.uniform(kv, (dim,), jnp.float32)
    return gamma, beta, mean, var


def make_raw_params(key, noise_dim, num_channels, image_dim):
    out_dim = num_channels * image_dim * image_dim
    k1, k2, k3, kbn1, kbn2 = jax.random.split(key, 5)
    w1, b1 = _linear_init(k1, noise_dim, HIDDEN)
    w2, b2 = _linear_init(k2, HIDDEN, HALF)
    w3, b3 = _linear_init(k3, HALF, out_dim)
    return dict(w1=w1, b1=b1, bn1=_bn_init(kbn1, HIDDEN),
                w2=w2, b2=b2, bn2=_bn_init(kbn2, HALF),
                w3=w3, b3=b3)


def _quantize_per_col(w):
    """Symmetric int8 per-output-column quantization: w ~= w_q * scale."""
    amax = jnp.max(jnp.abs(w), axis=0, keepdims=True)          # (1, N)
    scale = jnp.maximum(amax, 1e-30) / 127.0
    wq = jnp.clip(jnp.round(w / scale), -127.0, 127.0).astype(jnp.int8)
    return wq, scale.astype(jnp.float32)


def fold_params(raw, *, eps=1e-5):
    """Fold eval-mode BN into the next layer, pad layer-3 columns to x128,
    quantize W2'/W3' to int8 (per-column scales), W1 to bf16."""
    def bn_scale_shift(bn):
        gamma, beta, mean, var = bn
        scale = gamma * jax.lax.rsqrt(var + eps)
        return scale, beta - mean * scale

    # Valid fold: module order is Linear -> ReLU -> BatchNorm, so
    # BN(ReLU(z)) @ W_next = ReLU(z) @ (diag(s) W_next) + (t @ W_next).
    s1, t1 = bn_scale_shift(raw["bn1"])           # (HIDDEN,)
    s2, t2 = bn_scale_shift(raw["bn2"])           # (HALF,)

    w1, b1 = raw["w1"], raw["b1"]
    w2 = raw["w2"] * s1[:, None]                  # BN1 folded into layer 2
    b2 = raw["b2"] + t1 @ raw["w2"]
    w3 = raw["w3"] * s2[:, None]                  # BN2 folded into layer 3
    b3 = raw["b3"] + t2 @ raw["w3"]

    out_dim = w3.shape[1]
    out_dim_p = pl.cdiv(out_dim, 128) * 128       # lane-dense (multiple of 128)
    pad = out_dim_p - out_dim
    w3 = jnp.pad(w3, ((0, 0), (0, pad)))
    b3 = jnp.pad(b3, (0, pad))

    w2q, scale2 = _quantize_per_col(w2)
    w3q, scale3 = _quantize_per_col(w3)

    return (w1.astype(jnp.bfloat16),
            b1.reshape(1, -1).astype(jnp.float32),
            w2q, scale2, b2.reshape(1, -1).astype(jnp.float32),
            w3q, scale3, b3.reshape(1, -1).astype(jnp.float32))


def reference_forward(x, raw, *, num_channels, image_dim, eps=1e-5):
    """Pure-JAX f32 reference matching the PyTorch eval-mode forward."""
    def bn(h, p):
        gamma, beta, mean, var = p
        return (h - mean) * gamma * jax.lax.rsqrt(var + eps) + beta
    h = bn(jnp.maximum(x @ raw["w1"] + raw["b1"], 0.0), raw["bn1"])
    h = bn(jnp.maximum(h @ raw["w2"] + raw["b2"], 0.0), raw["bn2"])
    y = jnp.tanh(h @ raw["w3"] + raw["b3"])
    return y.reshape(x.shape[0], num_channels, image_dim, image_dim)


if __name__ == "__main__":
    # Small, module-consistent shapes.
    batch_size = 2
    noise_dim = 64
    num_channels = 4
    image_dim = 16

    key = jax.random.PRNGKey(0)
    kx, kp = jax.random.split(key)

    x = jax.random.normal(kx, (batch_size, noise_dim), jnp.float32)
    raw = make_raw_params(kp, noise_dim, num_channels, image_dim)
    params = fold_params(raw)

    out = mlp_generator(x, params, num_channels=num_channels, image_dim=image_dim)
    out = jax.block_until_ready(out)

    assert out.shape == (batch_size, num_channels, image_dim, image_dim), out.shape
    assert out.dtype == jnp.float32
    assert bool(jnp.all(jnp.isfinite(out)))
    assert bool(jnp.all(jnp.abs(out) <= 1.0))   # tanh output range

    ref = reference_forward(x, raw, num_channels=num_channels, image_dim=image_dim)
    max_err = float(jnp.max(jnp.abs(out - ref)))
    assert max_err < 5e-2, f"mismatch vs f32 reference: {max_err}"   # bf16/int8 weights

    print("KERNEL_OK")
</pallas_src>

<mosaic_0001>
module attributes {stable_mosaic.version = 11 : i64} {
  func.func @mlp_generator_kernel(%arg0: i32, %arg1: memref<2x64xbf16, #tpu.memory_space<vmem>>, %arg2: memref<64x1024xbf16, #tpu.memory_space<vmem>>, %arg3: memref<1x1024xf32, #tpu.memory_space<vmem>>, %arg4: memref<1024x512xi8, #tpu.memory_space<vmem>>, %arg5: memref<1x512xf32, #tpu.memory_space<vmem>>, %arg6: memref<1x512xf32, #tpu.memory_space<vmem>>, %arg7: memref<512x1024xi8, #tpu.memory_space<vmem>>, %arg8: memref<1x1024xf32, #tpu.memory_space<vmem>>, %arg9: memref<1x1024xf32, #tpu.memory_space<vmem>>, %arg10: memref<2x1024xf32, #tpu.memory_space<vmem>>, %arg11: memref<2x512xbf16, #tpu.memory_space<vmem>>) attributes {dimension_semantics = [#tpu.dimension_semantics<arbitrary>], iteration_bounds = array<i64: 1>, scalar_prefetch = 0 : i64, scratch_operands = 1 : i64, tpu.core_type = #tpu.core_type<tc>, window_params = [{pipeline_mode = #tpu.pipeline_mode<synchronous>, transform_indices = @transform_0, window_bounds = array<i64: 2, 64>}, {pipeline_mode = #tpu.pipeline_mode<synchronous>, transform_indices = @transform_1, window_bounds = array<i64: 64, 1024>}, {pipeline_mode = #tpu.pipeline_mode<synchronous>, transform_indices = @transform_2, window_bounds = array<i64: 1, 1024>}, {pipeline_mode = #tpu.pipeline_mode<synchronous>, transform_indices = @transform_3, window_bounds = array<i64: 1024, 512>}, {pipeline_mode = #tpu.pipeline_mode<synchronous>, transform_indices = @transform_4, window_bounds = array<i64: 1, 512>}, {pipeline_mode = #tpu.pipeline_mode<synchronous>, transform_indices = @transform_5, window_bounds = array<i64: 1, 512>}, {transform_indices = @transform_6, window_bounds = array<i64: 512, 1024>}, {transform_indices = @transform_7, window_bounds = array<i64: 1, 1024>}, {transform_indices = @transform_8, window_bounds = array<i64: 1, 1024>}, {transform_indices = @transform_9, window_bounds = array<i64: 2, 1024>}]} {
    %c0_i32 = arith.constant 0 : i32
    %0 = arith.cmpi eq, %arg0, %c0_i32 : i32
    %1 = arith.extui %0 : i1 to i32
    %c0_i32_0 = arith.constant 0 : i32
    %2 = arith.cmpi ne, %1, %c0_i32_0 : i32
    scf.if %2 {
      %c0_10 = arith.constant 0 : index
      %c0_11 = arith.constant 0 : index
      %16 = vector.load %arg1[%c0_10, %c0_11] : memref<2x64xbf16, #tpu.memory_space<vmem>>, vector<2x64xbf16>
      %c0_12 = arith.constant 0 : index
      %c0_13 = arith.constant 0 : index
      %17 = vector.load %arg2[%c0_12, %c0_13] : memref<64x1024xbf16, #tpu.memory_space<vmem>>, vector<64x1024xbf16>
      %cst_14 = arith.constant dense<0.000000e+00> : vector<2x1024xf32>
      %18 = tpu.matmul %16, %17, %cst_14 {dimension_numbers = #tpu.dot_dimension_numbers<[1], [0], [0], [1], [0, 0, 1, 1], [], []>} : vector<2x64xbf16>, vector<64x1024xbf16>, vector<2x1024xf32> -> vector<2x1024xf32>
      %c0_15 = arith.constant 0 : index
      %c0_16 = arith.constant 0 : index
      %19 = vector.load %arg3[%c0_15, %c0_16] : memref<1x1024xf32, #tpu.memory_space<vmem>>, vector<1x1024xf32>
      %20 = vector.broadcast %19 : vector<1x1024xf32> to vector<2x1024xf32>
      %21 = arith.addf %18, %20 : vector<2x1024xf32>
      %cst_17 = arith.constant 0.000000e+00 : f32
      %22 = vector.broadcast %cst_17 : f32 to vector<2x1024xf32>
      %23 = arith.maximumf %21, %22 : vector<2x1024xf32>
      %c0_18 = arith.constant 0 : index
      %c0_19 = arith.constant 0 : index
      %24 = vector.load %arg4[%c0_18, %c0_19] : memref<1024x512xi8, #tpu.memory_space<vmem>>, vector<1024x512xi8>
      %25 = arith.sitofp %24 : vector<1024x512xi8> to vector<1024x512xf32>
      %26 = arith.truncf %25 : vector<1024x512xf32> to vector<1024x512xbf16>
      %27 = arith.truncf %23 : vector<2x1024xf32> to vector<2x1024xbf16>
      %cst_20 = arith.constant dense<0.000000e+00> : vector<2x512xf32>
      %28 = tpu.matmul %27, %26, %cst_20 {dimension_numbers = #tpu.dot_dimension_numbers<[1], [0], [0], [1], [0, 0, 1, 1], [], []>} : vector<2x1024xbf16>, vector<1024x512xbf16>, vector<2x512xf32> -> vector<2x512xf32>
      %c0_21 = arith.constant 0 : index
      %c0_22 = arith.constant 0 : index
      %29 = vector.load %arg5[%c0_21, %c0_22] : memref<1x512xf32, #tpu.memory_space<vmem>>, vector<1x512xf32>
      %30 = vector.broadcast %29 : vector<1x512xf32> to vector<2x512xf32>
      %31 = arith.mulf %28, %30 : vector<2x512xf32>
      %c0_23 = arith.constant 0 : index
      %c0_24 = arith.constant 0 : index
      %32 = vector.load %arg6[%c0_23, %c0_24] : memref<1x512xf32, #tpu.memory_space<vmem>>, vector<1x512xf32>
      %33 = vector.broadcast %32 : vector<1x512xf32> to vector<2x512xf32>
      %34 = arith.addf %31, %33 : vector<2x512xf32>
      %cst_25 = arith.constant 0.000000e+00 : f32
      %35 = vector.broadcast %cst_25 : f32 to vector<2x512xf32>
      %36 = arith.maximumf %34, %35 : vector<2x512xf32>
      %37 = arith.truncf %36 : vector<2x512xf32> to vector<2x512xbf16>
      %c0_26 = arith.constant 0 : index
      %c0_27 = arith.constant 0 : index
      %38 = vector.load %arg11[%c0_26, %c0_27] : memref<2x512xbf16, #tpu.memory_space<vmem>>, vector<2x512xbf16>
      tpu.vector_store %arg11[%c0_26, %c0_27], %37 {strides = array<i32>} : memref<2x512xbf16, #tpu.memory_space<vmem>>, vector<2x512xbf16>,
    } else {
    }
    %c0 = arith.constant 0 : index
    %c0_1 = arith.constant 0 : index
    %3 = vector.load %arg7[%c0, %c0_1] : memref<512x1024xi8, #tpu.memory_space<vmem>>, vector<512x1024xi8>
    %4 = arith.sitofp %3 : vector<512x1024xi8> to vector<512x1024xf32>
    %5 = arith.truncf %4 : vector<512x1024xf32> to vector<512x1024xbf16>
    %c0_2 = arith.constant 0 : index
    %c0_3 = arith.constant 0 : index
    %6 = vector.load %arg11[%c0_2, %c0_3] : memref<2x512xbf16, #tpu.memory_space<vmem>>, vector<2x512xbf16>
    %cst = arith.constant dense<0.000000e+00> : vector<2x1024xf32>
    %7 = tpu.matmul %6, %5, %cst {dimension_numbers = #tpu.dot_dimension_numbers<[1], [0], [0], [1], [0, 0, 1, 1], [], []>} : vector<2x512xbf16>, vector<512x1024xbf16>, vector<2x1024xf32> -> vector<2x1024xf32>
    %c0_4 = arith.constant 0 : index
    %c0_5 = arith.constant 0 : index
    %8 = vector.load %arg8[%c0_4, %c0_5] : memref<1x1024xf32, #tpu.memory_space<vmem>>, vector<1x1024xf32>
    %9 = vector.broadcast %8 : vector<1x1024xf32> to vector<2x1024xf32>
    %10 = arith.mulf %7, %9 : vector<2x1024xf32>
    %c0_6 = arith.constant 0 : index
    %c0_7 = arith.constant 0 : index
    %11 = vector.load %arg9[%c0_6, %c0_7] : memref<1x1024xf32, #tpu.memory_space<vmem>>, vector<1x1024xf32>
    %12 = vector.broadcast %11 : vector<1x1024xf32> to vector<2x1024xf32>
    %13 = arith.addf %10, %12 : vector<2x1024xf32>
    %14 = math.tanh %13 : vector<2x1024xf32>
    %c0_8 = arith.constant 0 : index
    %c0_9 = arith.constant 0 : index
    %15 = vector.load %arg10[%c0_8, %c0_9] : memref<2x1024xf32, #tpu.memory_space<vmem>>, vector<2x1024xf32>
    tpu.vector_store %arg10[%c0_8, %c0_9], %14 {strides = array<i32>} : memref<2x1024xf32, #tpu.memory_space<vmem>>, vector<2x1024xf32>,
    return
  }
  func.func @transform_0(%arg0: i32) -> (i32, i32) {
    %c0_i32 = arith.constant 0 : i32
    %c0_i32_0 = arith.constant 0 : i32
    %c0_i32_1 = arith.constant 0 : i32
    return %c0_i32, %c0_i32_0 : i32, i32
  }
  func.func @transform_1(%arg0: i32) -> (i32, i32) {
    %c0_i32 = arith.constant 0 : i32
    %c0_i32_0 = arith.constant 0 : i32
    %c0_i32_1 = arith.constant 0 : i32
    return %c0_i32, %c0_i32_0 : i32, i32
  }
  func.func @transform_2(%arg0: i32) -> (i32, i32) {
    %c0_i32 = arith.constant 0 : i32
    %c0_i32_0 = arith.constant 0 : i32
    %c0_i32_1 = arith.constant 0 : i32
    return %c0_i32, %c0_i32_0 : i32, i32
  }
  func.func @transform_3(%arg0: i32) -> (i32, i32) {
    %c0_i32 = arith.constant 0 : i32
    %c0_i32_0 = arith.constant 0 : i32
    %c0_i32_1 = arith.constant 0 : i32
    return %c0_i32, %c0_i32_0 : i32, i32
  }
  func.func @transform_4(%arg0: i32) -> (i32, i32) {
    %c0_i32 = arith.constant 0 : i32
    %c0_i32_0 = arith.constant 0 : i32
    %c0_i32_1 = arith.constant 0 : i32
    return %c0_i32, %c0_i32_0 : i32, i32
  }
  func.func @transform_5(%arg0: i32) -> (i32, i32) {
    %c0_i32 = arith.constant 0 : i32
    %c0_i32_0 = arith.constant 0 : i32
    %c0_i32_1 = arith.constant 0 : i32
    return %c0_i32, %c0_i32_0 : i32, i32
  }
  func.func @transform_6(%arg0: i32) -> (i32, i32) {
    %c0_i32 = arith.constant 0 : i32
    %c0_i32_0 = arith.constant 0 : i32
    return %c0_i32, %arg0 : i32, i32
  }
  func.func @transform_7(%arg0: i32) -> (i32, i32) {
    %c0_i32 = arith.constant 0 : i32
    %c0_i32_0 = arith.constant 0 : i32
    return %c0_i32, %arg0 : i32, i32
  }
  func.func @transform_8(%arg0: i32) -> (i32, i32) {
    %c0_i32 = arith.constant 0 : i32
    %c0_i32_0 = arith.constant 0 : i32
    return %c0_i32, %arg0 : i32, i32
  }
  func.func @transform_9(%arg0: i32) -> (i32, i32) {
    %c0_i32 = arith.constant 0 : i32
    %c0_i32_0 = arith.constant 0 : i32
    return %c0_i32, %arg0 : i32, i32
  }
}

</mosaic_0001>

<llo_original>
// kernel: tpu_custom_call.1
$region0: #{tpu_custom_call.1}
  #allocation0 [shape = 'u32[]', space=smem, size = 0x4, offset = 0x4, fixed_abs, tag = 'smem constant byte address 0x4 - core index']
  #allocation1 [shape = 'u32[72,128]{1,0:T(1,128)}', space=vmem, size = 0x9000, scoped, tag = 'internal scratch']
  #allocation2 [shape = 'bf16[2,512]{1,0:T(2,128)(2,1)}', space=vmem, size = 0x800, scoped, tag = 'scratch operand']
  %s0 = inlined_call_operand.hbm [shape: bf16[2,64], index: 0, kind: input, shape index: {}]
  %s1 = inlined_call_operand.hbm [shape: bf16[64,1024], index: 1, kind: input, shape index: {}]
  %s2 = inlined_call_operand.hbm [shape: f32[1,1024], index: 2, kind: input, shape index: {}]
  %s3 = inlined_call_operand.hbm [shape: s8[1024,512], index: 3, kind: input, shape index: {}]
  %s4 = inlined_call_operand.hbm [shape: f32[1,512], index: 4, kind: input, shape index: {}]
  %s5 = inlined_call_operand.vmem [shape: f32[1,512], index: 5, kind: input, shape index: {}]
  %s6 = inlined_call_operand.hbm [shape: s8[512,1024], index: 6, kind: input, shape index: {}]
  %s7 = inlined_call_operand.hbm [shape: f32[1,1024], index: 7, kind: input, shape index: {}]
  %s8 = inlined_call_operand.hbm [shape: f32[1,1024], index: 8, kind: input, shape index: {}]
  %s9 = inlined_call_operand.hbm [shape: f32[2,1024], index: 9, kind: output, shape index: {}]
  %s10 = sld [smem:[#allocation0]]
  $region82: #{tpu_custom_call.1} parent=0
    _
  %s12 = ssub.s32 1, %s10
  %s13 = scalar_select 0, %s12, %s10
  $region1: #{tpu_custom_call.1} parent=0
    #allocation3 [shape = 'u8[512]{0}', space=vmem, size = 0x400, scoped, tag = 'input window, operand 0, single buffered']
    #allocation4 [shape = 's32[1]{0}', space=sflag, size = 0x4, scoped, tag = 'scoped memory for tpu_custom_call.1']
    #allocation5 [shape = 's32[1]{0}', space=sflag, size = 0x4, scoped, tag = 'scoped memory for tpu_custom_call.1']
    #allocation6 [shape = 'u8[131072]{0}', space=vmem, size = 0x20000, scoped, tag = 'input window, operand 1, single buffered']
    #allocation7 [shape = 's32[1]{0}', space=sflag, size = 0x4, scoped, tag = 'scoped memory for tpu_custom_call.1']
    #allocation8 [shape = 'u8[4096]{0}', space=vmem, size = 0x1000, scoped, tag = 'input window, operand 2, single buffered']
    #allocation9 [shape = 'u8[524288]{0}', space=vmem, size = 0x80000, scoped, tag = 'input window, operand 3, single buffered']
    #allocation10 [shape = 's32[1]{0}', space=sflag, size = 0x4, scoped, tag = 'scoped memory for tpu_custom_call.1']
    #allocation11 [shape = 'u8[2048]{0}', space=vmem, size = 0x800, scoped, tag = 'input window, operand 4, single buffered']
    #allocation12 [shape = 'u8[524288]{0}', space=vmem, size = 0x80000, scoped, tag = 'input window, operand 6, single buffered']
    #allocation13 [shape = 's32[1]{0}', space=sflag, size = 0x4, scoped, tag = 'scoped memory for tpu_custom_call.1']
    #allocation14 [shape = 'u8[4096]{0}', space=vmem, size = 0x1000, scoped, tag = 'input window, operand 7, single buffered']
    #allocation15 [shape = 'u8[4096]{0}', space=vmem, size = 0x1000, scoped, tag = 'input window, operand 8, single buffered']
    #allocation16 [shape = 's32[1]{0}', space=sflag, size = 0x4, scoped, tag = 'scoped memory for tpu_custom_call.1']
    #allocation17 [shape = 'u8[8192]{0}', space=vmem, size = 0x2000, scoped, tag = 'output window, operand 0, single buffered']
    %14 = vsyncpa [#allocation4], 0
    %15 = vsyncpa [#allocation7], 0
    %16 = vsyncpa [#allocation10], 0
    %17 = vsyncpa [#allocation13], 0
    %18 = vsyncpa [#allocation16], 0
    %19 = vsyncpa [#allocation5], 0
    // Predicated region
    $region2: #{tpu_custom_call.1} parent=1 // pred_check
      _
    $region3: #{tpu_custom_call.1} parent=1 // pred_check_branch
      %21 = sbr.rel (0) target = $region5
    $region4: #{tpu_custom_call.1} parent=1 // pred_region
      %23 = vsyncadd [#allocation4], 0
      %s25 = sshll.u32 %s0, 4
      %s26 = int_to_ptr.hbm [resolvable:$true] %s25
      %s27 = sshll.u32 [#allocation3], 4
      %s28 = int_to_ptr.vmem [resolvable:$true] %s27
      %30 = dma.hbm_to_vmem [thread:$0]  %s26, 16, %s28, [#allocation4]
    $region5: #{tpu_custom_call.1} parent=1 // pred_fallthru
      _
    // Predicated region
    $region6: #{tpu_custom_call.1} parent=1 // pred_check
      _
    $region7: #{tpu_custom_call.1} parent=1 // pred_check_branch
      %32 = sbr.rel (0) target = $region9
    $region8: #{tpu_custom_call.1} parent=1 // pred_region
      %34 = vsyncadd [#allocation7], 0
      %s35 = sshll.u32 %s1, 4
      %s36 = int_to_ptr.hbm [resolvable:$true] %s35
      %s37 = sshll.u32 [#allocation6], 4
      %s38 = int_to_ptr.vmem [resolvable:$true] %s37
      %43 = dma.hbm_to_vmem [thread:$0]  %s36, 4096, %s38, [#allocation7], 512, 512, 32
    $region9: #{tpu_custom_call.1} parent=1 // pred_fallthru
      _
    // Predicated region
    $region10: #{tpu_custom_call.1} parent=1 // pred_check
      _
    $region11: #{tpu_custom_call.1} parent=1 // pred_check_branch
      %45 = sbr.rel (0) target = $region13
    $region12: #{tpu_custom_call.1} parent=1 // pred_region
      %47 = vsyncadd [#allocation7], 0
      %s49 = sshll.u32 %s2, 4
      %s50 = int_to_ptr.hbm [resolvable:$true] %s49
      %s51 = sshll.u32 [#allocation8], 4
      %s52 = int_to_ptr.vmem [resolvable:$true] %s51
      %54 = dma.hbm_to_vmem [thread:$0]  %s50, 128, %s52, [#allocation7]
    $region13: #{tpu_custom_call.1} parent=1 // pred_fallthru
      _
    // Predicated region
    $region14: #{tpu_custom_call.1} parent=1 // pred_check
      _
    $region15: #{tpu_custom_call.1} parent=1 // pred_check_branch
      %56 = sbr.rel (0) target = $region17
    $region16: #{tpu_custom_call.1} parent=1 // pred_region
      %58 = vsyncadd [#allocation10], 0
      %s59 = sshll.u32 %s3, 4
      %s60 = int_to_ptr.hbm [resolvable:$true] %s59
      %s61 = sshll.u32 [#allocation9], 4
      %s62 = int_to_ptr.vmem [resolvable:$true] %s61
      %67 = dma.hbm_to_vmem [thread:$0]  %s60, 16384, %s62, [#allocation10], 512, 512, 32
    $region17: #{tpu_custom_call.1} parent=1 // pred_fallthru
      _
    // Predicated region
    $region18: #{tpu_custom_call.1} parent=1 // pred_check
      _
    $region19: #{tpu_custom_call.1} parent=1 // pred_check_branch
      %69 = sbr.rel (0) target = $region21
    $region20: #{tpu_custom_call.1} parent=1 // pred_region
      %71 = vsyncadd [#allocation10], 0
      %s73 = sshll.u32 %s4, 4
      %s74 = int_to_ptr.hbm [resolvable:$true] %s73
      %s75 = sshll.u32 [#allocation11], 4
      %s76 = int_to_ptr.vmem [resolvable:$true] %s75
      %78 = dma.hbm_to_vmem [thread:$0]  %s74, 64, %s76, [#allocation10]
    $region21: #{tpu_custom_call.1} parent=1 // pred_fallthru
      _
    // Predicated region
    $region22: #{tpu_custom_call.1} parent=1 // pred_check
      _
    $region23: #{tpu_custom_call.1} parent=1 // pred_check_branch
      %80 = sbr.rel (0) target = $region25
    $region24: #{tpu_custom_call.1} parent=1 // pred_region
      _
    $region25: #{tpu_custom_call.1} parent=1 // pred_fallthru
      _
    // Predicated region
    $region26: #{tpu_custom_call.1} parent=1 // pred_check
      _
    $region27: #{tpu_custom_call.1} parent=1 // pred_check_branch
      %82 = sbr.rel (0) target = $region29
    $region28: #{tpu_custom_call.1} parent=1 // pred_region
      %84 = vsyncadd [#allocation13], 0
      %s85 = sshll.u32 %s6, 4
      %s86 = int_to_ptr.hbm [resolvable:$true] %s85
      %s87 = sshll.u32 [#allocation12], 4
      %s88 = int_to_ptr.vmem [resolvable:$true] %s87
      %93 = dma.hbm_to_vmem [thread:$0]  %s86, 16384, %s88, [#allocation13], 1024, 1024, 64
    $region29: #{tpu_custom_call.1} parent=1 // pred_fallthru
      _
    // Predicated region
    $region30: #{tpu_custom_call.1} parent=1 // pred_check
      _
    $region31: #{tpu_custom_call.1} parent=1 // pred_check_branch
      %95 = sbr.rel (0) target = $region33
    $region32: #{tpu_custom_call.1} parent=1 // pred_region
      %97 = vsyncadd [#allocation13], 0
      %s99 = sshll.u32 %s7, 4
      %s100 = int_to_ptr.hbm [resolvable:$true] %s99
      %s101 = sshll.u32 [#allocation14], 4
      %s102 = int_to_ptr.vmem [resolvable:$true] %s101
      %104 = dma.hbm_to_vmem [thread:$0]  %s100, 128, %s102, [#allocation13]
    $region33: #{tpu_custom_call.1} parent=1 // pred_fallthru
      _
    // Predicated region
    $region34: #{tpu_custom_call.1} parent=1 // pred_check
      _
    $region35: #{tpu_custom_call.1} parent=1 // pred_check_branch
      %106 = sbr.rel (0) target = $region37
    $region36: #{tpu_custom_call.1} parent=1 // pred_region
      %108 = vsyncadd [#allocation16], 0
      %s110 = sshll.u32 %s8, 4
      %s111 = int_to_ptr.hbm [resolvable:$true] %s110
      %s112 = sshll.u32 [#allocation15], 4
      %s113 = int_to_ptr.vmem [resolvable:$true] %s112
      %115 = dma.hbm_to_vmem [thread:$0]  %s111, 128, %s113, [#allocation16]
    $region37: #{tpu_custom_call.1} parent=1 // pred_fallthru
      _
    // Predicated region
    $region38: #{tpu_custom_call.1} parent=1 // pred_check
      _
    $region39: #{tpu_custom_call.1} parent=1 // pred_check_branch
      %117 = sbr.rel (0) target = $region41
    $region40: #{tpu_custom_call.1} parent=1 // pred_region
      %119 = dma.done [#allocation4], 16
    $region41: #{tpu_custom_call.1} parent=1 // pred_fallthru
      _
    // Predicated region
    $region42: #{tpu_custom_call.1} parent=1 // pred_check
      _
    $region43: #{tpu_custom_call.1} parent=1 // pred_check_branch
      %121 = sbr.rel (0) target = $region45
    $region44: #{tpu_custom_call.1} parent=1 // pred_region
      %123 = dma.done [#allocation7], 4096
    $region45: #{tpu_custom_call.1} parent=1 // pred_fallthru
      _
    // Predicated region
    $region46: #{tpu_custom_call.1} parent=1 // pred_check
      _
    $region47: #{tpu_custom_call.1} parent=1 // pred_check_branch
      %125 = sbr.rel (0) target = $region49
    $region48: #{tpu_custom_call.1} parent=1 // pred_region
      %127 = dma.done [#allocation7], 128
    $region49: #{tpu_custom_call.1} parent=1 // pred_fallthru
      _
    // Predicated region
    $region50: #{tpu_custom_call.1} parent=1 // pred_check
      _
    $region51: #{tpu_custom_call.1} parent=1 // pred_check_branch
      %129 = sbr.rel (0) target = $region53
    $region52: #{tpu_custom_call.1} parent=1 // pred_region
      %131 = dma.done [#allocation10], 16384
    $region53: #{tpu_custom_call.1} parent=1 // pred_fallthru
      _
    // Predicated region
    $region54: #{tpu_custom_call.1} parent=1 // pred_check
      _
    $region55: #{tpu_custom_call.1} parent=1 // pred_check_branch
      %133 = sbr.rel (0) target = $region57
    $region56: #{tpu_custom_call.1} parent=1 // pred_region
      %135 = dma.done [#allocation10], 64
    $region57: #{tpu_custom_call.1} parent=1 // pred_fallthru
      _
    // Predicated region
    $region58: #{tpu_custom_call.1} parent=1 // pred_check
      _
    $region59: #{tpu_custom_call.1} parent=1 // pred_check_branch
      %137 = sbr.rel (0) target = $region61
    $region60: #{tpu_custom_call.1} parent=1 // pred_region
      %139 = dma.done [#allocation13], 16384
    $region61: #{tpu_custom_call.1} parent=1 // pred_fallthru
      _
    // Predicated region
    $region62: #{tpu_custom_call.1} parent=1 // pred_check
      _
    $region63: #{tpu_custom_call.1} parent=1 // pred_check_branch
      %141 = sbr.rel (0) target = $region65
    $region64: #{tpu_custom_call.1} parent=1 // pred_region
      %143 = dma.done [#allocation13], 128
    $region65: #{tpu_custom_call.1} parent=1 // pred_fallthru
      _
    // Predicated region
    $region66: #{tpu_custom_call.1} parent=1 // pred_check
      _
    $region67: #{tpu_custom_call.1} parent=1 // pred_check_branch
      %145 = sbr.rel (0) target = $region69
    $region68: #{tpu_custom_call.1} parent=1 // pred_region
      %147 = dma.done [#allocation16], 128
    $region69: #{tpu_custom_call.1} parent=1 // pred_fallthru
      _
    %p149 = scmp.eq.s32.totalorder 0, 0
    // Predicated region
    $region70: #{tpu_custom_call.1} parent=1 // pred_check
      %p150 = pneg %p149
    $region71: #{tpu_custom_call.1} parent=1 // pred_check_branch
      %152 = sbr.rel (%p150) target = $region73
    $region72: #{tpu_custom_call.1} parent=1 // pred_region
      %v153 = vld [vmem:[#allocation3] sm:$0x1]
      %v154 = vld [vmem:[#allocation6] sm:$0xff]
      %v155 = vld [vmem:[#allocation6 + $0x8] sm:$0xff]
      %v156 = vld [vmem:[#allocation6 + $0x10] sm:$0xff]
      %v157 = vld [vmem:[#allocation6 + $0x18] sm:$0xff]
      %v158 = vld [vmem:[#allocation6 + $0x20] sm:$0xff]
      %v159 = vld [vmem:[#allocation6 + $0x28] sm:$0xff]
      %v160 = vld [vmem:[#allocation6 + $0x30] sm:$0xff]
      %v161 = vld [vmem:[#allocation6 + $0x38] sm:$0xff]
      %v162 = vld [vmem:[#allocation6 + $0x40] sm:$0xff]
      %v163 = vld [vmem:[#allocation6 + $0x48] sm:$0xff]
      %v164 = vld [vmem:[#allocation6 + $0x50] sm:$0xff]
      %v165 = vld [vmem:[#allocation6 + $0x58] sm:$0xff]
      %v166 = vld [vmem:[#allocation6 + $0x60] sm:$0xff]
      %v167 = vld [vmem:[#allocation6 + $0x68] sm:$0xff]
      %v168 = vld [vmem:[#allocation6 + $0x70] sm:$0xff]
      %v169 = vld [vmem:[#allocation6 + $0x78] sm:$0xff]
      %v170 = vld [vmem:[#allocation6 + $0x80] sm:$0xff]
      %v171 = vld [vmem:[#allocation6 + $0x88] sm:$0xff]
      %v172 = vld [vmem:[#allocation6 + $0x90] sm:$0xff]
      %v173 = vld [vmem:[#allocation6 + $0x98] sm:$0xff]
      %v174 = vld [vmem:[#allocation6 + $0xa0] sm:$0xff]
      %v175 = vld [vmem:[#allocation6 + $0xa8] sm:$0xff]
      %v176 = vld [vmem:[#allocation6 + $0xb0] sm:$0xff]
      %v177 = vld [vmem:[#allocation6 + $0xb8] sm:$0xff]
      %v178 = vld [vmem:[#allocation6 + $0xc0] sm:$0xff]
      %v179 = vld [vmem:[#allocation6 + $0xc8] sm:$0xff]
      %v180 = vld [vmem:[#allocation6 + $0xd0] sm:$0xff]
      %v181 = vld [vmem:[#allocation6 + $0xd8] sm:$0xff]
      %v182 = vld [vmem:[#allocation6 + $0xe0] sm:$0xff]
      %v183 = vld [vmem:[#allocation6 + $0xe8] sm:$0xff]
      %v184 = vld [vmem:[#allocation6 + $0xf0] sm:$0xff]
      %v185 = vld [vmem:[#allocation6 + $0xf8] sm:$0xff]
      %v186 = vld [vmem:[#allocation8] sm:$0xff]
      %v188 = vperm.slane %v186, 0
      %v189 = vperm.slane %v186, 1
      %v190 = vperm.slane %v186, 2
      %v191 = vperm.slane %v186, 3
      %v192 = vperm.slane %v186, 4
      %v193 = vperm.slane %v186, 5
      %v194 = vperm.slane %v186, 6
      %v195 = vperm.slane %v186, 7
      %v236 = vunpack.c.l.b16 %v154
      %v237 = vunpack.c.h.b16 %v154
      %v238 = vunpack.c.l.b16 %v155
      %v239 = vunpack.c.h.b16 %v155
      %v240 = vunpack.c.l.b16 %v156
      %v241 = vunpack.c.h.b16 %v156
      %v242 = vunpack.c.l.b16 %v157
      %v243 = vunpack.c.h.b16 %v157
      %v244 = vunpack.c.l.b16 %v158
      %v245 = vunpack.c.h.b16 %v158
      %v246 = vunpack.c.l.b16 %v159
      %v247 = vunpack.c.h.b16 %v159
      %v248 = vunpack.c.l.b16 %v160
      %v249 = vunpack.c.h.b16 %v160
      %v250 = vunpack.c.l.b16 %v161
      %v251 = vunpack.c.h.b16 %v161
      %v252 = vunpack.c.l.b16 %v162
      %v253 = vunpack.c.h.b16 %v162
      %v254 = vunpack.c.l.b16 %v163
      %v255 = vunpack.c.h.b16 %v163
      %v256 = vunpack.c.l.b16 %v164
      %v257 = vunpack.c.h.b16 %v164
      %v258 = vunpack.c.l.b16 %v165
      %v259 = vunpack.c.h.b16 %v165
      %v260 = vunpack.c.l.b16 %v166
      %v261 = vunpack.c.h.b16 %v166
      %v262 = vunpack.c.l.b16 %v167
      %v263 = vunpack.c.h.b16 %v167
      %v264 = vunpack.c.l.b16 %v168
      %v265 = vunpack.c.h.b16 %v168
      %v266 = vunpack.c.l.b16 %v169
      %v267 = vunpack.c.h.b16 %v169
      %v268 = vunpack.c.l.b16 %v170
      %v269 = vunpack.c.h.b16 %v170
      %v270 = vunpack.c.l.b16 %v171
      %v271 = vunpack.c.h.b16 %v171
      %v272 = vunpack.c.l.b16 %v172
      %v273 = vunpack.c.h.b16 %v172
      %v274 = vunpack.c.l.b16 %v173
      %v275 = vunpack.c.h.b16 %v173
      %v276 = vunpack.c.l.b16 %v174
      %v277 = vunpack.c.h.b16 %v174
      %v278 = vunpack.c.l.b16 %v175
      %v279 = vunpack.c.h.b16 %v175
      %v280 = vunpack.c.l.b16 %v176
      %v281 = vunpack.c.h.b16 %v176
      %v282 = vunpack.c.l.b16 %v177
      %v283 = vunpack.c.h.b16 %v177
      %v284 = vunpack.c.l.b16 %v178
      %v285 = vunpack.c.h.b16 %v178
      %v286 = vunpack.c.l.b16 %v179
      %v287 = vunpack.c.h.b16 %v179
      %v288 = vunpack.c.l.b16 %v180
      %v289 = vunpack.c.h.b16 %v180
      %v290 = vunpack.c.l.b16 %v181
      %v291 = vunpack.c.h.b16 %v181
      %v292 = vunpack.c.l.b16 %v182
      %v293 = vunpack.c.h.b16 %v182
      %v294 = vunpack.c.l.b16 %v183
      %v295 = vunpack.c.h.b16 %v183
      %v296 = vunpack.c.l.b16 %v184
      %v297 = vunpack.c.h.b16 %v184
      %v298 = vunpack.c.l.b16 %v185
      %v299 = vunpack.c.h.b16 %v185
      %v300 = vpack.c.b16 %v244, %v236
      %v301 = vpack.c.b16 %v245, %v237
      %v302 = vpack.c.b16 %v246, %v238
      %v303 = vpack.c.b16 %v247, %v239
      %v304 = vpack.c.b16 %v248, %v240
      %v305 = vpack.c.b16 %v249, %v241
      %v306 = vpack.c.b16 %v250, %v242
      %v307 = vpack.c.b16 %v251, %v243
      %v308 = vpack.c.b16 %v260, %v252
      %v309 = vpack.c.b16 %v261, %v253
      %v310 = vpack.c.b16 %v262, %v254
      %v311 = vpack.c.b16 %v263, %v255
      %v312 = vpack.c.b16 %v264, %v256
      %v313 = vpack.c.b16 %v265, %v257
      %v314 = vpack.c.b16 %v266, %v258
      %v315 = vpack.c.b16 %v267, %v259
      %v316 = vpack.c.b16 %v276, %v268
      %v317 = vpack.c.b16 %v277, %v269
      %v318 = vpack.c.b16 %v278, %v270
      %v319 = vpack.c.b16 %v279, %v271
      %v320 = vpack.c.b16 %v280, %v272
      %v321 = vpack.c.b16 %v281, %v273
      %v322 = vpack.c.b16 %v282, %v274
      %v323 = vpack.c.b16 %v283, %v275
      %v324 = vpack.c.b16 %v292, %v284
      %v325 = vpack.c.b16 %v293, %v285
      %v326 = vpack.c.b16 %v294, %v286
      %v327 = vpack.c.b16 %v295, %v287
      %v328 = vpack.c.b16 %v296, %v288
      %v329 = vpack.c.b16 %v297, %v289
      %v330 = vpack.c.b16 %v298, %v290
      %v331 = vpack.c.b16 %v299, %v291
      %vm364 = vcmask 523264
      %v366 = vsel %vm364, %v153, 0
      %368 = vmatpush.bf16.msra.mxu0 0
      %369 = vmatpush.bf16.msra.mxu0 0
      %370 = vmatpush.bf16.msra.mxu0 0
      %371 = vmatpush.bf16.msra.mxu0 0
      %372 = vmatpush.bf16.msra.mxu0 %v324
      %373 = vmatpush.bf16.msra.mxu0 %v316
      %374 = vmatpush.bf16.msra.mxu0 %v308
      %375 = vmatpush.bf16.msra.mxu0 %v300
      %376 = vmatmul.bf16.gmra.mxu0 %v366
      %v377 = vpop.f32.mrf.mxu0
      %v378 = vadd.f32 %v188, %v377
      %v379 = vpop.f32.mrf.mxu0
      %380 = vdwg.mxu0
      %381 = vmatpush.bf16.msra.mxu0 0
      %382 = vmatpush.bf16.msra.mxu0 0
      %383 = vmatpush.bf16.msra.mxu0 0
      %384 = vmatpush.bf16.msra.mxu0 0
      %385 = vmatpush.bf16.msra.mxu0 %v325
      %386 = vmatpush.bf16.msra.mxu0 %v317
      %387 = vmatpush.bf16.msra.mxu0 %v309
      %388 = vmatpush.bf16.msra.mxu0 %v301
      %389 = vmatmul.bf16.gmra.mxu0 %v366
      %v390 = vpop.f32.mrf.mxu0
      %v391 = vadd.f32 %v189, %v390
      %v392 = vpop.f32.mrf.mxu0
      %393 = vdwg.mxu0
      %394 = vmatpush.bf16.msra.mxu0 0
      %395 = vmatpush.bf16.msra.mxu0 0
      %396 = vmatpush.bf16.msra.mxu0 0
      %397 = vmatpush.bf16.msra.mxu0 0
      %398 = vmatpush.bf16.msra.mxu0 %v326
      %399 = vmatpush.bf16.msra.mxu0 %v318
      %400 = vmatpush.bf16.msra.mxu0 %v310
      %401 = vmatpush.bf16.msra.mxu0 %v302
      %402 = vmatmul.bf16.gmra.mxu0 %v366
      %v403 = vpop.f32.mrf.mxu0
      %v404 = vadd.f32 %v190, %v403
      %v405 = vpop.f32.mrf.mxu0
      %406 = vdwg.mxu0
      %407 = vmatpush.bf16.msra.mxu0 0
      %408 = vmatpush.bf16.msra.mxu0 0
      %409 = vmatpush.bf16.msra.mxu0 0
      %410 = vmatpush.bf16.msra.mxu0 0
      %411 = vmatpush.bf16.msra.mxu0 %v327
      %412 = vmatpush.bf16.msra.mxu0 %v319
      %413 = vmatpush.bf16.msra.mxu0 %v311
      %414 = vmatpush.bf16.msra.mxu0 %v303
      %415 = vmatmul.bf16.gmra.mxu0 %v366
      %v416 = vpop.f32.mrf.mxu0
      %v417 = vadd.f32 %v191, %v416
      %v418 = vpop.f32.mrf.mxu0
      %419 = vdwg.mxu0
      %420 = vmatpush.bf16.msra.mxu0 0
      %421 = vmatpush.bf16.msra.mxu0 0
      %422 = vmatpush.bf16.msra.mxu0 0
      %423 = vmatpush.bf16.msra.mxu0 0
      %424 = vmatpush.bf16.msra.mxu0 %v328
      %425 = vmatpush.bf16.msra.mxu0 %v320
      %426 = vmatpush.bf16.msra.mxu0 %v312
      %427 = vmatpush.bf16.msra.mxu0 %v304
      %428 = vmatmul.bf16.gmra.mxu0 %v366
      %v429 = vpop.f32.mrf.mxu0
      %v430 = vadd.f32 %v192, %v429
      %v431 = vpop.f32.mrf.mxu0
      %432 = vdwg.mxu0
      %433 = vmatpush.bf16.msra.mxu0 0
      %434 = vmatpush.bf16.msra.mxu0 0
      %435 = vmatpush.bf16.msra.mxu0 0
      %436 = vmatpush.bf16.msra.mxu0 0
      %437 = vmatpush.bf16.msra.mxu0 %v329
      %438 = vmatpush.bf16.msra.mxu0 %v321
      %439 = vmatpush.bf16.msra.mxu0 %v313
      %440 = vmatpush.bf16.msra.mxu0 %v305
      %441 = vmatmul.bf16.gmra.mxu0 %v366
      %v442 = vpop.f32.mrf.mxu0
      %v443 = vadd.f32 %v193, %v442
      %v444 = vpop.f32.mrf.mxu0
      %445 = vdwg.mxu0
      %446 = vmatpush.bf16.msra.mxu0 0
      %447 = vmatpush.bf16.msra.mxu0 0
      %448 = vmatpush.bf16.msra.mxu0 0
      %449 = vmatpush.bf16.msra.mxu0 0
      %450 = vmatpush.bf16.msra.mxu0 %v330
      %451 = vmatpush.bf16.msra.mxu0 %v322
      %452 = vmatpush.bf16.msra.mxu0 %v314
      %453 = vmatpush.bf16.msra.mxu0 %v306
      %454 = vmatmul.bf16.gmra.mxu0 %v366
      %v455 = vpop.f32.mrf.mxu0
      %v456 = vadd.f32 %v194, %v455
      %v457 = vpop.f32.mrf.mxu0
      %458 = vdwg.mxu0
      %459 = vmatpush.bf16.msra.mxu0 0
      %460 = vmatpush.bf16.msra.mxu0 0
      %461 = vmatpush.bf16.msra.mxu0 0
      %462 = vmatpush.bf16.msra.mxu0 0
      %463 = vmatpush.bf16.msra.mxu0 %v331
      %464 = vmatpush.bf16.msra.mxu0 %v323
      %465 = vmatpush.bf16.msra.mxu0 %v315
      %466 = vmatpush.bf16.msra.mxu0 %v307
      %467 = vmatmul.bf16.gmra.mxu0 %v366
      %v468 = vpop.f32.mrf.mxu0
      %v469 = vadd.f32 %v195, %v468
      %v470 = vpop.f32.mrf.mxu0
      %471 = vdwg.mxu0
      %v472 = vmax.f32 %v378, 0.0
      %v473 = vmax.f32 %v391, 0.0
      %v474 = vmax.f32 %v404, 0.0
      %v475 = vmax.f32 %v417, 0.0
      %v476 = vmax.f32 %v430, 0.0
      %v477 = vmax.f32 %v443, 0.0
      %v478 = vmax.f32 %v456, 0.0
      %v479 = vmax.f32 %v469, 0.0
      %v480 = vld [vmem:[#allocation9] sm:$0xff]
      %v481 = vld [vmem:[#allocation9 + $0x8] sm:$0xff]
      %v482 = vld [vmem:[#allocation9 + $0x10] sm:$0xff]
      %v483 = vld [vmem:[#allocation9 + $0x18] sm:$0xff]
      %v484 = vld [vmem:[#allocation9 + $0x20] sm:$0xff]
      %v485 = vld [vmem:[#allocation9 + $0x28] sm:$0xff]
      %v486 = vld [vmem:[#allocation9 + $0x30] sm:$0xff]
      %v487 = vld [vmem:[#allocation9 + $0x38] sm:$0xff]
      %v488 = vld [vmem:[#allocation9 + $0x40] sm:$0xff]
      %v489 = vld [vmem:[#allocation9 + $0x48] sm:$0xff]
      %v490 = vld [vmem:[#allocation9 + $0x50] sm:$0xff]
      %v491 = vld [vmem:[#allocation9 + $0x58] sm:$0xff]
      %v492 = vld [vmem:[#allocation9 + $0x60] sm:$0xff]
      %v493 = vld [vmem:[#allocation9 + $0x68] sm:$0xff]
      %v494 = vld [vmem:[#allocation9 + $0x70] sm:$0xff]
      %v495 = vld [vmem:[#allocation9 + $0x78] sm:$0xff]
      %v496 = vld [vmem:[#allocation9 + $0x80] sm:$0xff]
      %v497 = vld [vmem:[#allocation9 + $0x88] sm:$0xff]
      %v498 = vld [vmem:[#allocation9 + $0x90] sm:$0xff]
      %v499 = vld [vmem:[#allocation9 + $0x98] sm:$0xff]
      %v500 = vld [vmem:[#allocation9 + $0xa0] sm:$0xff]
      %v501 = vld [vmem:[#allocation9 + $0xa8] sm:$0xff]
      %v502 = vld [vmem:[#allocation9 + $0xb0] sm:$0xff]
      %v503 = vld [vmem:[#allocation9 + $0xb8] sm:$0xff]
      %v504 = vld [vmem:[#allocation9 + $0xc0] sm:$0xff]
      %v505 = vld [vmem:[#allocation9 + $0xc8] sm:$0xff]
      %v506 = vld [vmem:[#allocation9 + $0xd0] sm:$0xff]
      %v507 = vld [vmem:[#allocation9 + $0xd8] sm:$0xff]
      %v508 = vld [vmem:[#allocation9 + $0xe0] sm:$0xff]
      %v509 = vld [vmem:[#allocation9 + $0xe8] sm:$0xff]
      %v510 = vld [vmem:[#allocation9 + $0xf0] sm:$0xff]
      %v511 = vld [vmem:[#allocation9 + $0xf8] sm:$0xff]
      %v512 = vld [vmem:[#allocation9 + $0x100] sm:$0xff]
      %v513 = vld [vmem:[#allocation9 + $0x108] sm:$0xff]
      %v514 = vld [vmem:[#allocation9 + $0x110] sm:$0xff]
      %v515 = vld [vmem:[#allocation9 + $0x118] sm:$0xff]
      %v516 = vld [vmem:[#allocation9 + $0x120] sm:$0xff]
      %v517 = vld [vmem:[#allocation9 + $0x128] sm:$0xff]
      %v518 = vld [vmem:[#allocation9 + $0x130] sm:$0xff]
      %v519 = vld [vmem:[#allocation9 + $0x138] sm:$0xff]
      %v520 = vld [vmem:[#allocation9 + $0x140] sm:$0xff]
      %v521 = vld [vmem:[#allocation9 + $0x148] sm:$0xff]
      %v522 = vld [vmem:[#allocation9 + $0x150] sm:$0xff]
      %v523 = vld [vmem:[#allocation9 + $0x158] sm:$0xff]
      %v524 = vld [vmem:[#allocation9 + $0x160] sm:$0xff]
      %v525 = vld [vmem:[#allocation9 + $0x168] sm:$0xff]
      %v526 = vld [vmem:[#allocation9 + $0x170] sm:$0xff]
      %v527 = vld [vmem:[#allocation9 + $0x178] sm:$0xff]
      %v528 = vld [vmem:[#allocation9 + $0x180] sm:$0xff]
      %v529 = vld [vmem:[#allocation9 + $0x188] sm:$0xff]
      %v530 = vld [vmem:[#allocation9 + $0x190] sm:$0xff]
      %v531 = vld [vmem:[#allocation9 + $0x198] sm:$0xff]
      %v532 = vld [vmem:[#allocation9 + $0x1a0] sm:$0xff]
      %v533 = vld [vmem:[#allocation9 + $0x1a8] sm:$0xff]
      %v534 = vld [vmem:[#allocation9 + $0x1b0] sm:$0xff]
      %v535 = vld [vmem:[#allocation9 + $0x1b8] sm:$0xff]
      %v536 = vld [vmem:[#allocation9 + $0x1c0] sm:$0xff]
      %v537 = vld [vmem:[#allocation9 + $0x1c8] sm:$0xff]
      %v538 = vld [vmem:[#allocation9 + $0x1d0] sm:$0xff]
      %v539 = vld [vmem:[#allocation9 + $0x1d8] sm:$0xff]
      %v540 = vld [vmem:[#allocation9 + $0x1e0] sm:$0xff]
      %v541 = vld [vmem:[#allocation9 + $0x1e8] sm:$0xff]
      %v542 = vld [vmem:[#allocation9 + $0x1f0] sm:$0xff]
      %v543 = vld [vmem:[#allocation9 + $0x1f8] sm:$0xff]
      %v544 = vld [vmem:[#allocation9 + $0x200] sm:$0xff]
      %v545 = vld [vmem:[#allocation9 + $0x208] sm:$0xff]
      %v546 = vld [vmem:[#allocation9 + $0x210] sm:$0xff]
      %v547 = vld [vmem:[#allocation9 + $0x218] sm:$0xff]
      %v548 = vld [vmem:[#allocation9 + $0x220] sm:$0xff]
      %v549 = vld [vmem:[#allocation9 + $0x228] sm:$0xff]
      %v550 = vld [vmem:[#allocation9 + $0x230] sm:$0xff]
      %v551 = vld [vmem:[#allocation9 + $0x238] sm:$0xff]
      %v552 = vld [vmem:[#allocation9 + $0x240] sm:$0xff]
      %v553 = vld [vmem:[#allocation9 + $0x248] sm:$0xff]
      %v554 = vld [vmem:[#allocation9 + $0x250] sm:$0xff]
      %v555 = vld [vmem:[#allocation9 + $0x258] sm:$0xff]
      %v556 = vld [vmem:[#allocation9 + $0x260] sm:$0xff]
      %v557 = vld [vmem:[#allocation9 + $0x268] sm:$0xff]
      %v558 = vld [vmem:[#allocation9 + $0x270] sm:$0xff]
      %v559 = vld [vmem:[#allocation9 + $0x278] sm:$0xff]
      %v560 = vld [vmem:[#allocation9 + $0x280] sm:$0xff]
      %v561 = vld [vmem:[#allocation9 + $0x288] sm:$0xff]
      %v562 = vld [vmem:[#allocation9 + $0x290] sm:$0xff]
      %v563 = vld [vmem:[#allocation9 + $0x298] sm:$0xff]
      %v564 = vld [vmem:[#allocation9 + $0x2a0] sm:$0xff]
      %v565 = vld [vmem:[#allocation9 + $0x2a8] sm:$0xff]
      %v566 = vld [vmem:[#allocation9 + $0x2b0] sm:$0xff]
      %v567 = vld [vmem:[#allocation9 + $0x2b8] sm:$0xff]
      %v568 = vld [vmem:[#allocation9 + $0x2c0] sm:$0xff]
      %v569 = vld [vmem:[#allocation9 + $0x2c8] sm:$0xff]
      %v570 = vld [vmem:[#allocation9 + $0x2d0] sm:$0xff]
      %v571 = vld [vmem:[#allocation9 + $0x2d8] sm:$0xff]
      %v572 = vld [vmem:[#allocation9 + $0x2e0] sm:$0xff]
      %v573 = vld [vmem:[#allocation9 + $0x2e8] sm:$0xff]
      %v574 = vld [vmem:[#allocation9 + $0x2f0] sm:$0xff]
      %v575 = vld [vmem:[#allocation9 + $0x2f8] sm:$0xff]
      %v576 = vld [vmem:[#allocation9 + $0x300] sm:$0xff]
      %v577 = vld [vmem:[#allocation9 + $0x308] sm:$0xff]
      %v578 = vld [vmem:[#allocation9 + $0x310] sm:$0xff]
      %v579 = vld [vmem:[#allocation9 + $0x318] sm:$0xff]
      %v580 = vld [vmem:[#allocation9 + $0x320] sm:$0xff]
      %v581 = vld [vmem:[#allocation9 + $0x328] sm:$0xff]
      %v582 = vld [vmem:[#allocation9 + $0x330] sm:$0xff]
      %v583 = vld [vmem:[#allocation9 + $0x338] sm:$0xff]
      %v584 = vld [vmem:[#allocation9 + $0x340] sm:$0xff]
      %v585 = vld [vmem:[#allocation9 + $0x348] sm:$0xff]
      %v586 = vld [vmem:[#allocation9 + $0x350] sm:$0xff]
      %v587 = vld [vmem:[#allocation9 + $0x358] sm:$0xff]
      %v588 = vld [vmem:[#allocation9 + $0x360] sm:$0xff]
      %v589 = vld [vmem:[#allocation9 + $0x368] sm:$0xff]
      %v590 = vld [vmem:[#allocation9 + $0x370] sm:$0xff]
      %v591 = vld [vmem:[#allocation9 + $0x378] sm:$0xff]
      %v592 = vld [vmem:[#allocation9 + $0x380] sm:$0xff]
      %v593 = vld [vmem:[#allocation9 + $0x388] sm:$0xff]
      %v594 = vld [vmem:[#allocation9 + $0x390] sm:$0xff]
      %v595 = vld [vmem:[#allocation9 + $0x398] sm:$0xff]
      %v596 = vld [vmem:[#allocation9 + $0x3a0] sm:$0xff]
      %v597 = vld [vmem:[#allocation9 + $0x3a8] sm:$0xff]
      %v598 = vld [vmem:[#allocation9 + $0x3b0] sm:$0xff]
      %v599 = vld [vmem:[#allocation9 + $0x3b8] sm:$0xff]
      %v600 = vld [vmem:[#allocation9 + $0x3c0] sm:$0xff]
      %v601 = vld [vmem:[#allocation9 + $0x3c8] sm:$0xff]
      %v602 = vld [vmem:[#allocation9 + $0x3d0] sm:$0xff]
      %v603 = vld [vmem:[#allocation9 + $0x3d8] sm:$0xff]
      %v604 = vld [vmem:[#allocation9 + $0x3e0] sm:$0xff]
      %v605 = vld [vmem:[#allocation9 + $0x3e8] sm:$0xff]
      %v606 = vld [vmem:[#allocation9 + $0x3f0] sm:$0xff]
      %v607 = vld [vmem:[#allocation9 + $0x3f8] sm:$0xff]
      %v608 = vunpack.c.0.s8 %v480
      %v609 = vunpack.c.0.s8 %v481
      %v610 = vunpack.c.0.s8 %v482
      %v611 = vunpack.c.0.s8 %v483
      %v612 = vunpack.c.1.s8 %v480
      %v613 = vunpack.c.1.s8 %v481
      %v614 = vunpack.c.1.s8 %v482
      %v615 = vunpack.c.1.s8 %v483
      %v616 = vunpack.c.2.s8 %v480
      %v617 = vunpack.c.2.s8 %v481
      %v618 = vunpack.c.2.s8 %v482
      %v619 = vunpack.c.2.s8 %v483
      %v620 = vunpack.c.3.s8 %v480
      %v621 = vunpack.c.3.s8 %v481
      %v622 = vunpack.c.3.s8 %v482
      %v623 = vunpack.c.3.s8 %v483
      %v624 = vunpack.c.0.s8 %v484
      %v625 = vunpack.c.0.s8 %v485
      %v626 = vunpack.c.0.s8 %v486
      %v627 = vunpack.c.0.s8 %v487
      %v628 = vunpack.c.1.s8 %v484
      %v629 = vunpack.c.1.s8 %v485
      %v630 = vunpack.c.1.s8 %v486
      %v631 = vunpack.c.1.s8 %v487
      %v632 = vunpack.c.2.s8 %v484
      %v633 = vunpack.c.2.s8 %v485
      %v634 = vunpack.c.2.s8 %v486
      %v635 = vunpack.c.2.s8 %v487
      %v636 = vunpack.c.3.s8 %v484
      %v637 = vunpack.c.3.s8 %v485
      %v638 = vunpack.c.3.s8 %v486
      %v639 = vunpack.c.3.s8 %v487
      %v640 = vunpack.c.0.s8 %v488
      %v641 = vunpack.c.0.s8 %v489
      %v642 = vunpack.c.0.s8 %v490
      %v643 = vunpack.c.0.s8 %v491
      %v644 = vunpack.c.1.s8 %v488
      %v645 = vunpack.c.1.s8 %v489
      %v646 = vunpack.c.1.s8 %v490
      %v647 = vunpack.c.1.s8 %v491
      %v648 = vunpack.c.2.s8 %v488
      %v649 = vunpack.c.2.s8 %v489
      %v650 = vunpack.c.2.s8 %v490
      %v651 = vunpack.c.2.s8 %v491
      %v652 = vunpack.c.3.s8 %v488
      %v653 = vunpack.c.3.s8 %v489
      %v654 = vunpack.c.3.s8 %v490
      %v655 = vunpack.c.3.s8 %v491
      %v656 = vunpack.c.0.s8 %v492
      %v657 = vunpack.c.0.s8 %v493
      %v658 = vunpack.c.0.s8 %v494
      %v659 = vunpack.c.0.s8 %v495
      %v660 = vunpack.c.1.s8 %v492
      %v661 = vunpack.c.1.s8 %v493
      %v662 = vunpack.c.1.s8 %v494
      %v663 = vunpack.c.1.s8 %v495
      %v664 = vunpack.c.2.s8 %v492
      %v665 = vunpack.c.2.s8 %v493
      %v666 = vunpack.c.2.s8 %v494
      %v667 = vunpack.c.2.s8 %v495
      %v668 = vunpack.c.3.s8 %v492
      %v669 = vunpack.c.3.s8 %v493
      %v670 = vunpack.c.3.s8 %v494
      %v671 = vunpack.c.3.s8 %v495
      %v672 = vunpack.c.0.s8 %v496
      %v673 = vunpack.c.0.s8 %v497
      %v674 = vunpack.c.0.s8 %v498
      %v675 = vunpack.c.0.s8 %v499
      %v676 = vunpack.c.1.s8 %v496
      %v677 = vunpack.c.1.s8 %v497
      %v678 = vunpack.c.1.s8 %v498
      %v679 = vunpack.c.1.s8 %v499
      %v680 = vunpack.c.2.s8 %v496
      %v681 = vunpack.c.2.s8 %v497
      %v682 = vunpack.c.2.s8 %v498
      %v683 = vunpack.c.2.s8 %v499
      %v684 = vunpack.c.3.s8 %v496
      %v685 = vunpack.c.3.s8 %v497
      %v686 = vunpack.c.3.s8 %v498
      %v687 = vunpack.c.3.s8 %v499
      %v688 = vunpack.c.0.s8 %v500
      %v689 = vunpack.c.0.s8 %v501
      %v690 = vunpack.c.0.s8 %v502
      %v691 = vunpack.c.0.s8 %v503
      %v692 = vunpack.c.1.s8 %v500
      %v693 = vunpack.c.1.s8 %v501
      %v694 = vunpack.c.1.s8 %v502
      %v695 = vunpack.c.1.s8 %v503
      %v696 = vunpack.c.2.s8 %v500
      %v697 = vunpack.c.2.s8 %v501
      %v698 = vunpack.c.2.s8 %v502
      %v699 = vunpack.c.2.s8 %v503
      %v700 = vunpack.c.3.s8 %v500
      %v701 = vunpack.c.3.s8 %v501
      %v702 = vunpack.c.3.s8 %v502
      %v703 = vunpack.c.3.s8 %v503
      %v704 = vunpack.c.0.s8 %v504
      %v705 = vunpack.c.0.s8 %v505
      %v706 = vunpack.c.0.s8 %v506
      %v707 = vunpack.c.0.s8 %v507
      %v708 = vunpack.c.1.s8 %v504
      %v709 = vunpack.c.1.s8 %v505
      %v710 = vunpack.c.1.s8 %v506
      %v711 = vunpack.c.1.s8 %v507
      %v712 = vunpack.c.2.s8 %v504
      %v713 = vunpack.c.2.s8 %v505
      %v714 = vunpack.c.2.s8 %v506
      %v715 = vunpack.c.2.s8 %v507
      %v716 = vunpack.c.3.s8 %v504
      %v717 = vunpack.c.3.s8 %v505
      %v718 = vunpack.c.3.s8 %v506
      %v719 = vunpack.c.3.s8 %v507
      %v720 = vunpack.c.0.s8 %v508
      %v721 = vunpack.c.0.s8 %v509
      %v722 = vunpack.c.0.s8 %v510
      %v723 = vunpack.c.0.s8 %v511
      %v724 = vunpack.c.1.s8 %v508
      %v725 = vunpack.c.1.s8 %v509
      %v726 = vunpack.c.1.s8 %v510
      %v727 = vunpack.c.1.s8 %v511
      %v728 = vunpack.c.2.s8 %v508
      %v729 = vunpack.c.2.s8 %v509
      %v730 = vunpack.c.2.s8 %v510
      %v731 = vunpack.c.2.s8 %v511
      %v732 = vunpack.c.3.s8 %v508
      %v733 = vunpack.c.3.s8 %v509
      %v734 = vunpack.c.3.s8 %v510
      %v735 = vunpack.c.3.s8 %v511
      %v736 = vunpack.c.0.s8 %v512
      %v737 = vunpack.c.0.s8 %v513
      %v738 = vunpack.c.0.s8 %v514
      %v739 = vunpack.c.0.s8 %v515
      %v740 = vunpack.c.1.s8 %v512
      %v741 = vunpack.c.1.s8 %v513
      %v742 = vunpack.c.1.s8 %v514
      %v743 = vunpack.c.1.s8 %v515
      %v744 = vunpack.c.2.s8 %v512
      %v745 = vunpack.c.2.s8 %v513
      %v746 = vunpack.c.2.s8 %v514
      %v747 = vunpack.c.2.s8 %v515
      %v748 = vunpack.c.3.s8 %v512
      %v749 = vunpack.c.3.s8 %v513
      %v750 = vunpack.c.3.s8 %v514
      %v751 = vunpack.c.3.s8 %v515
      %v752 = vunpack.c.0.s8 %v516
      %v753 = vunpack.c.0.s8 %v517
      %v754 = vunpack.c.0.s8 %v518
      %v755 = vunpack.c.0.s8 %v519
      %v756 = vunpack.c.1.s8 %v516
      %v757 = vunpack.c.1.s8 %v517
      %v758 = vunpack.c.1.s8 %v518
      %v759 = vunpack.c.1.s8 %v519
      %v760 = vunpack.c.2.s8 %v516
      %v761 = vunpack.c.2.s8 %v517
      %v762 = vunpack.c.2.s8 %v518
      %v763 = vunpack.c.2.s8 %v519
      %v764 = vunpack.c.3.s8 %v516
      %v765 = vunpack.c.3.s8 %v517
      %v766 = vunpack.c.3.s8 %v518
      %v767 = vunpack.c.3.s8 %v519
      %v768 = vunpack.c.0.s8 %v520
      %v769 = vunpack.c.0.s8 %v521
      %v770 = vunpack.c.0.s8 %v522
      %v771 = vunpack.c.0.s8 %v523
      %v772 = vunpack.c.1.s8 %v520
      %v773 = vunpack.c.1.s8 %v521
      %v774 = vunpack.c.1.s8 %v522
      %v775 = vunpack.c.1.s8 %v523
      %v776 = vunpack.c.2.s8 %v520
      %v777 = vunpack.c.2.s8 %v521
      %v778 = vunpack.c.2.s8 %v522
      %v779 = vunpack.c.2.s8 %v523
      %v780 = vunpack.c.3.s8 %v520
      %v781 = vunpack.c.3.s8 %v521
      %v782 = vunpack.c.3.s8 %v522
      %v783 = vunpack.c.3.s8 %v523
      %v784 = vunpack.c.0.s8 %v524
      %v785 = vunpack.c.0.s8 %v525
      %v786 = vunpack.c.0.s8 %v526
      %v787 = vunpack.c.0.s8 %v527
      %v788 = vunpack.c.1.s8 %v524
      %v789 = vunpack.c.1.s8 %v525
      %v790 = vunpack.c.1.s8 %v526
      %v791 = vunpack.c.1.s8 %v527
      %v792 = vunpack.c.2.s8 %v524
      %v793 = vunpack.c.2.s8 %v525
      %v794 = vunpack.c.2.s8 %v526
      %v795 = vunpack.c.2.s8 %v527
      %v796 = vunpack.c.3.s8 %v524
      %v797 = vunpack.c.3.s8 %v525
      %v798 = vunpack.c.3.s8 %v526
      %v799 = vunpack.c.3.s8 %v527
      %v800 = vunpack.c.0.s8 %v528
      %v801 = vunpack.c.0.s8 %v529
      %v802 = vunpack.c.0.s8 %v530
      %v803 = vunpack.c.0.s8 %v531
      %v804 = vunpack.c.1.s8 %v528
      %v805 = vunpack.c.1.s8 %v529
      %v806 = vunpack.c.1.s8 %v530
      %v807 = vunpack.c.1.s8 %v531
      %v808 = vunpack.c.2.s8 %v528
      %v809 = vunpack.c.2.s8 %v529
      %v810 = vunpack.c.2.s8 %v530
      %v811 = vunpack.c.2.s8 %v531
      %v812 = vunpack.c.3.s8 %v528
      %v813 = vunpack.c.3.s8 %v529
      %v814 = vunpack.c.3.s8 %v530
      %v815 = vunpack.c.3.s8 %v531
      %v816 = vunpack.c.0.s8 %v532
      %v817 = vunpack.c.0.s8 %v533
      %v818 = vunpack.c.0.s8 %v534
      %v819 = vunpack.c.0.s8 %v535
      %v820 = vunpack.c.1.s8 %v532
      %v821 = vunpack.c.1.s8 %v533
      %v822 = vunpack.c.1.s8 %v534
      %v823 = vunpack.c.1.s8 %v535
      %v824 = vunpack.c.2.s8 %v532
      %v825 = vunpack.c.2.s8 %v533
      %v826 = vunpack.c.2.s8 %v534
      %v827 = vunpack.c.2.s8 %v535
      %v828 = vunpack.c.3.s8 %v532
      %v829 = vunpack.c.3.s8 %v533
      %v830 = vunpack.c.3.s8 %v534
      %v831 = vunpack.c.3.s8 %v535
      %v832 = vunpack.c.0.s8 %v536
      %v833 = vunpack.c.0.s8 %v537
      %v834 = vunpack.c.0.s8 %v538
      %v835 = vunpack.c.0.s8 %v539
      %v836 = vunpack.c.1.s8 %v536
      %v837 = vunpack.c.1.s8 %v537
      %v838 = vunpack.c.1.s8 %v538
      %v839 = vunpack.c.1.s8 %v539
      %v840 = vunpack.c.2.s8 %v536
      %v841 = vunpack.c.2.s8 %v537
      %v842 = vunpack.c.2.s8 %v538
      %v843 = vunpack.c.2.s8 %v539
      %v844 = vunpack.c.3.s8 %v536
      %v845 = vunpack.c.3.s8 %v537
      %v846 = vunpack.c.3.s8 %v538
      %v847 = vunpack.c.3.s8 %v539
      %v848 = vunpack.c.0.s8 %v540
      %v849 = vunpack.c.0.s8 %v541
      %v850 = vunpack.c.0.s8 %v542
      %v851 = vunpack.c.0.s8 %v543
      %v852 = vunpack.c.1.s8 %v540
      %v853 = vunpack.c.1.s8 %v541
      %v854 = vunpack.c.1.s8 %v542
      %v855 = vunpack.c.1.s8 %v543
      %v856 = vunpack.c.2.s8 %v540
      %v857 = vunpack.c.2.s8 %v541
      %v858 = vunpack.c.2.s8 %v542
      %v859 = vunpack.c.2.s8 %v543
      %v860 = vunpack.c.3.s8 %v540
      %v861 = vunpack.c.3.s8 %v541
      %v862 = vunpack.c.3.s8 %v542
      %v863 = vunpack.c.3.s8 %v543
      %v864 = vunpack.c.0.s8 %v544
      %v865 = vunpack.c.0.s8 %v545
      %v866 = vunpack.c.0.s8 %v546
      %v867 = vunpack.c.0.s8 %v547
      %v868 = vunpack.c.1.s8 %v544
      %v869 = vunpack.c.1.s8 %v545
      %v870 = vunpack.c.1.s8 %v546
      %v871 = vunpack.c.1.s8 %v547
      %v872 = vunpack.c.2.s8 %v544
      %v873 = vunpack.c.2.s8 %v545
      %v874 = vunpack.c.2.s8 %v546
      %v875 = vunpack.c.2.s8 %v547
      %v876 = vunpack.c.3.s8 %v544
      %v877 = vunpack.c.3.s8 %v545
      %v878 = vunpack.c.3.s8 %v546
      %v879 = vunpack.c.3.s8 %v547
      %v880 = vunpack.c.0.s8 %v548
      %v881 = vunpack.c.0.s8 %v549
      %v882 = vunpack.c.0.s8 %v550
      %v883 = vunpack.c.0.s8 %v551
      %v884 = vunpack.c.1.s8 %v548
      %v885 = vunpack.c.1.s8 %v549
      %v886 = vunpack.c.1.s8 %v550
      %v887 = vunpack.c.1.s8 %v551
      %v888 = vunpack.c.2.s8 %v548
      %v889 = vunpack.c.2.s8 %v549
      %v890 = vunpack.c.2.s8 %v550
      %v891 = vunpack.c.2.s8 %v551
      %v892 = vunpack.c.3.s8 %v548
      %v893 = vunpack.c.3.s8 %v549
      %v894 = vunpack.c.3.s8 %v550
      %v895 = vunpack.c.3.s8 %v551
      %v896 = vunpack.c.0.s8 %v552
      %v897 = vunpack.c.0.s8 %v553
      %v898 = vunpack.c.0.s8 %v554
      %v899 = vunpack.c.0.s8 %v555
      %v900 = vunpack.c.1.s8 %v552
      %v901 = vunpack.c.1.s8 %v553
      %v902 = vunpack.c.1.s8 %v554
      %v903 = vunpack.c.1.s8 %v555
      %v904 = vunpack.c.2.s8 %v552
      %v905 = vunpack.c.2.s8 %v553
      %v906 = vunpack.c.2.s8 %v554
      %v907 = vunpack.c.2.s8 %v555
      %v908 = vunpack.c.3.s8 %v552
      %v909 = vunpack.c.3.s8 %v553
      %v910 = vunpack.c.3.s8 %v554
      %v911 = vunpack.c.3.s8 %v555
      %v912 = vunpack.c.0.s8 %v556
      %v913 = vunpack.c.0.s8 %v557
      %v914 = vunpack.c.0.s8 %v558
      %v915 = vunpack.c.0.s8 %v559
      %v916 = vunpack.c.1.s8 %v556
      %v917 = vunpack.c.1.s8 %v557
      %v918 = vunpack.c.1.s8 %v558
      %v919 = vunpack.c.1.s8 %v559
      %v920 = vunpack.c.2.s8 %v556
      %v921 = vunpack.c.2.s8 %v557
      %v922 = vunpack.c.2.s8 %v558
      %v923 = vunpack.c.2.s8 %v559
      %v924 = vunpack.c.3.s8 %v556
      %v925 = vunpack.c.3.s8 %v557
      %v926 = vunpack.c.3.s8 %v558
      %v927 = vunpack.c.3.s8 %v559
      %v928 = vunpack.c.0.s8 %v560
      %v929 = vunpack.c.0.s8 %v561
      %v930 = vunpack.c.0.s8 %v562
      %v931 = vunpack.c.0.s8 %v563
      %v932 = vunpack.c.1.s8 %v560
      %v933 = vunpack.c.1.s8 %v561
      %v934 = vunpack.c.1.s8 %v562
      %v935 = vunpack.c.1.s8 %v563
      %v936 = vunpack.c.2.s8 %v560
      %v937 = vunpack.c.2.s8 %v561
      %v938 = vunpack.c.2.s8 %v562
      %v939 = vunpack.c.2.s8 %v563
      %v940 = vunpack.c.3.s8 %v560
      %v941 = vunpack.c.3.s8 %v561
      %v942 = vunpack.c.3.s8 %v562
      %v943 = vunpack.c.3.s8 %v563
      %v944 = vunpack.c.0.s8 %v564
      %v945 = vunpack.c.0.s8 %v565
      %v946 = vunpack.c.0.s8 %v566
      %v947 = vunpack.c.0.s8 %v567
      %v948 = vunpack.c.1.s8 %v564
      %v949 = vunpack.c.1.s8 %v565
      %v950 = vunpack.c.1.s8 %v566
      %v951 = vunpack.c.1.s8 %v567
      %v952 = vunpack.c.2.s8 %v564
      %v953 = vunpack.c.2.s8 %v565
      %v954 = vunpack.c.2.s8 %v566
      %v955 = vunpack.c.2.s8 %v567
      %v956 = vunpack.c.3.s8 %v564
      %v957 = vunpack.c.3.s8 %v565
      %v958 = vunpack.c.3.s8 %v566
      %v959 = vunpack.c.3.s8 %v567
      %v960 = vunpack.c.0.s8 %v568
      %v961 = vunpack.c.0.s8 %v569
      %v962 = vunpack.c.0.s8 %v570
      %v963 = vunpack.c.0.s8 %v571
      %v964 = vunpack.c.1.s8 %v568
      %v965 = vunpack.c.1.s8 %v569
      %v966 = vunpack.c.1.s8 %v570
      %v967 = vunpack.c.1.s8 %v571
      %v968 = vunpack.c.2.s8 %v568
      %v969 = vunpack.c.2.s8 %v569
      %v970 = vunpack.c.2.s8 %v570
      %v971 = vunpack.c.2.s8 %v571
      %v972 = vunpack.c.3.s8 %v568
      %v973 = vunpack.c.3.s8 %v569
      %v974 = vunpack.c.3.s8 %v570
      %v975 = vunpack.c.3.s8 %v571
      %v976 = vunpack.c.0.s8 %v572
      %v977 = vunpack.c.0.s8 %v573
      %v978 = vunpack.c.0.s8 %v574
      %v979 = vunpack.c.0.s8 %v575
      %v980 = vunpack.c.1.s8 %v572
      %v981 = vunpack.c.1.s8 %v573
      %v982 = vunpack.c.1.s8 %v574
      %v983 = vunpack.c.1.s8 %v575
      %v984 = vunpack.c.2.s8 %v572
      %v985 = vunpack.c.2.s8 %v573
      %v986 = vunpack.c.2.s8 %v574
      %v987 = vunpack.c.2.s8 %v575
      %v988 = vunpack.c.3.s8 %v572
      %v989 = vunpack.c.3.s8 %v573
      %v990 = vunpack.c.3.s8 %v574
      %v991 = vunpack.c.3.s8 %v575
      %v992 = vunpack.c.0.s8 %v576
      %v993 = vunpack.c.0.s8 %v577
      %v994 = vunpack.c.0.s8 %v578
      %v995 = vunpack.c.0.s8 %v579
      %v996 = vunpack.c.1.s8 %v576
      %v997 = vunpack.c.1.s8 %v577
      %v998 = vunpack.c.1.s8 %v578
      %v999 = vunpack.c.1.s8 %v579
      %v1000 = vunpack.c.2.s8 %v576
      %v1001 = vunpack.c.2.s8 %v577
      %v1002 = vunpack.c.2.s8 %v578
      %v1003 = vunpack.c.2.s8 %v579
      %v1004 = vunpack.c.3.s8 %v576
      %v1005 = vunpack.c.3.s8 %v577
      %v1006 = vunpack.c.3.s8 %v578
      %v1007 = vunpack.c.3.s8 %v579
      %v1008 = vunpack.c.0.s8 %v580
      %v1009 = vunpack.c.0.s8 %v581
      %v1010 = vunpack.c.0.s8 %v582
      %v1011 = vunpack.c.0.s8 %v583
      %v1012 = vunpack.c.1.s8 %v580
      %v1013 = vunpack.c.1.s8 %v581
      %v1014 = vunpack.c.1.s8 %v582
      %v1015 = vunpack.c.1.s8 %v583
      %v1016 = vunpack.c.2.s8 %v580
      %v1017 = vunpack.c.2.s8 %v581
      %v1018 = vunpack.c.2.s8 %v582
      %v1019 = vunpack.c.2.s8 %v583
      %v1020 = vunpack.c.3.s8 %v580
      %v1021 = vunpack.c.3.s8 %v581
      %v1022 = vunpack.c.3.s8 %v582
      %v1023 = vunpack.c.3.s8 %v583
      %v1024 = vunpack.c.0.s8 %v584
      %v1025 = vunpack.c.0.s8 %v585
      %v1026 = vunpack.c.0.s8 %v586
      %v1027 = vunpack.c.0.s8 %v587
      %v1028 = vunpack.c.1.s8 %v584
      %v1029 = vunpack.c.1.s8 %v585
      %v1030 = vunpack.c.1.s8 %v586
      %v1031 = vunpack.c.1.s8 %v587
      %v1032 = vunpack.c.2.s8 %v584
      %v1033 = vunpack.c.2.s8 %v585
      %v1034 = vunpack.c.2.s8 %v586
      %v1035 = vunpack.c.2.s8 %v587
      %v1036 = vunpack.c.3.s8 %v584
      %v1037 = vunpack.c.3.s8 %v585
      %v1038 = vunpack.c.3.s8 %v586
      %v1039 = vunpack.c.3.s8 %v587
      %v1040 = vunpack.c.0.s8 %v588
      %v1041 = vunpack.c.0.s8 %v589
      %v1042 = vunpack.c.0.s8 %v590
      %v1043 = vunpack.c.0.s8 %v591
      %v1044 = vunpack.c.1.s8 %v588
      %v1045 = vunpack.c.1.s8 %v589
      %v1046 = vunpack.c.1.s8 %v590
      %v1047 = vunpack.c.1.s8 %v591
      %v1048 = vunpack.c.2.s8 %v588
      %v1049 = vunpack.c.2.s8 %v589
      %v1050 = vunpack.c.2.s8 %v590
      %v1051 = vunpack.c.2.s8 %v591
      %v1052 = vunpack.c.3.s8 %v588
      %v1053 = vunpack.c.3.s8 %v589
      %v1054 = vunpack.c.3.s8 %v590
      %v1055 = vunpack.c.3.s8 %v591
      %v1056 = vunpack.c.0.s8 %v592
      %v1057 = vunpack.c.0.s8 %v593
      %v1058 = vunpack.c.0.s8 %v594
      %v1059 = vunpack.c.0.s8 %v595
      %v1060 = vunpack.c.1.s8 %v592
      %v1061 = vunpack.c.1.s8 %v593
      %v1062 = vunpack.c.1.s8 %v594
      %v1063 = vunpack.c.1.s8 %v595
      %v1064 = vunpack.c.2.s8 %v592
      %v1065 = vunpack.c.2.s8 %v593
      %v1066 = vunpack.c.2.s8 %v594
      %v1067 = vunpack.c.2.s8 %v595
      %v1068 = vunpack.c.3.s8 %v592
      %v1069 = vunpack.c.3.s8 %v593
      %v1070 = vunpack.c.3.s8 %v594
      %v1071 = vunpack.c.3.s8 %v595
      %v1072 = vunpack.c.0.s8 %v596
      %v1073 = vunpack.c.0.s8 %v597
      %v1074 = vunpack.c.0.s8 %v598
      %v1075 = vunpack.c.0.s8 %v599
      %v1076 = vunpack.c.1.s8 %v596
      %v1077 = vunpack.c.1.s8 %v597
      %v1078 = vunpack.c.1.s8 %v598
      %v1079 = vunpack.c.1.s8 %v599
      %v1080 = vunpack.c.2.s8 %v596
      %v1081 = vunpack.c.2.s8 %v597
      %v1082 = vunpack.c.2.s8 %v598
      %v1083 = vunpack.c.2.s8 %v599
      %v1084 = vunpack.c.3.s8 %v596
      %v1085 = vunpack.c.3.s8 %v597
      %v1086 = vunpack.c.3.s8 %v598
      %v1087 = vunpack.c.3.s8 %v599
      %v1088 = vunpack.c.0.s8 %v600
      %v1089 = vunpack.c.0.s8 %v601
      %v1090 = vunpack.c.0.s8 %v602
      %v1091 = vunpack.c.0.s8 %v603
      %v1092 = vunpack.c.1.s8 %v600
      %v1093 = vunpack.c.1.s8 %v601
      %v1094 = vunpack.c.1.s8 %v602
      %v1095 = vunpack.c.1.s8 %v603
      %v1096 = vunpack.c.2.s8 %v600
      %v1097 = vunpack.c.2.s8 %v601
      %v1098 = vunpack.c.2.s8 %v602
      %v1099 = vunpack.c.2.s8 %v603
      %v1100 = vunpack.c.3.s8 %v600
      %v1101 = vunpack.c.3.s8 %v601
      %v1102 = vunpack.c.3.s8 %v602
      %v1103 = vunpack.c.3.s8 %v603
      %v1104 = vunpack.c.0.s8 %v604
      %v1105 = vunpack.c.0.s8 %v605
      %v1106 = vunpack.c.0.s8 %v606
      %v1107 = vunpack.c.0.s8 %v607
      %v1108 = vunpack.c.1.s8 %v604
      %v1109 = vunpack.c.1.s8 %v605
      %v1110 = vunpack.c.1.s8 %v606
      %v1111 = vunpack.c.1.s8 %v607
      %v1112 = vunpack.c.2.s8 %v604
      %v1113 = vunpack.c.2.s8 %v605
      %v1114 = vunpack.c.2.s8 %v606
      %v1115 = vunpack.c.2.s8 %v607
      %v1116 = vunpack.c.3.s8 %v604
      %v1117 = vunpack.c.3.s8 %v605
      %v1118 = vunpack.c.3.s8 %v606
      %v1119 = vunpack.c.3.s8 %v607
      %v1120 = vcvt.s32.f32 %v608
      %v1121 = vcvt.s32.f32 %v609
      %v1122 = vcvt.s32.f32 %v610
      %v1123 = vcvt.s32.f32 %v611
      %v1124 = vcvt.s32.f32 %v612
      %v1125 = vcvt.s32.f32 %v613
      %v1126 = vcvt.s32.f32 %v614
      %v1127 = vcvt.s32.f32 %v615
      %v1128 = vcvt.s32.f32 %v616
      %v1129 = vcvt.s32.f32 %v617
      %v1130 = vcvt.s32.f32 %v618
      %v1131 = vcvt.s32.f32 %v619
      %v1132 = vcvt.s32.f32 %v620
      %v1133 = vcvt.s32.f32 %v621
      %v1134 = vcvt.s32.f32 %v622
      %v1135 = vcvt.s32.f32 %v623
      %v1136 = vcvt.s32.f32 %v624
      %v1137 = vcvt.s32.f32 %v625
      %v1138 = vcvt.s32.f32 %v626
      %v1139 = vcvt.s32.f32 %v627
      %v1140 = vcvt.s32.f32 %v628
      %v1141 = vcvt.s32.f32 %v629
      %v1142 = vcvt.s32.f32 %v630
      %v1143 = vcvt.s32.f32 %v631
      %v1144 = vcvt.s32.f32 %v632
      %v1145 = vcvt.s32.f32 %v633
      %v1146 = vcvt.s32.f32 %v634
      %v1147 = vcvt.s32.f32 %v635
      %v1148 = vcvt.s32.f32 %v636
      %v1149 = vcvt.s32.f32 %v637
      %v1150 = vcvt.s32.f32 %v638
      %v1151 = vcvt.s32.f32 %v639
      %v1152 = vcvt.s32.f32 %v640
      %v1153 = vcvt.s32.f32 %v641
      %v1154 = vcvt.s32.f32 %v642
      %v1155 = vcvt.s32.f32 %v643
      %v1156 = vcvt.s32.f32 %v644
      %v1157 = vcvt.s32.f32 %v645
      %v1158 = vcvt.s32.f32 %v646
      %v1159 = vcvt.s32.f32 %v647
      %v1160 = vcvt.s32.f32 %v648
      %v1161 = vcvt.s32.f32 %v649
      %v1162 = vcvt.s32.f32 %v650
      %v1163 = vcvt.s32.f32 %v651
      %v1164 = vcvt.s32.f32 %v652
      %v1165 = vcvt.s32.f32 %v653
      %v1166 = vcvt.s32.f32 %v654
      %v1167 = vcvt.s32.f32 %v655
      %v1168 = vcvt.s32.f32 %v656
      %v1169 = vcvt.s32.f32 %v657
      %v1170 = vcvt.s32.f32 %v658
      %v1171 = vcvt.s32.f32 %v659
      %v1172 = vcvt.s32.f32 %v660
      %v1173 = vcvt.s32.f32 %v661
      %v1174 = vcvt.s32.f32 %v662
      %v1175 = vcvt.s32.f32 %v663
      %v1176 = vcvt.s32.f32 %v664
      %v1177 = vcvt.s32.f32 %v665
      %v1178 = vcvt.s32.f32 %v666
      %v1179 = vcvt.s32.f32 %v667
      %v1180 = vcvt.s32.f32 %v668
      %v1181 = vcvt.s32.f32 %v669
      %v1182 = vcvt.s32.f32 %v670
      %v1183 = vcvt.s32.f32 %v671
      %v1184 = vcvt.s32.f32 %v672
      %v1185 = vcvt.s32.f32 %v673
      %v1186 = vcvt.s32.f32 %v674
      %v1187 = vcvt.s32.f32 %v675
      %v1188 = vcvt.s32.f32 %v676
      %v1189 = vcvt.s32.f32 %v677
      %v1190 = vcvt.s32.f32 %v678
      %v1191 = vcvt.s32.f32 %v679
      %v1192 = vcvt.s32.f32 %v680
      %v1193 = vcvt.s32.f32 %v681
      %v1194 = vcvt.s32.f32 %v682
      %v1195 = vcvt.s32.f32 %v683
      %v1196 = vcvt.s32.f32 %v684
      %v1197 = vcvt.s32.f32 %v685
      %v1198 = vcvt.s32.f32 %v686
      %v1199 = vcvt.s32.f32 %v687
      %v1200 = vcvt.s32.f32 %v688
      %v1201 = vcvt.s32.f32 %v689
      %v1202 = vcvt.s32.f32 %v690
      %v1203 = vcvt.s32.f32 %v691
      %v1204 = vcvt.s32.f32 %v692
      %v1205 = vcvt.s32.f32 %v693
      %v1206 = vcvt.s32.f32 %v694
      %v1207 = vcvt.s32.f32 %v695
      %v1208 = vcvt.s32.f32 %v696
      %v1209 = vcvt.s32.f32 %v697
      %v1210 = vcvt.s32.f32 %v698
      %v1211 = vcvt.s32.f32 %v699
      %v1212 = vcvt.s32.f32 %v700
      %v1213 = vcvt.s32.f32 %v701
      %v1214 = vcvt.s32.f32 %v702
      %v1215 = vcvt.s32.f32 %v703
      %v1216 = vcvt.s32.f32 %v704
      %v1217 = vcvt.s32.f32 %v705
      %v1218 = vcvt.s32.f32 %v706
      %v1219 = vcvt.s32.f32 %v707
      %v1220 = vcvt.s32.f32 %v708
      %v1221 = vcvt.s32.f32 %v709
      %v1222 = vcvt.s32.f32 %v710
      %v1223 = vcvt.s32.f32 %v711
      %v1224 = vcvt.s32.f32 %v712
      %v1225 = vcvt.s32.f32 %v713
      %v1226 = vcvt.s32.f32 %v714
      %v1227 = vcvt.s32.f32 %v715
      %v1228 = vcvt.s32.f32 %v716
      %v1229 = vcvt.s32.f32 %v717
      %v1230 = vcvt.s32.f32 %v718
      %v1231 = vcvt.s32.f32 %v719
      %v1232 = vcvt.s32.f32 %v720
      %v1233 = vcvt.s32.f32 %v721
      %v1234 = vcvt.s32.f32 %v722
      %v1235 = vcvt.s32.f32 %v723
      %v1236 = vcvt.s32.f32 %v724
      %v1237 = vcvt.s32.f32 %v725
      %v1238 = vcvt.s32.f32 %v726
      %v1239 = vcvt.s32.f32 %v727
      %v1240 = vcvt.s32.f32 %v728
      %v1241 = vcvt.s32.f32 %v729
      %v1242 = vcvt.s32.f32 %v730
      %v1243 = vcvt.s32.f32 %v731
      %v1244 = vcvt.s32.f32 %v732
      %v1245 = vcvt.s32.f32 %v733
      %v1246 = vcvt.s32.f32 %v734
      %v1247 = vcvt.s32.f32 %v735
      %v1248 = vcvt.s32.f32 %v736
      %v1249 = vcvt.s32.f32 %v737
      %v1250 = vcvt.s32.f32 %v738
      %v1251 = vcvt.s32.f32 %v739
      %v1252 = vcvt.s32.f32 %v740
      %v1253 = vcvt.s32.f32 %v741
      %v1254 = vcvt.s32.f32 %v742
      %v1255 = vcvt.s32.f32 %v743
      %v1256 = vcvt.s32.f32 %v744
      %v1257 = vcvt.s32.f32 %v745
      %v1258 = vcvt.s32.f32 %v746
      %v1259 = vcvt.s32.f32 %v747
      %v1260 = vcvt.s32.f32 %v748
      %v1261 = vcvt.s32.f32 %v749
      %v1262 = vcvt.s32.f32 %v750
      %v1263 = vcvt.s32.f32 %v751
      %v1264 = vcvt.s32.f32 %v752
      %v1265 = vcvt.s32.f32 %v753
      %v1266 = vcvt.s32.f32 %v754
      %v1267 = vcvt.s32.f32 %v755
      %v1268 = vcvt.s32.f32 %v756
      %v1269 = vcvt.s32.f32 %v757
      %v1270 = vcvt.s32.f32 %v758
      %v1271 = vcvt.s32.f32 %v759
      %v1272 = vcvt.s32.f32 %v760
      %v1273 = vcvt.s32.f32 %v761
      %v1274 = vcvt.s32.f32 %v762
      %v1275 = vcvt.s32.f32 %v763
      %v1276 = vcvt.s32.f32 %v764
      %v1277 = vcvt.s32.f32 %v765
      %v1278 = vcvt.s32.f32 %v766
      %v1279 = vcvt.s32.f32 %v767
      %v1280 = vcvt.s32.f32 %v768
      %v1281 = vcvt.s32.f32 %v769
      %v1282 = vcvt.s32.f32 %v770
      %v1283 = vcvt.s32.f32 %v771
      %v1284 = vcvt.s32.f32 %v772
      %v1285 = vcvt.s32.f32 %v773
      %v1286 = vcvt.s32.f32 %v774
      %v1287 = vcvt.s32.f32 %v775
      %v1288 = vcvt.s32.f32 %v776
      %v1289 = vcvt.s32.f32 %v777
      %v1290 = vcvt.s32.f32 %v778
      %v1291 = vcvt.s32.f32 %v779
      %v1292 = vcvt.s32.f32 %v780
      %v1293 = vcvt.s32.f32 %v781
      %v1294 = vcvt.s32.f32 %v782
      %v1295 = vcvt.s32.f32 %v783
      %v1296 = vcvt.s32.f32 %v784
      %v1297 = vcvt.s32.f32 %v785
      %v1298 = vcvt.s32.f32 %v786
      %v1299 = vcvt.s32.f32 %v787
      %v1300 = vcvt.s32.f32 %v788
      %v1301 = vcvt.s32.f32 %v789
      %v1302 = vcvt.s32.f32 %v790
      %v1303 = vcvt.s32.f32 %v791
      %v1304 = vcvt.s32.f32 %v792
      %v1305 = vcvt.s32.f32 %v793
      %v1306 = vcvt.s32.f32 %v794
      %v1307 = vcvt.s32.f32 %v795
      %v1308 = vcvt.s32.f32 %v796
      %v1309 = vcvt.s32.f32 %v797
      %v1310 = vcvt.s32.f32 %v798
      %v1311 = vcvt.s32.f32 %v799
      %v1312 = vcvt.s32.f32 %v800
      %v1313 = vcvt.s32.f32 %v801
      %v1314 = vcvt.s32.f32 %v802
      %v1315 = vcvt.s32.f32 %v803
      %v1316 = vcvt.s32.f32 %v804
      %v1317 = vcvt.s32.f32 %v805
      %v1318 = vcvt.s32.f32 %v806
      %v1319 = vcvt.s32.f32 %v807
      %v1320 = vcvt.s32.f32 %v808
      %v1321 = vcvt.s32.f32 %v809
      %v1322 = vcvt.s32.f32 %v810
      %v1323 = vcvt.s32.f32 %v811
      %v1324 = vcvt.s32.f32 %v812
      %v1325 = vcvt.s32.f32 %v813
      %v1326 = vcvt.s32.f32 %v814
      %v1327 = vcvt.s32.f32 %v815
      %v1328 = vcvt.s32.f32 %v816
      %v1329 = vcvt.s32.f32 %v817
      %v1330 = vcvt.s32.f32 %v818
      %v1331 = vcvt.s32.f32 %v819
      %v1332 = vcvt.s32.f32 %v820
      %v1333 = vcvt.s32.f32 %v821
      %v1334 = vcvt.s32.f32 %v822
      %v1335 = vcvt.s32.f32 %v823
      %v1336 = vcvt.s32.f32 %v824
      %v1337 = vcvt.s32.f32 %v825
      %v1338 = vcvt.s32.f32 %v826
      %v1339 = vcvt.s32.f32 %v827
      %v1340 = vcvt.s32.f32 %v828
      %v1341 = vcvt.s32.f32 %v829
      %v1342 = vcvt.s32.f32 %v830
      %v1343 = vcvt.s32.f32 %v831
      %v1344 = vcvt.s32.f32 %v832
      %v1345 = vcvt.s32.f32 %v833
      %v1346 = vcvt.s32.f32 %v834
      %v1347 = vcvt.s32.f32 %v835
      %v1348 = vcvt.s32.f32 %v836
      %v1349 = vcvt.s32.f32 %v837
      %v1350 = vcvt.s32.f32 %v838
      %v1351 = vcvt.s32.f32 %v839
      %v1352 = vcvt.s32.f32 %v840
      %v1353 = vcvt.s32.f32 %v841
      %v1354 = vcvt.s32.f32 %v842
      %v1355 = vcvt.s32.f32 %v843
      %v1356 = vcvt.s32.f32 %v844
      %v1357 = vcvt.s32.f32 %v845
      %v1358 = vcvt.s32.f32 %v846
      %v1359 = vcvt.s32.f32 %v847
      %v1360 = vcvt.s32.f32 %v848
      %v1361 = vcvt.s32.f32 %v849
      %v1362 = vcvt.s32.f32 %v850
      %v1363 = vcvt.s32.f32 %v851
      %v1364 = vcvt.s32.f32 %v852
      %v1365 = vcvt.s32.f32 %v853
      %v1366 = vcvt.s32.f32 %v854
      %v1367 = vcvt.s32.f32 %v855
      %v1368 = vcvt.s32.f32 %v856
      %v1369 = vcvt.s32.f32 %v857
      %v1370 = vcvt.s32.f32 %v858
      %v1371 = vcvt.s32.f32 %v859
      %v1372 = vcvt.s32.f32 %v860
      %v1373 = vcvt.s32.f32 %v861
      %v1374 = vcvt.s32.f32 %v862
      %v1375 = vcvt.s32.f32 %v863
      %v1376 = vcvt.s32.f32 %v864
      %v1377 = vcvt.s32.f32 %v865
      %v1378 = vcvt.s32.f32 %v866
      %v1379 = vcvt.s32.f32 %v867
      %v1380 = vcvt.s32.f32 %v868
      %v1381 = vcvt.s32.f32 %v869
      %v1382 = vcvt.s32.f32 %v870
      %v1383 = vcvt.s32.f32 %v871
      %v1384 = vcvt.s32.f32 %v872
      %v1385 = vcvt.s32.f32 %v873
      %v1386 = vcvt.s32.f32 %v874
      %v1387 = vcvt.s32.f32 %v875
      %v1388 = vcvt.s32.f32 %v876
      %v1389 = vcvt.s32.f32 %v877
      %v1390 = vcvt.s32.f32 %v878
      %v1391 = vcvt.s32.f32 %v879
      %v1392 = vcvt.s32.f32 %v880
      %v1393 = vcvt.s32.f32 %v881
      %v1394 = vcvt.s32.f32 %v882
      %v1395 = vcvt.s32.f32 %v883
      %v1396 = vcvt.s32.f32 %v884
      %v1397 = vcvt.s32.f32 %v885
      %v1398 = vcvt.s32.f32 %v886
      %v1399 = vcvt.s32.f32 %v887
      %v1400 = vcvt.s32.f32 %v888
      %v1401 = vcvt.s32.f32 %v889
      %v1402 = vcvt.s32.f32 %v890
      %v1403 = vcvt.s32.f32 %v891
      %v1404 = vcvt.s32.f32 %v892
      %v1405 = vcvt.s32.f32 %v893
      %v1406 = vcvt.s32.f32 %v894
      %v1407 = vcvt.s32.f32 %v895
      %v1408 = vcvt.s32.f32 %v896
      %v1409 = vcvt.s32.f32 %v897
      %v1410 = vcvt.s32.f32 %v898
      %v1411 = vcvt.s32.f32 %v899
      %v1412 = vcvt.s32.f32 %v900
      %v1413 = vcvt.s32.f32 %v901
      %v1414 = vcvt.s32.f32 %v902
      %v1415 = vcvt.s32.f32 %v903
      %v1416 = vcvt.s32.f32 %v904
      %v1417 = vcvt.s32.f32 %v905
      %v1418 = vcvt.s32.f32 %v906
      %v1419 = vcvt.s32.f32 %v907
      %v1420 = vcvt.s32.f32 %v908
      %v1421 = vcvt.s32.f32 %v909
      %v1422 = vcvt.s32.f32 %v910
      %v1423 = vcvt.s32.f32 %v911
      %v1424 = vcvt.s32.f32 %v912
      %v1425 = vcvt.s32.f32 %v913
      %v1426 = vcvt.s32.f32 %v914
      %v1427 = vcvt.s32.f32 %v915
      %v1428 = vcvt.s32.f32 %v916
      %v1429 = vcvt.s32.f32 %v917
      %v1430 = vcvt.s32.f32 %v918
      %v1431 = vcvt.s32.f32 %v919
      %v1432 = vcvt.s32.f32 %v920
      %v1433 = vcvt.s32.f32 %v921
      %v1434 = vcvt.s32.f32 %v922
      %v1435 = vcvt.s32.f32 %v923
      %v1436 = vcvt.s32.f32 %v924
      %v1437 = vcvt.s32.f32 %v925
      %v1438 = vcvt.s32.f32 %v926
      %v1439 = vcvt.s32.f32 %v927
      %v1440 = vcvt.s32.f32 %v928
      %v1441 = vcvt.s32.f32 %v929
      %v1442 = vcvt.s32.f32 %v930
      %v1443 = vcvt.s32.f32 %v931
      %v1444 = vcvt.s32.f32 %v932
      %v1445 = vcvt.s32.f32 %v933
      %v1446 = vcvt.s32.f32 %v934
      %v1447 = vcvt.s32.f32 %v935
      %v1448 = vcvt.s32.f32 %v936
      %v1449 = vcvt.s32.f32 %v937
      %v1450 = vcvt.s32.f32 %v938
      %v1451 = vcvt.s32.f32 %v939
      %v1452 = vcvt.s32.f32 %v940
      %v1453 = vcvt.s32.f32 %v941
      %v1454 = vcvt.s32.f32 %v942
      %v1455 = vcvt.s32.f32 %v943
      %v1456 = vcvt.s32.f32 %v944
      %v1457 = vcvt.s32.f32 %v945
      %v1458 = vcvt.s32.f32 %v946
      %v1459 = vcvt.s32.f32 %v947
      %v1460 = vcvt.s32.f32 %v948
      %v1461 = vcvt.s32.f32 %v949
      %v1462 = vcvt.s32.f32 %v950
      %v1463 = vcvt.s32.f32 %v951
      %v1464 = vcvt.s32.f32 %v952
      %v1465 = vcvt.s32.f32 %v953
      %v1466 = vcvt.s32.f32 %v954
      %v1467 = vcvt.s32.f32 %v955
      %v1468 = vcvt.s32.f32 %v956
      %v1469 = vcvt.s32.f32 %v957
      %v1470 = vcvt.s32.f32 %v958
      %v1471 = vcvt.s32.f32 %v959
      %v1472 = vcvt.s32.f32 %v960
      %v1473 = vcvt.s32.f32 %v961
      %v1474 = vcvt.s32.f32 %v962
      %v1475 = vcvt.s32.f32 %v963
      %v1476 = vcvt.s32.f32 %v964
      %v1477 = vcvt.s32.f32 %v965
      %v1478 = vcvt.s32.f32 %v966
      %v1479 = vcvt.s32.f32 %v967
      %v1480 = vcvt.s32.f32 %v968
      %v1481 = vcvt.s32.f32 %v969
      %v1482 = vcvt.s32.f32 %v970
      %v1483 = vcvt.s32.f32 %v971
      %v1484 = vcvt.s32.f32 %v972
      %v1485 = vcvt.s32.f32 %v973
      %v1486 = vcvt.s32.f32 %v974
      %v1487 = vcvt.s32.f32 %v975
      %v1488 = vcvt.s32.f32 %v976
      %v1489 = vcvt.s32.f32 %v977
      %v1490 = vcvt.s32.f32 %v978
      %v1491 = vcvt.s32.f32 %v979
      %v1492 = vcvt.s32.f32 %v980
      %v1493 = vcvt.s32.f32 %v981
      %v1494 = vcvt.s32.f32 %v982
      %v1495 = vcvt.s32.f32 %v983
      %v1496 = vcvt.s32.f32 %v984
      %v1497 = vcvt.s32.f32 %v985
      %v1498 = vcvt.s32.f32 %v986
      %v1499 = vcvt.s32.f32 %v987
      %v1500 = vcvt.s32.f32 %v988
      %v1501 = vcvt.s32.f32 %v989
      %v1502 = vcvt.s32.f32 %v990
      %v1503 = vcvt.s32.f32 %v991
      %v1504 = vcvt.s32.f32 %v992
      %v1505 = vcvt.s32.f32 %v993
      %v1506 = vcvt.s32.f32 %v994
      %v1507 = vcvt.s32.f32 %v995
      %v1508 = vcvt.s32.f32 %v996
      %v1509 = vcvt.s32.f32 %v997
      %v1510 = vcvt.s32.f32 %v998
      %v1511 = vcvt.s32.f32 %v999
      %v1512 = vcvt.s32.f32 %v1000
      %v1513 = vcvt.s32.f32 %v1001
      %v1514 = vcvt.s32.f32 %v1002
      %v1515 = vcvt.s32.f32 %v1003
      %v1516 = vcvt.s32.f32 %v1004
      %v1517 = vcvt.s32.f32 %v1005
      %v1518 = vcvt.s32.f32 %v1006
      %v1519 = vcvt.s32.f32 %v1007
      %v1520 = vcvt.s32.f32 %v1008
      %v1521 = vcvt.s32.f32 %v1009
      %v1522 = vcvt.s32.f32 %v1010
      %v1523 = vcvt.s32.f32 %v1011
      %v1524 = vcvt.s32.f32 %v1012
      %v1525 = vcvt.s32.f32 %v1013
      %v1526 = vcvt.s32.f32 %v1014
      %v1527 = vcvt.s32.f32 %v1015
      %v1528 = vcvt.s32.f32 %v1016
      %v1529 = vcvt.s32.f32 %v1017
      %v1530 = vcvt.s32.f32 %v1018
      %v1531 = vcvt.s32.f32 %v1019
      %v1532 = vcvt.s32.f32 %v1020
      %v1533 = vcvt.s32.f32 %v1021
      %v1534 = vcvt.s32.f32 %v1022
      %v1535 = vcvt.s32.f32 %v1023
      %v1536 = vcvt.s32.f32 %v1024
      %v1537 = vcvt.s32.f32 %v1025
      %v1538 = vcvt.s32.f32 %v1026
      %v1539 = vcvt.s32.f32 %v1027
      %v1540 = vcvt.s32.f32 %v1028
      %v1541 = vcvt.s32.f32 %v1029
      %v1542 = vcvt.s32.f32 %v1030
      %v1543 = vcvt.s32.f32 %v1031
      %v1544 = vcvt.s32.f32 %v1032
      %v1545 = vcvt.s32.f32 %v1033
      %v1546 = vcvt.s32.f32 %v1034
      %v1547 = vcvt.s32.f32 %v1035
      %v1548 = vcvt.s32.f32 %v1036
      %v1549 = vcvt.s32.f32 %v1037
      %v1550 = vcvt.s32.f32 %v1038
      %v1551 = vcvt.s32.f32 %v1039
      %v1552 = vcvt.s32.f32 %v1040
      %v1553 = vcvt.s32.f32 %v1041
      %v1554 = vcvt.s32.f32 %v1042
      %v1555 = vcvt.s32.f32 %v1043
      %v1556 = vcvt.s32.f32 %v1044
      %v1557 = vcvt.s32.f32 %v1045
      %v1558 = vcvt.s32.f32 %v1046
      %v1559 = vcvt.s32.f32 %v1047
      %v1560 = vcvt.s32.f32 %v1048
      %v1561 = vcvt.s32.f32 %v1049
      %v1562 = vcvt.s32.f32 %v1050
      %v1563 = vcvt.s32.f32 %v1051
      %v1564 = vcvt.s32.f32 %v1052
      %v1565 = vcvt.s32.f32 %v1053
      %v1566 = vcvt.s32.f32 %v1054
      %v1567 = vcvt.s32.f32 %v1055
      %v1568 = vcvt.s32.f32 %v1056
      %v1569 = vcvt.s32.f32 %v1057
      %v1570 = vcvt.s32.f32 %v1058
      %v1571 = vcvt.s32.f32 %v1059
      %v1572 = vcvt.s32.f32 %v1060
      %v1573 = vcvt.s32.f32 %v1061
      %v1574 = vcvt.s32.f32 %v1062
      %v1575 = vcvt.s32.f32 %v1063
      %v1576 = vcvt.s32.f32 %v1064
      %v1577 = vcvt.s32.f32 %v1065
      %v1578 = vcvt.s32.f32 %v1066
      %v1579 = vcvt.s32.f32 %v1067
      %v1580 = vcvt.s32.f32 %v1068
      %v1581 = vcvt.s32.f32 %v1069
      %v1582 = vcvt.s32.f32 %v1070
      %v1583 = vcvt.s32.f32 %v1071
      %v1584 = vcvt.s32.f32 %v1072
      %v1585 = vcvt.s32.f32 %v1073
      %v1586 = vcvt.s32.f32 %v1074
      %v1587 = vcvt.s32.f32 %v1075
      %v1588 = vcvt.s32.f32 %v1076
      %v1589 = vcvt.s32.f32 %v1077
      %v1590 = vcvt.s32.f32 %v1078
      %v1591 = vcvt.s32.f32 %v1079
      %v1592 = vcvt.s32.f32 %v1080
      %v1593 = vcvt.s32.f32 %v1081
      %v1594 = vcvt.s32.f32 %v1082
      %v1595 = vcvt.s32.f32 %v1083
      %v1596 = vcvt.s32.f32 %v1084
      %v1597 = vcvt.s32.f32 %v1085
      %v1598 = vcvt.s32.f32 %v1086
      %v1599 = vcvt.s32.f32 %v1087
      %v1600 = vcvt.s32.f32 %v1088
      %v1601 = vcvt.s32.f32 %v1089
      %v1602 = vcvt.s32.f32 %v1090
      %v1603 = vcvt.s32.f32 %v1091
      %v1604 = vcvt.s32.f32 %v1092
      %v1605 = vcvt.s32.f32 %v1093
      %v1606 = vcvt.s32.f32 %v1094
      %v1607 = vcvt.s32.f32 %v1095
      %v1608 = vcvt.s32.f32 %v1096
      %v1609 = vcvt.s32.f32 %v1097
      %v1610 = vcvt.s32.f32 %v1098
      %v1611 = vcvt.s32.f32 %v1099
      %v1612 = vcvt.s32.f32 %v1100
      %v1613 = vcvt.s32.f32 %v1101
      %v1614 = vcvt.s32.f32 %v1102
      %v1615 = vcvt.s32.f32 %v1103
      %v1616 = vcvt.s32.f32 %v1104
      %v1617 = vcvt.s32.f32 %v1105
      %v1618 = vcvt.s32.f32 %v1106
      %v1619 = vcvt.s32.f32 %v1107
      %v1620 = vcvt.s32.f32 %v1108
      %v1621 = vcvt.s32.f32 %v1109
      %v1622 = vcvt.s32.f32 %v1110
      %v1623 = vcvt.s32.f32 %v1111
      %v1624 = vcvt.s32.f32 %v1112
      %v1625 = vcvt.s32.f32 %v1113
      %v1626 = vcvt.s32.f32 %v1114
      %v1627 = vcvt.s32.f32 %v1115
      %v1628 = vcvt.s32.f32 %v1116
      %v1629 = vcvt.s32.f32 %v1117
      %v1630 = vcvt.s32.f32 %v1118
      %v1631 = vcvt.s32.f32 %v1119
      %v1632 = vpack.c.bf16 %v1124, %v1120
      %v1633 = vpack.c.bf16 %v1125, %v1121
      %v1634 = vpack.c.bf16 %v1126, %v1122
      %v1635 = vpack.c.bf16 %v1127, %v1123
      %v1636 = vpack.c.bf16 %v1132, %v1128
      %v1637 = vpack.c.bf16 %v1133, %v1129
      %v1638 = vpack.c.bf16 %v1134, %v1130
      %v1639 = vpack.c.bf16 %v1135, %v1131
      %v1640 = vpack.c.bf16 %v1140, %v1136
      %v1641 = vpack.c.bf16 %v1141, %v1137
      %v1642 = vpack.c.bf16 %v1142, %v1138
      %v1643 = vpack.c.bf16 %v1143, %v1139
      %v1644 = vpack.c.bf16 %v1148, %v1144
      %v1645 = vpack.c.bf16 %v1149, %v1145
      %v1646 = vpack.c.bf16 %v1150, %v1146
      %v1647 = vpack.c.bf16 %v1151, %v1147
      %v1648 = vpack.c.bf16 %v1156, %v1152
      %v1649 = vpack.c.bf16 %v1157, %v1153
      %v1650 = vpack.c.bf16 %v1158, %v1154
      %v1651 = vpack.c.bf16 %v1159, %v1155
      %v1652 = vpack.c.bf16 %v1164, %v1160
      %v1653 = vpack.c.bf16 %v1165, %v1161
      %v1654 = vpack.c.bf16 %v1166, %v1162
      %v1655 = vpack.c.bf16 %v1167, %v1163
      %v1656 = vpack.c.bf16 %v1172, %v1168
      %v1657 = vpack.c.bf16 %v1173, %v1169
      %v1658 = vpack.c.bf16 %v1174, %v1170
      %v1659 = vpack.c.bf16 %v1175, %v1171
      %v1660 = vpack.c.bf16 %v1180, %v1176
      %v1661 = vpack.c.bf16 %v1181, %v1177
      %v1662 = vpack.c.bf16 %v1182, %v1178
      %v1663 = vpack.c.bf16 %v1183, %v1179
      %v1664 = vpack.c.bf16 %v1188, %v1184
      %v1665 = vpack.c.bf16 %v1189, %v1185
      %v1666 = vpack.c.bf16 %v1190, %v1186
      %v1667 = vpack.c.bf16 %v1191, %v1187
      %v1668 = vpack.c.bf16 %v1196, %v1192
      %v1669 = vpack.c.bf16 %v1197, %v1193
      %v1670 = vpack.c.bf16 %v1198, %v1194
      %v1671 = vpack.c.bf16 %v1199, %v1195
      %v1672 = vpack.c.bf16 %v1204, %v1200
      %v1673 = vpack.c.bf16 %v1205, %v1201
      %v1674 = vpack.c.bf16 %v1206, %v1202
      %v1675 = vpack.c.bf16 %v1207, %v1203
      %v1676 = vpack.c.bf16 %v1212, %v1208
      %v1677 = vpack.c.bf16 %v1213, %v1209
      %v1678 = vpack.c.bf16 %v1214, %v1210
      %v1679 = vpack.c.bf16 %v1215, %v1211
      %v1680 = vpack.c.bf16 %v1220, %v1216
      %v1681 = vpack.c.bf16 %v1221, %v1217
      %v1682 = vpack.c.bf16 %v1222, %v1218
      %v1683 = vpack.c.bf16 %v1223, %v1219
      %v1684 = vpack.c.bf16 %v1228, %v1224
      %v1685 = vpack.c.bf16 %v1229, %v1225
      %v1686 = vpack.c.bf16 %v1230, %v1226
      %v1687 = vpack.c.bf16 %v1231, %v1227
      %v1688 = vpack.c.bf16 %v1236, %v1232
      %v1689 = vpack.c.bf16 %v1237, %v1233
      %v1690 = vpack.c.bf16 %v1238, %v1234
      %v1691 = vpack.c.bf16 %v1239, %v1235
      %v1692 = vpack.c.bf16 %v1244, %v1240
      %v1693 = vpack.c.bf16 %v1245, %v1241
      %v1694 = vpack.c.bf16 %v1246, %v1242
      %v1695 = vpack.c.bf16 %v1247, %v1243
      %v1696 = vpack.c.bf16 %v1252, %v1248
      %v1697 = vpack.c.bf16 %v1253, %v1249
      %v1698 = vpack.c.bf16 %v1254, %v1250
      %v1699 = vpack.c.bf16 %v1255, %v1251
      %v1700 = vpack.c.bf16 %v1260, %v1256
      %v1701 = vpack.c.bf16 %v1261, %v1257
      %v1702 = vpack.c.bf16 %v1262, %v1258
      %v1703 = vpack.c.bf16 %v1263, %v1259
      %v1704 = vpack.c.bf16 %v1268, %v1264
      %v1705 = vpack.c.bf16 %v1269, %v1265
      %v1706 = vpack.c.bf16 %v1270, %v1266
      %v1707 = vpack.c.bf16 %v1271, %v1267
      %v1708 = vpack.c.bf16 %v1276, %v1272
      %v1709 = vpack.c.bf16 %v1277, %v1273
      %v1710 = vpack.c.bf16 %v1278, %v1274
      %v1711 = vpack.c.bf16 %v1279, %v1275
      %v1712 = vpack.c.bf16 %v1284, %v1280
      %v1713 = vpack.c.bf16 %v1285, %v1281
      %v1714 = vpack.c.bf16 %v1286, %v1282
      %v1715 = vpack.c.bf16 %v1287, %v1283
      %v1716 = vpack.c.bf16 %v1292, %v1288
      %v1717 = vpack.c.bf16 %v1293, %v1289
      %v1718 = vpack.c.bf16 %v1294, %v1290
      %v1719 = vpack.c.bf16 %v1295, %v1291
      %v1720 = vpack.c.bf16 %v1300, %v1296
      %v1721 = vpack.c.bf16 %v1301, %v1297
      %v1722 = vpack.c.bf16 %v1302, %v1298
      %v1723 = vpack.c.bf16 %v1303, %v1299
      %v1724 = vpack.c.bf16 %v1308, %v1304
      %v1725 = vpack.c.bf16 %v1309, %v1305
      %v1726 = vpack.c.bf16 %v1310, %v1306
      %v1727 = vpack.c.bf16 %v1311, %v1307
      %v1728 = vpack.c.bf16 %v1316, %v1312
      %v1729 = vpack.c.bf16 %v1317, %v1313
      %v1730 = vpack.c.bf16 %v1318, %v1314
      %v1731 = vpack.c.bf16 %v1319, %v1315
      %v1732 = vpack.c.bf16 %v1324, %v1320
      %v1733 = vpack.c.bf16 %v1325, %v1321
      %v1734 = vpack.c.bf16 %v1326, %v1322
      %v1735 = vpack.c.bf16 %v1327, %v1323
      %v1736 = vpack.c.bf16 %v1332, %v1328
      %v1737 = vpack.c.bf16 %v1333, %v1329
      %v1738 = vpack.c.bf16 %v1334, %v1330
      %v1739 = vpack.c.bf16 %v1335, %v1331
      %v1740 = vpack.c.bf16 %v1340, %v1336
      %v1741 = vpack.c.bf16 %v1341, %v1337
      %v1742 = vpack.c.bf16 %v1342, %v1338
      %v1743 = vpack.c.bf16 %v1343, %v1339
      %v1744 = vpack.c.bf16 %v1348, %v1344
      %v1745 = vpack.c.bf16 %v1349, %v1345
      %v1746 = vpack.c.bf16 %v1350, %v1346
      %v1747 = vpack.c.bf16 %v1351, %v1347
      %v1748 = vpack.c.bf16 %v1356, %v1352
      %v1749 = vpack.c.bf16 %v1357, %v1353
      %v1750 = vpack.c.bf16 %v1358, %v1354
      %v1751 = vpack.c.bf16 %v1359, %v1355
      %v1752 = vpack.c.bf16 %v1364, %v1360
      %v1753 = vpack.c.bf16 %v1365, %v1361
      %v1754 = vpack.c.bf16 %v1366, %v1362
      %v1755 = vpack.c.bf16 %v1367, %v1363
      %v1756 = vpack.c.bf16 %v1372, %v1368
      %v1757 = vpack.c.bf16 %v1373, %v1369
      %v1758 = vpack.c.bf16 %v1374, %v1370
      %v1759 = vpack.c.bf16 %v1375, %v1371
      %v1760 = vpack.c.bf16 %v1380, %v1376
      %v1761 = vpack.c.bf16 %v1381, %v1377
      %v1762 = vpack.c.bf16 %v1382, %v1378
      %v1763 = vpack.c.bf16 %v1383, %v1379
      %v1764 = vpack.c.bf16 %v1388, %v1384
      %v1765 = vpack.c.bf16 %v1389, %v1385
      %v1766 = vpack.c.bf16 %v1390, %v1386
      %v1767 = vpack.c.bf16 %v1391, %v1387
      %v1768 = vpack.c.bf16 %v1396, %v1392
      %v1769 = vpack.c.bf16 %v1397, %v1393
      %v1770 = vpack.c.bf16 %v1398, %v1394
      %v1771 = vpack.c.bf16 %v1399, %v1395
      %v1772 = vpack.c.bf16 %v1404, %v1400
      %v1773 = vpack.c.bf16 %v1405, %v1401
      %v1774 = vpack.c.bf16 %v1406, %v1402
      %v1775 = vpack.c.bf16 %v1407, %v1403
      %v1776 = vpack.c.bf16 %v1412, %v1408
      %v1777 = vpack.c.bf16 %v1413, %v1409
      %v1778 = vpack.c.bf16 %v1414, %v1410
      %v1779 = vpack.c.bf16 %v1415, %v1411
      %v1780 = vpack.c.bf16 %v1420, %v1416
      %v1781 = vpack.c.bf16 %v1421, %v1417
      %v1782 = vpack.c.bf16 %v1422, %v1418
      %v1783 = vpack.c.bf16 %v1423, %v1419
      %v1784 = vpack.c.bf16 %v1428, %v1424
      %v1785 = vpack.c.bf16 %v1429, %v1425
      %v1786 = vpack.c.bf16 %v1430, %v1426
      %v1787 = vpack.c.bf16 %v1431, %v1427
      %v1788 = vpack.c.bf16 %v1436, %v1432
      %v1789 = vpack.c.bf16 %v1437, %v1433
      %v1790 = vpack.c.bf16 %v1438, %v1434
      %v1791 = vpack.c.bf16 %v1439, %v1435
      %v1792 = vpack.c.bf16 %v1444, %v1440
      %v1793 = vpack.c.bf16 %v1445, %v1441
      %v1794 = vpack.c.bf16 %v1446, %v1442
      %v1795 = vpack.c.bf16 %v1447, %v1443
      %v1796 = vpack.c.bf16 %v1452, %v1448
      %v1797 = vpack.c.bf16 %v1453, %v1449
      %v1798 = vpack.c.bf16 %v1454, %v1450
      %v1799 = vpack.c.bf16 %v1455, %v1451
      %v1800 = vpack.c.bf16 %v1460, %v1456
      %v1801 = vpack.c.bf16 %v1461, %v1457
      %v1802 = vpack.c.bf16 %v1462, %v1458
      %v1803 = vpack.c.bf16 %v1463, %v1459
      %v1804 = vpack.c.bf16 %v1468, %v1464
      %v1805 = vpack.c.bf16 %v1469, %v1465
      %v1806 = vpack.c.bf16 %v1470, %v1466
      %v1807 = vpack.c.bf16 %v1471, %v1467
      %v1808 = vpack.c.bf16 %v1476, %v1472
      %v1809 = vpack.c.bf16 %v1477, %v1473
      %v1810 = vpack.c.bf16 %v1478, %v1474
      %v1811 = vpack.c.bf16 %v1479, %v1475
      %v1812 = vpack.c.bf16 %v1484, %v1480
      %v1813 = vpack.c.bf16 %v1485, %v1481
      %v1814 = vpack.c.bf16 %v1486, %v1482
      %v1815 = vpack.c.bf16 %v1487, %v1483
      %v1816 = vpack.c.bf16 %v1492, %v1488
      %v1817 = vpack.c.bf16 %v1493, %v1489
      %v1818 = vpack.c.bf16 %v1494, %v1490
      %v1819 = vpack.c.bf16 %v1495, %v1491
      %v1820 = vpack.c.bf16 %v1500, %v1496
      %v1821 = vpack.c.bf16 %v1501, %v1497
      %v1822 = vpack.c.bf16 %v1502, %v1498
      %v1823 = vpack.c.bf16 %v1503, %v1499
      %v1824 = vpack.c.bf16 %v1508, %v1504
      %v1825 = vpack.c.bf16 %v1509, %v1505
      %v1826 = vpack.c.bf16 %v1510, %v1506
      %v1827 = vpack.c.bf16 %v1511, %v1507
      %v1828 = vpack.c.bf16 %v1516, %v1512
      %v1829 = vpack.c.bf16 %v1517, %v1513
      %v1830 = vpack.c.bf16 %v1518, %v1514
      %v1831 = vpack.c.bf16 %v1519, %v1515
      %v1832 = vpack.c.bf16 %v1524, %v1520
      %v1833 = vpack.c.bf16 %v1525, %v1521
      %v1834 = vpack.c.bf16 %v1526, %v1522
      %v1835 = vpack.c.bf16 %v1527, %v1523
      %v1836 = vpack.c.bf16 %v1532, %v1528
      %v1837 = vpack.c.bf16 %v1533, %v1529
      %v1838 = vpack.c.bf16 %v1534, %v1530
      %v1839 = vpack.c.bf16 %v1535, %v1531
      %v1840 = vpack.c.bf16 %v1540, %v1536
      %v1841 = vpack.c.bf16 %v1541, %v1537
      %v1842 = vpack.c.bf16 %v1542, %v1538
      %v1843 = vpack.c.bf16 %v1543, %v1539
      %v1844 = vpack.c.bf16 %v1548, %v1544
      %v1845 = vpack.c.bf16 %v1549, %v1545
      %v1846 = vpack.c.bf16 %v1550, %v1546
      %v1847 = vpack.c.bf16 %v1551, %v1547
      %v1848 = vpack.c.bf16 %v1556, %v1552
      %v1849 = vpack.c.bf16 %v1557, %v1553
      %v1850 = vpack.c.bf16 %v1558, %v1554
      %v1851 = vpack.c.bf16 %v1559, %v1555
      %v1852 = vpack.c.bf16 %v1564, %v1560
      %v1853 = vpack.c.bf16 %v1565, %v1561
      %v1854 = vpack.c.bf16 %v1566, %v1562
      %v1855 = vpack.c.bf16 %v1567, %v1563
      %v1856 = vpack.c.bf16 %v1572, %v1568
      %v1857 = vpack.c.bf16 %v1573, %v1569
      %v1858 = vpack.c.bf16 %v1574, %v1570
      %v1859 = vpack.c.bf16 %v1575, %v1571
      %v1860 = vpack.c.bf16 %v1580, %v1576
      %v1861 = vpack.c.bf16 %v1581, %v1577
      %v1862 = vpack.c.bf16 %v1582, %v1578
      %v1863 = vpack.c.bf16 %v1583, %v1579
      %v1864 = vpack.c.bf16 %v1588, %v1584
      %v1865 = vpack.c.bf16 %v1589, %v1585
      %v1866 = vpack.c.bf16 %v1590, %v1586
      %v1867 = vpack.c.bf16 %v1591, %v1587
      %v1868 = vpack.c.bf16 %v1596, %v1592
      %v1869 = vpack.c.bf16 %v1597, %v1593
      %v1870 = vpack.c.bf16 %v1598, %v1594
      %v1871 = vpack.c.bf16 %v1599, %v1595
      %v1872 = vpack.c.bf16 %v1604, %v1600
      %v1873 = vpack.c.bf16 %v1605, %v1601
      %v1874 = vpack.c.bf16 %v1606, %v1602
      %v1875 = vpack.c.bf16 %v1607, %v1603
      %v1876 = vpack.c.bf16 %v1612, %v1608
      %v1877 = vpack.c.bf16 %v1613, %v1609
      %v1878 = vpack.c.bf16 %v1614, %v1610
      %v1879 = vpack.c.bf16 %v1615, %v1611
      %v1880 = vpack.c.bf16 %v1620, %v1616
      %v1881 = vpack.c.bf16 %v1621, %v1617
      %v1882 = vpack.c.bf16 %v1622, %v1618
      %v1883 = vpack.c.bf16 %v1623, %v1619
      %v1884 = vpack.c.bf16 %v1628, %v1624
      %v1885 = vpack.c.bf16 %v1629, %v1625
      %v1886 = vpack.c.bf16 %v1630, %v1626
      %v1887 = vpack.c.bf16 %v1631, %v1627
      %v1888 = vpack.c.bf16 %v472, %v472
      %v1889 = vpack.c.bf16 %v473, %v473
      %v1890 = vpack.c.bf16 %v474, %v474
      %v1891 = vpack.c.bf16 %v475, %v475
      %v1892 = vpack.c.bf16 %v476, %v476
      %v1893 = vpack.c.bf16 %v477, %v477
      %v1894 = vpack.c.bf16 %v478, %v478
      %v1895 = vpack.c.bf16 %v479, %v479
      %1896 = vmatpush.bf16.msra.mxu0 %v1660
      %1897 = vmatpush.bf16.msra.mxu0 %v1656
      %1898 = vmatpush.bf16.msra.mxu0 %v1652
      %1899 = vmatpush.bf16.msra.mxu0 %v1648
      %1900 = vmatpush.bf16.msra.mxu0 %v1644
      %1901 = vmatpush.bf16.msra.mxu0 %v1640
      %1902 = vmatpush.bf16.msra.mxu0 %v1636
      %1903 = vmatpush.bf16.msra.mxu0 %v1632
      %1904 = vmatmul.bf16.gmra.mxu0 %v1888
      %v1905 = vpop.f32.mrf.mxu0
      %v1906 = vadd.f32 0.0, %v1905
      %v1907 = vpop.f32.mrf.mxu0
      %1908 = vdwg.mxu0
      %1909 = vmatpush.bf16.msra.mxu0 %v1692
      %1910 = vmatpush.bf16.msra.mxu0 %v1688
      %1911 = vmatpush.bf16.msra.mxu0 %v1684
      %1912 = vmatpush.bf16.msra.mxu0 %v1680
      %1913 = vmatpush.bf16.msra.mxu0 %v1676
      %1914 = vmatpush.bf16.msra.mxu0 %v1672
      %1915 = vmatpush.bf16.msra.mxu0 %v1668
      %1916 = vmatpush.bf16.msra.mxu0 %v1664
      %1917 = vmatmul.bf16.gmra.mxu0 %v1889
      %v1918 = vpop.f32.mrf.mxu0
      %v1919 = vadd.f32 %v1906, %v1918
      %v1920 = vpop.f32.mrf.mxu0
      %1921 = vdwg.mxu0
      %1922 = vmatpush.bf16.msra.mxu0 %v1724
      %1923 = vmatpush.bf16.msra.mxu0 %v1720
      %1924 = vmatpush.bf16.msra.mxu0 %v1716
      %1925 = vmatpush.bf16.msra.mxu0 %v1712
      %1926 = vmatpush.bf16.msra.mxu0 %v1708
      %1927 = vmatpush.bf16.msra.mxu0 %v1704
      %1928 = vmatpush.bf16.msra.mxu0 %v1700
      %1929 = vmatpush.bf16.msra.mxu0 %v1696
      %1930 = vmatmul.bf16.gmra.mxu0 %v1890
      %v1931 = vpop.f32.mrf.mxu0
      %v1932 = vadd.f32 %v1919, %v1931
      %v1933 = vpop.f32.mrf.mxu0
      %1934 = vdwg.mxu0
      %1935 = vmatpush.bf16.msra.mxu0 %v1756
      %1936 = vmatpush.bf16.msra.mxu0 %v1752
      %1937 = vmatpush.bf16.msra.mxu0 %v1748
      %1938 = vmatpush.bf16.msra.mxu0 %v1744
      %1939 = vmatpush.bf16.msra.mxu0 %v1740
      %1940 = vmatpush.bf16.msra.mxu0 %v1736
      %1941 = vmatpush.bf16.msra.mxu0 %v1732
      %1942 = vmatpush.bf16.msra.mxu0 %v1728
      %1943 = vmatmul.bf16.gmra.mxu0 %v1891
      %v1944 = vpop.f32.mrf.mxu0
      %v1945 = vadd.f32 %v1932, %v1944
      %v1946 = vpop.f32.mrf.mxu0
      %1947 = vdwg.mxu0
      %1948 = vmatpush.bf16.msra.mxu0 %v1788
      %1949 = vmatpush.bf16.msra.mxu0 %v1784
      %1950 = vmatpush.bf16.msra.mxu0 %v1780
      %1951 = vmatpush.bf16.msra.mxu0 %v1776
      %1952 = vmatpush.bf16.msra.mxu0 %v1772
      %1953 = vmatpush.bf16.msra.mxu0 %v1768
      %1954 = vmatpush.bf16.msra.mxu0 %v1764
      %1955 = vmatpush.bf16.msra.mxu0 %v1760
      %1956 = vmatmul.bf16.gmra.mxu0 %v1892
      %v1957 = vpop.f32.mrf.mxu0
      %v1958 = vadd.f32 %v1945, %v1957
      %v1959 = vpop.f32.mrf.mxu0
      %1960 = vdwg.mxu0
      %1961 = vmatpush.bf16.msra.mxu0 %v1820
      %1962 = vmatpush.bf16.msra.mxu0 %v1816
      %1963 = vmatpush.bf16.msra.mxu0 %v1812
      %1964 = vmatpush.bf16.msra.mxu0 %v1808
      %1965 = vmatpush.bf16.msra.mxu0 %v1804
      %1966 = vmatpush.bf16.msra.mxu0 %v1800
      %1967 = vmatpush.bf16.msra.mxu0 %v1796
      %1968 = vmatpush.bf16.msra.mxu0 %v1792
      %1969 = vmatmul.bf16.gmra.mxu0 %v1893
      %v1970 = vpop.f32.mrf.mxu0
      %v1971 = vadd.f32 %v1958, %v1970
      %v1972 = vpop.f32.mrf.mxu0
      %1973 = vdwg.mxu0
      %1974 = vmatpush.bf16.msra.mxu0 %v1852
      %1975 = vmatpush.bf16.msra.mxu0 %v1848
      %1976 = vmatpush.bf16.msra.mxu0 %v1844
      %1977 = vmatpush.bf16.msra.mxu0 %v1840
      %1978 = vmatpush.bf16.msra.mxu0 %v1836
      %1979 = vmatpush.bf16.msra.mxu0 %v1832
      %1980 = vmatpush.bf16.msra.mxu0 %v1828
      %1981 = vmatpush.bf16.msra.mxu0 %v1824
      %1982 = vmatmul.bf16.gmra.mxu0 %v1894
      %v1983 = vpop.f32.mrf.mxu0
      %v1984 = vadd.f32 %v1971, %v1983
      %v1985 = vpop.f32.mrf.mxu0
      %1986 = vdwg.mxu0
      %1987 = vmatpush.bf16.msra.mxu0 %v1884
      %1988 = vmatpush.bf16.msra.mxu0 %v1880
      %1989 = vmatpush.bf16.msra.mxu0 %v1876
      %1990 = vmatpush.bf16.msra.mxu0 %v1872
      %1991 = vmatpush.bf16.msra.mxu0 %v1868
      %1992 = vmatpush.bf16.msra.mxu0 %v1864
      %1993 = vmatpush.bf16.msra.mxu0 %v1860
      %1994 = vmatpush.bf16.msra.mxu0 %v1856
      %1995 = vmatmul.bf16.gmra.mxu0 %v1895
      %v1996 = vpop.f32.mrf.mxu0
      %v1997 = vadd.f32 %v1984, %v1996
      %v1998 = vpop.f32.mrf.mxu0
      %1999 = vdwg.mxu0
      %2000 = vmatpush.bf16.msra.mxu0 %v1661
      %2001 = vmatpush.bf16.msra.mxu0 %v1657
      %2002 = vmatpush.bf16.msra.mxu0 %v1653
      %2003 = vmatpush.bf16.msra.mxu0 %v1649
      %2004 = vmatpush.bf16.msra.mxu0 %v1645
      %2005 = vmatpush.bf16.msra.mxu0 %v1641
      %2006 = vmatpush.bf16.msra.mxu0 %v1637
      %2007 = vmatpush.bf16.msra.mxu0 %v1633
      %2008 = vmatmul.bf16.gmra.mxu0 %v1888
      %v2009 = vpop.f32.mrf.mxu0
      %v2010 = vadd.f32 0.0, %v2009
      %v2011 = vpop.f32.mrf.mxu0
      %2012 = vdwg.mxu0
      %2013 = vmatpush.bf16.msra.mxu0 %v1693
      %2014 = vmatpush.bf16.msra.mxu0 %v1689
      %2015 = vmatpush.bf16.msra.mxu0 %v1685
      %2016 = vmatpush.bf16.msra.mxu0 %v1681
      %2017 = vmatpush.bf16.msra.mxu0 %v1677
      %2018 = vmatpush.bf16.msra.mxu0 %v1673
      %2019 = vmatpush.bf16.msra.mxu0 %v1669
      %2020 = vmatpush.bf16.msra.mxu0 %v1665
      %2021 = vmatmul.bf16.gmra.mxu0 %v1889
      %v2022 = vpop.f32.mrf.mxu0
      %v2023 = vadd.f32 %v2010, %v2022
      %v2024 = vpop.f32.mrf.mxu0
      %2025 = vdwg.mxu0
      %2026 = vmatpush.bf16.msra.mxu0 %v1725
      %2027 = vmatpush.bf16.msra.mxu0 %v1721
      %2028 = vmatpush.bf16.msra.mxu0 %v1717
      %2029 = vmatpush.bf16.msra.mxu0 %v1713
      %2030 = vmatpush.bf16.msra.mxu0 %v1709
      %2031 = vmatpush.bf16.msra.mxu0 %v1705
      %2032 = vmatpush.bf16.msra.mxu0 %v1701
      %2033 = vmatpush.bf16.msra.mxu0 %v1697
      %2034 = vmatmul.bf16.gmra.mxu0 %v1890
      %v2035 = vpop.f32.mrf.mxu0
      %v2036 = vadd.f32 %v2023, %v2035
      %v2037 = vpop.f32.mrf.mxu0
      %2038 = vdwg.mxu0
      %2039 = vmatpush.bf16.msra.mxu0 %v1757
      %2040 = vmatpush.bf16.msra.mxu0 %v1753
      %2041 = vmatpush.bf16.msra.mxu0 %v1749
      %2042 = vmatpush.bf16.msra.mxu0 %v1745
      %2043 = vmatpush.bf16.msra.mxu0 %v1741
      %2044 = vmatpush.bf16.msra.mxu0 %v1737
      %2045 = vmatpush.bf16.msra.mxu0 %v1733
      %2046 = vmatpush.bf16.msra.mxu0 %v1729
      %2047 = vmatmul.bf16.gmra.mxu0 %v1891
      %v2048 = vpop.f32.mrf.mxu0
      %v2049 = vadd.f32 %v2036, %v2048
      %v2050 = vpop.f32.mrf.mxu0
      %2051 = vdwg.mxu0
      %2052 = vmatpush.bf16.msra.mxu0 %v1789
      %2053 = vmatpush.bf16.msra.mxu0 %v1785
      %2054 = vmatpush.bf16.msra.mxu0 %v1781
      %2055 = vmatpush.bf16.msra.mxu0 %v1777
      %2056 = vmatpush.bf16.msra.mxu0 %v1773
      %2057 = vmatpush.bf16.msra.mxu0 %v1769
      %2058 = vmatpush.bf16.msra.mxu0 %v1765
      %2059 = vmatpush.bf16.msra.mxu0 %v1761
      %2060 = vmatmul.bf16.gmra.mxu0 %v1892
      %v2061 = vpop.f32.mrf.mxu0
      %v2062 = vadd.f32 %v2049, %v2061
      %v2063 = vpop.f32.mrf.mxu0
      %2064 = vdwg.mxu0
      %2065 = vmatpush.bf16.msra.mxu0 %v1821
      %2066 = vmatpush.bf16.msra.mxu0 %v1817
      %2067 = vmatpush.bf16.msra.mxu0 %v1813
      %2068 = vmatpush.bf16.msra.mxu0 %v1809
      %2069 = vmatpush.bf16.msra.mxu0 %v1805
      %2070 = vmatpush.bf16.msra.mxu0 %v1801
      %2071 = vmatpush.bf16.msra.mxu0 %v1797
      %2072 = vmatpush.bf16.msra.mxu0 %v1793
      %2073 = vmatmul.bf16.gmra.mxu0 %v1893
      %v2074 = vpop.f32.mrf.mxu0
      %v2075 = vadd.f32 %v2062, %v2074
      %v2076 = vpop.f32.mrf.mxu0
      %2077 = vdwg.mxu0
      %2078 = vmatpush.bf16.msra.mxu0 %v1853
      %2079 = vmatpush.bf16.msra.mxu0 %v1849
      %2080 = vmatpush.bf16.msra.mxu0 %v1845
      %2081 = vmatpush.bf16.msra.mxu0 %v1841
      %2082 = vmatpush.bf16.msra.mxu0 %v1837
      %2083 = vmatpush.bf16.msra.mxu0 %v1833
      %2084 = vmatpush.bf16.msra.mxu0 %v1829
      %2085 = vmatpush.bf16.msra.mxu0 %v1825
      %2086 = vmatmul.bf16.gmra.mxu0 %v1894
      %v2087 = vpop.f32.mrf.mxu0
      %v2088 = vadd.f32 %v2075, %v2087
      %v2089 = vpop.f32.mrf.mxu0
      %2090 = vdwg.mxu0
      %2091 = vmatpush.bf16.msra.mxu0 %v1885
      %2092 = vmatpush.bf16.msra.mxu0 %v1881
      %2093 = vmatpush.bf16.msra.mxu0 %v1877
      %2094 = vmatpush.bf16.msra.mxu0 %v1873
      %2095 = vmatpush.bf16.msra.mxu0 %v1869
      %2096 = vmatpush.bf16.msra.mxu0 %v1865
      %2097 = vmatpush.bf16.msra.mxu0 %v1861
      %2098 = vmatpush.bf16.msra.mxu0 %v1857
      %2099 = vmatmul.bf16.gmra.mxu0 %v1895
      %v2100 = vpop.f32.mrf.mxu0
      %v2101 = vadd.f32 %v2088, %v2100
      %v2102 = vpop.f32.mrf.mxu0
      %2103 = vdwg.mxu0
      %2104 = vmatpush.bf16.msra.mxu0 %v1662
      %2105 = vmatpush.bf16.msra.mxu0 %v1658
      %2106 = vmatpush.bf16.msra.mxu0 %v1654
      %2107 = vmatpush.bf16.msra.mxu0 %v1650
      %2108 = vmatpush.bf16.msra.mxu0 %v1646
      %2109 = vmatpush.bf16.msra.mxu0 %v1642
      %2110 = vmatpush.bf16.msra.mxu0 %v1638
      %2111 = vmatpush.bf16.msra.mxu0 %v1634
      %2112 = vmatmul.bf16.gmra.mxu0 %v1888
      %v2113 = vpop.f32.mrf.mxu0
      %v2114 = vadd.f32 0.0, %v2113
      %v2115 = vpop.f32.mrf.mxu0
      %2116 = vdwg.mxu0
      %2117 = vmatpush.bf16.msra.mxu0 %v1694
      %2118 = vmatpush.bf16.msra.mxu0 %v1690
      %2119 = vmatpush.bf16.msra.mxu0 %v1686
      %2120 = vmatpush.bf16.msra.mxu0 %v1682
      %2121 = vmatpush.bf16.msra.mxu0 %v1678
      %2122 = vmatpush.bf16.msra.mxu0 %v1674
      %2123 = vmatpush.bf16.msra.mxu0 %v1670
      %2124 = vmatpush.bf16.msra.mxu0 %v1666
      %2125 = vmatmul.bf16.gmra.mxu0 %v1889
      %v2126 = vpop.f32.mrf.mxu0
      %v2127 = vadd.f32 %v2114, %v2126
      %v2128 = vpop.f32.mrf.mxu0
      %2129 = vdwg.mxu0
      %2130 = vmatpush.bf16.msra.mxu0 %v1726
      %2131 = vmatpush.bf16.msra.mxu0 %v1722
      %2132 = vmatpush.bf16.msra.mxu0 %v1718
      %2133 = vmatpush.bf16.msra.mxu0 %v1714
      %2134 = vmatpush.bf16.msra.mxu0 %v1710
      %2135 = vmatpush.bf16.msra.mxu0 %v1706
      %2136 = vmatpush.bf16.msra.mxu0 %v1702
      %2137 = vmatpush.bf16.msra.mxu0 %v1698
      %2138 = vmatmul.bf16.gmra.mxu0 %v1890
      %v2139 = vpop.f32.mrf.mxu0
      %v2140 = vadd.f32 %v2127, %v2139
      %v2141 = vpop.f32.mrf.mxu0
      %2142 = vdwg.mxu0
      %2143 = vmatpush.bf16.msra.mxu0 %v1758
      %2144 = vmatpush.bf16.msra.mxu0 %v1754
      %2145 = vmatpush.bf16.msra.mxu0 %v1750
      %2146 = vmatpush.bf16.msra.mxu0 %v1746
      %2147 = vmatpush.bf16.msra.mxu0 %v1742
      %2148 = vmatpush.bf16.msra.mxu0 %v1738
      %2149 = vmatpush.bf16.msra.mxu0 %v1734
      %2150 = vmatpush.bf16.msra.mxu0 %v1730
      %2151 = vmatmul.bf16.gmra.mxu0 %v1891
      %v2152 = vpop.f32.mrf.mxu0
      %v2153 = vadd.f32 %v2140, %v2152
      %v2154 = vpop.f32.mrf.mxu0
      %2155 = vdwg.mxu0
      %2156 = vmatpush.bf16.msra.mxu0 %v1790
      %2157 = vmatpush.bf16.msra.mxu0 %v1786
      %2158 = vmatpush.bf16.msra.mxu0 %v1782
      %2159 = vmatpush.bf16.msra.mxu0 %v1778
      %2160 = vmatpush.bf16.msra.mxu0 %v1774
      %2161 = vmatpush.bf16.msra.mxu0 %v1770
      %2162 = vmatpush.bf16.msra.mxu0 %v1766
      %2163 = vmatpush.bf16.msra.mxu0 %v1762
      %2164 = vmatmul.bf16.gmra.mxu0 %v1892
      %v2165 = vpop.f32.mrf.mxu0
      %v2166 = vadd.f32 %v2153, %v2165
      %v2167 = vpop.f32.mrf.mxu0
      %2168 = vdwg.mxu0
      %2169 = vmatpush.bf16.msra.mxu0 %v1822
      %2170 = vmatpush.bf16.msra.mxu0 %v1818
      %2171 = vmatpush.bf16.msra.mxu0 %v1814
      %2172 = vmatpush.bf16.msra.mxu0 %v1810
      %2173 = vmatpush.bf16.msra.mxu0 %v1806
      %2174 = vmatpush.bf16.msra.mxu0 %v1802
      %2175 = vmatpush.bf16.msra.mxu0 %v1798
      %2176 = vmatpush.bf16.msra.mxu0 %v1794
      %2177 = vmatmul.bf16.gmra.mxu0 %v1893
      %v2178 = vpop.f32.mrf.mxu0
      %v2179 = vadd.f32 %v2166, %v2178
      %v2180 = vpop.f32.mrf.mxu0
      %2181 = vdwg.mxu0
      %2182 = vmatpush.bf16.msra.mxu0 %v1854
      %2183 = vmatpush.bf16.msra.mxu0 %v1850
      %2184 = vmatpush.bf16.msra.mxu0 %v1846
      %2185 = vmatpush.bf16.msra.mxu0 %v1842
      %2186 = vmatpush.bf16.msra.mxu0 %v1838
      %2187 = vmatpush.bf16.msra.mxu0 %v1834
      %2188 = vmatpush.bf16.msra.mxu0 %v1830
      %2189 = vmatpush.bf16.msra.mxu0 %v1826
      %2190 = vmatmul.bf16.gmra.mxu0 %v1894
      %v2191 = vpop.f32.mrf.mxu0
      %v2192 = vadd.f32 %v2179, %v2191
      %v2193 = vpop.f32.mrf.mxu0
      %2194 = vdwg.mxu0
      %2195 = vmatpush.bf16.msra.mxu0 %v1886
      %2196 = vmatpush.bf16.msra.mxu0 %v1882
      %2197 = vmatpush.bf16.msra.mxu0 %v1878
      %2198 = vmatpush.bf16.msra.mxu0 %v1874
      %2199 = vmatpush.bf16.msra.mxu0 %v1870
      %2200 = vmatpush.bf16.msra.mxu0 %v1866
      %2201 = vmatpush.bf16.msra.mxu0 %v1862
      %2202 = vmatpush.bf16.msra.mxu0 %v1858
      %2203 = vmatmul.bf16.gmra.mxu0 %v1895
      %v2204 = vpop.f32.mrf.mxu0
      %v2205 = vadd.f32 %v2192, %v2204
      %v2206 = vpop.f32.mrf.mxu0
      %2207 = vdwg.mxu0
      %2208 = vmatpush.bf16.msra.mxu0 %v1663
      %2209 = vmatpush.bf16.msra.mxu0 %v1659
      %2210 = vmatpush.bf16.msra.mxu0 %v1655
      %2211 = vmatpush.bf16.msra.mxu0 %v1651
      %2212 = vmatpush.bf16.msra.mxu0 %v1647
      %2213 = vmatpush.bf16.msra.mxu0 %v1643
      %2214 = vmatpush.bf16.msra.mxu0 %v1639
      %2215 = vmatpush.bf16.msra.mxu0 %v1635
      %2216 = vmatmul.bf16.gmra.mxu0 %v1888
      %v2217 = vpop.f32.mrf.mxu0
      %v2218 = vadd.f32 0.0, %v2217
      %v2219 = vpop.f32.mrf.mxu0
      %2220 = vdwg.mxu0
      %2221 = vmatpush.bf16.msra.mxu0 %v1695
      %2222 = vmatpush.bf16.msra.mxu0 %v1691
      %2223 = vmatpush.bf16.msra.mxu0 %v1687
      %2224 = vmatpush.bf16.msra.mxu0 %v1683
      %2225 = vmatpush.bf16.msra.mxu0 %v1679
      %2226 = vmatpush.bf16.msra.mxu0 %v1675
      %2227 = vmatpush.bf16.msra.mxu0 %v1671
      %2228 = vmatpush.bf16.msra.mxu0 %v1667
      %2229 = vmatmul.bf16.gmra.mxu0 %v1889
      %v2230 = vpop.f32.mrf.mxu0
      %v2231 = vadd.f32 %v2218, %v2230
      %v2232 = vpop.f32.mrf.mxu0
      %2233 = vdwg.mxu0
      %2234 = vmatpush.bf16.msra.mxu0 %v1727
      %2235 = vmatpush.bf16.msra.mxu0 %v1723
      %2236 = vmatpush.bf16.msra.mxu0 %v1719
      %2237 = vmatpush.bf16.msra.mxu0 %v1715
      %2238 = vmatpush.bf16.msra.mxu0 %v1711
      %2239 = vmatpush.bf16.msra.mxu0 %v1707
      %2240 = vmatpush.bf16.msra.mxu0 %v1703
      %2241 = vmatpush.bf16.msra.mxu0 %v1699
      %2242 = vmatmul.bf16.gmra.mxu0 %v1890
      %v2243 = vpop.f32.mrf.mxu0
      %v2244 = vadd.f32 %v2231, %v2243
      %v2245 = vpop.f32.mrf.mxu0
      %2246 = vdwg.mxu0
      %2247 = vmatpush.bf16.msra.mxu0 %v1759
      %2248 = vmatpush.bf16.msra.mxu0 %v1755
      %2249 = vmatpush.bf16.msra.mxu0 %v1751
      %2250 = vmatpush.bf16.msra.mxu0 %v1747
      %2251 = vmatpush.bf16.msra.mxu0 %v1743
      %2252 = vmatpush.bf16.msra.mxu0 %v1739
      %2253 = vmatpush.bf16.msra.mxu0 %v1735
      %2254 = vmatpush.bf16.msra.mxu0 %v1731
      %2255 = vmatmul.bf16.gmra.mxu0 %v1891
      %v2256 = vpop.f32.mrf.mxu0
      %v2257 = vadd.f32 %v2244, %v2256
      %v2258 = vpop.f32.mrf.mxu0
      %2259 = vdwg.mxu0
      %2260 = vmatpush.bf16.msra.mxu0 %v1791
      %2261 = vmatpush.bf16.msra.mxu0 %v1787
      %2262 = vmatpush.bf16.msra.mxu0 %v1783
      %2263 = vmatpush.bf16.msra.mxu0 %v1779
      %2264 = vmatpush.bf16.msra.mxu0 %v1775
      %2265 = vmatpush.bf16.msra.mxu0 %v1771
      %2266 = vmatpush.bf16.msra.mxu0 %v1767
      %2267 = vmatpush.bf16.msra.mxu0 %v1763
      %2268 = vmatmul.bf16.gmra.mxu0 %v1892
      %v2269 = vpop.f32.mrf.mxu0
      %v2270 = vadd.f32 %v2257, %v2269
      %v2271 = vpop.f32.mrf.mxu0
      %2272 = vdwg.mxu0
      %2273 = vmatpush.bf16.msra.mxu0 %v1823
      %2274 = vmatpush.bf16.msra.mxu0 %v1819
      %2275 = vmatpush.bf16.msra.mxu0 %v1815
      %2276 = vmatpush.bf16.msra.mxu0 %v1811
      %2277 = vmatpush.bf16.msra.mxu0 %v1807
      %2278 = vmatpush.bf16.msra.mxu0 %v1803
      %2279 = vmatpush.bf16.msra.mxu0 %v1799
      %2280 = vmatpush.bf16.msra.mxu0 %v1795
      %2281 = vmatmul.bf16.gmra.mxu0 %v1893
      %v2282 = vpop.f32.mrf.mxu0
      %v2283 = vadd.f32 %v2270, %v2282
      %v2284 = vpop.f32.mrf.mxu0
      %2285 = vdwg.mxu0
      %2286 = vmatpush.bf16.msra.mxu0 %v1855
      %2287 = vmatpush.bf16.msra.mxu0 %v1851
      %2288 = vmatpush.bf16.msra.mxu0 %v1847
      %2289 = vmatpush.bf16.msra.mxu0 %v1843
      %2290 = vmatpush.bf16.msra.mxu0 %v1839
      %2291 = vmatpush.bf16.msra.mxu0 %v1835
      %2292 = vmatpush.bf16.msra.mxu0 %v1831
      %2293 = vmatpush.bf16.msra.mxu0 %v1827
      %2294 = vmatmul.bf16.gmra.mxu0 %v1894
      %v2295 = vpop.f32.mrf.mxu0
      %v2296 = vadd.f32 %v2283, %v2295
      %v2297 = vpop.f32.mrf.mxu0
      %2298 = vdwg.mxu0
      %2299 = vmatpush.bf16.msra.mxu0 %v1887
      %2300 = vmatpush.bf16.msra.mxu0 %v1883
      %2301 = vmatpush.bf16.msra.mxu0 %v1879
      %2302 = vmatpush.bf16.msra.mxu0 %v1875
      %2303 = vmatpush.bf16.msra.mxu0 %v1871
      %2304 = vmatpush.bf16.msra.mxu0 %v1867
      %2305 = vmatpush.bf16.msra.mxu0 %v1863
      %2306 = vmatpush.bf16.msra.mxu0 %v1859
      %2307 = vmatmul.bf16.gmra.mxu0 %v1895
      %v2308 = vpop.f32.mrf.mxu0
      %v2309 = vadd.f32 %v2296, %v2308
      %v2310 = vpop.f32.mrf.mxu0
      %2311 = vdwg.mxu0
      %v2312 = vld [vmem:[#allocation11] sm:$0xf]
      %v2314 = vperm.slane %v2312, 0
      %v2315 = vperm.slane %v2312, 1
      %v2316 = vperm.slane %v2312, 2
      %v2317 = vperm.slane %v2312, 3
      %v2322 = vmul.f32 %v1997, %v2314
      %v2323 = vmul.f32 %v2101, %v2315
      %v2324 = vmul.f32 %v2205, %v2316
      %v2325 = vmul.f32 %v2309, %v2317
      %v2326 = vld [vmem:[%s5] sm:$0xf]
      %v2328 = vperm.slane %v2326, 0
      %v2329 = vperm.slane %v2326, 1
      %v2330 = vperm.slane %v2326, 2
      %v2331 = vperm.slane %v2326, 3
      %v2336 = vadd.f32 %v2322, %v2328
      %v2337 = vadd.f32 %v2323, %v2329
      %v2338 = vadd.f32 %v2324, %v2330
      %v2339 = vadd.f32 %v2325, %v2331
      %v2340 = vmax.f32 %v2336, 0.0
      %v2341 = vmax.f32 %v2337, 0.0
      %v2342 = vmax.f32 %v2338, 0.0
      %v2343 = vmax.f32 %v2339, 0.0
      %v2344 = vpack.c.bf16 %v2341, %v2340
      %v2345 = vpack.c.bf16 %v2343, %v2342
      %v2348 = vrot.slane %v2344, 3
      %v2349 = vrot.slane %v2345, 6
      %v2350 = vrot.slane %v2345, 1
      %vm2351 = vcmask 1040384
      %v2354 = vsel %vm2351, %v2344, %v2348
      %vm2355 = vcmask 1042434
      %v2358 = vsel %vm2355, %v2349, %v2350
      %vm2359 = vcmask 1041408
      %v2360 = vsel %vm2359, %v2354, %v2358
      %2362 = vst [vmem:[#allocation2] sm:$0xf] %v2360
    $region73: #{tpu_custom_call.1} parent=1 // pred_fallthru
      _
    %v2363 = vld [vmem:[#allocation12] sm:$0xff]
    %v2364 = vld [vmem:[#allocation12 + $0x8] sm:$0xff]
    %v2365 = vld [vmem:[#allocation12 + $0x10] sm:$0xff]
    %v2366 = vld [vmem:[#allocation12 + $0x18] sm:$0xff]
    %v2367 = vld [vmem:[#allocation12 + $0x20] sm:$0xff]
    %v2368 = vld [vmem:[#allocation12 + $0x28] sm:$0xff]
    %v2369 = vld [vmem:[#allocation12 + $0x30] sm:$0xff]
    %v2370 = vld [vmem:[#allocation12 + $0x38] sm:$0xff]
    %v2371 = vld [vmem:[#allocation12 + $0x40] sm:$0xff]
    %v2372 = vld [vmem:[#allocation12 + $0x48] sm:$0xff]
    %v2373 = vld [vmem:[#allocation12 + $0x50] sm:$0xff]
    %v2374 = vld [vmem:[#allocation12 + $0x58] sm:$0xff]
    %v2375 = vld [vmem:[#allocation12 + $0x60] sm:$0xff]
    %v2376 = vld [vmem:[#allocation12 + $0x68] sm:$0xff]
    %v2377 = vld [vmem:[#allocation12 + $0x70] sm:$0xff]
    %v2378 = vld [vmem:[#allocation12 + $0x78] sm:$0xff]
    %v2379 = vld [vmem:[#allocation12 + $0x80] sm:$0xff]
    %v2380 = vld [vmem:[#allocation12 + $0x88] sm:$0xff]
    %v2381 = vld [vmem:[#allocation12 + $0x90] sm:$0xff]
    %v2382 = vld [vmem:[#allocation12 + $0x98] sm:$0xff]
    %v2383 = vld [vmem:[#allocation12 + $0xa0] sm:$0xff]
    %v2384 = vld [vmem:[#allocation12 + $0xa8] sm:$0xff]
    %v2385 = vld [vmem:[#allocation12 + $0xb0] sm:$0xff]
    %v2386 = vld [vmem:[#allocation12 + $0xb8] sm:$0xff]
    %v2387 = vld [vmem:[#allocation12 + $0xc0] sm:$0xff]
    %v2388 = vld [vmem:[#allocation12 + $0xc8] sm:$0xff]
    %v2389 = vld [vmem:[#allocation12 + $0xd0] sm:$0xff]
    %v2390 = vld [vmem:[#allocation12 + $0xd8] sm:$0xff]
    %v2391 = vld [vmem:[#allocation12 + $0xe0] sm:$0xff]
    %v2392 = vld [vmem:[#allocation12 + $0xe8] sm:$0xff]
    %v2393 = vld [vmem:[#allocation12 + $0xf0] sm:$0xff]
    %v2394 = vld [vmem:[#allocation12 + $0xf8] sm:$0xff]
    %v2395 = vld [vmem:[#allocation12 + $0x100] sm:$0xff]
    %v2396 = vld [vmem:[#allocation12 + $0x108] sm:$0xff]
    %v2397 = vld [vmem:[#allocation12 + $0x110] sm:$0xff]
    %v2398 = vld [vmem:[#allocation12 + $0x118] sm:$0xff]
    %v2399 = vld [vmem:[#allocation12 + $0x120] sm:$0xff]
    %v2400 = vld [vmem:[#allocation12 + $0x128] sm:$0xff]
    %v2401 = vld [vmem:[#allocation12 + $0x130] sm:$0xff]
    %v2402 = vld [vmem:[#allocation12 + $0x138] sm:$0xff]
    %v2403 = vld [vmem:[#allocation12 + $0x140] sm:$0xff]
    %v2404 = vld [vmem:[#allocation12 + $0x148] sm:$0xff]
    %v2405 = vld [vmem:[#allocation12 + $0x150] sm:$0xff]
    %v2406 = vld [vmem:[#allocation12 + $0x158] sm:$0xff]
    %v2407 = vld [vmem:[#allocation12 + $0x160] sm:$0xff]
    %v2408 = vld [vmem:[#allocation12 + $0x168] sm:$0xff]
    %v2409 = vld [vmem:[#allocation12 + $0x170] sm:$0xff]
    %v2410 = vld [vmem:[#allocation12 + $0x178] sm:$0xff]
    %v2411 = vld [vmem:[#allocation12 + $0x180] sm:$0xff]
    %v2412 = vld [vmem:[#allocation12 + $0x188] sm:$0xff]
    %v2413 = vld [vmem:[#allocation12 + $0x190] sm:$0xff]
    %v2414 = vld [vmem:[#allocation12 + $0x198] sm:$0xff]
    %v2415 = vld [vmem:[#allocation12 + $0x1a0] sm:$0xff]
    %v2416 = vld [vmem:[#allocation12 + $0x1a8] sm:$0xff]
    %v2417 = vld [vmem:[#allocation12 + $0x1b0] sm:$0xff]
    %v2418 = vld [vmem:[#allocation12 + $0x1b8] sm:$0xff]
    %v2419 = vld [vmem:[#allocation12 + $0x1c0] sm:$0xff]
    %v2420 = vld [vmem:[#allocation12 + $0x1c8] sm:$0xff]
    %v2421 = vld [vmem:[#allocation12 + $0x1d0] sm:$0xff]
    %v2422 = vld [vmem:[#allocation12 + $0x1d8] sm:$0xff]
    %v2423 = vld [vmem:[#allocation12 + $0x1e0] sm:$0xff]
    %v2424 = vld [vmem:[#allocation12 + $0x1e8] sm:$0xff]
    %v2425 = vld [vmem:[#allocation12 + $0x1f0] sm:$0xff]
    %v2426 = vld [vmem:[#allocation12 + $0x1f8] sm:$0xff]
    %v2427 = vld [vmem:[#allocation12 + $0x200] sm:$0xff]
    %v2428 = vld [vmem:[#allocation12 + $0x208] sm:$0xff]
    %v2429 = vld [vmem:[#allocation12 + $0x210] sm:$0xff]
    %v2430 = vld [vmem:[#allocation12 + $0x218] sm:$0xff]
    %v2431 = vld [vmem:[#allocation12 + $0x220] sm:$0xff]
    %v2432 = vld [vmem:[#allocation12 + $0x228] sm:$0xff]
    %v2433 = vld [vmem:[#allocation12 + $0x230] sm:$0xff]
    %v2434 = vld [vmem:[#allocation12 + $0x238] sm:$0xff]
    %v2435 = vld [vmem:[#allocation12 + $0x240] sm:$0xff]
    %v2436 = vld [vmem:[#allocation12 + $0x248] sm:$0xff]
    %v2437 = vld [vmem:[#allocation12 + $0x250] sm:$0xff]
    %v2438 = vld [vmem:[#allocation12 + $0x258] sm:$0xff]
    %v2439 = vld [vmem:[#allocation12 + $0x260] sm:$0xff]
    %v2440 = vld [vmem:[#allocation12 + $0x268] sm:$0xff]
    %v2441 = vld [vmem:[#allocation12 + $0x270] sm:$0xff]
    %v2442 = vld [vmem:[#allocation12 + $0x278] sm:$0xff]
    %v2443 = vld [vmem:[#allocation12 + $0x280] sm:$0xff]
    %v2444 = vld [vmem:[#allocation12 + $0x288] sm:$0xff]
    %v2445 = vld [vmem:[#allocation12 + $0x290] sm:$0xff]
    %v2446 = vld [vmem:[#allocation12 + $0x298] sm:$0xff]
    %v2447 = vld [vmem:[#allocation12 + $0x2a0] sm:$0xff]
    %v2448 = vld [vmem:[#allocation12 + $0x2a8] sm:$0xff]
    %v2449 = vld [vmem:[#allocation12 + $0x2b0] sm:$0xff]
    %v2450 = vld [vmem:[#allocation12 + $0x2b8] sm:$0xff]
    %v2451 = vld [vmem:[#allocation12 + $0x2c0] sm:$0xff]
    %v2452 = vld [vmem:[#allocation12 + $0x2c8] sm:$0xff]
    %v2453 = vld [vmem:[#allocation12 + $0x2d0] sm:$0xff]
    %v2454 = vld [vmem:[#allocation12 + $0x2d8] sm:$0xff]
    %v2455 = vld [vmem:[#allocation12 + $0x2e0] sm:$0xff]
    %v2456 = vld [vmem:[#allocation12 + $0x2e8] sm:$0xff]
    %v2457 = vld [vmem:[#allocation12 + $0x2f0] sm:$0xff]
    %v2458 = vld [vmem:[#allocation12 + $0x2f8] sm:$0xff]
    %v2459 = vld [vmem:[#allocation12 + $0x300] sm:$0xff]
    %v2460 = vld [vmem:[#allocation12 + $0x308] sm:$0xff]
    %v2461 = vld [vmem:[#allocation12 + $0x310] sm:$0xff]
    %v2462 = vld [vmem:[#allocation12 + $0x318] sm:$0xff]
    %v2463 = vld [vmem:[#allocation12 + $0x320] sm:$0xff]
    %v2464 = vld [vmem:[#allocation12 + $0x328] sm:$0xff]
    %v2465 = vld [vmem:[#allocation12 + $0x330] sm:$0xff]
    %v2466 = vld [vmem:[#allocation12 + $0x338] sm:$0xff]
    %v2467 = vld [vmem:[#allocation12 + $0x340] sm:$0xff]
    %v2468 = vld [vmem:[#allocation12 + $0x348] sm:$0xff]
    %v2469 = vld [vmem:[#allocation12 + $0x350] sm:$0xff]
    %v2470 = vld [vmem:[#allocation12 + $0x358] sm:$0xff]
    %v2471 = vld [vmem:[#allocation12 + $0x360] sm:$0xff]
    %v2472 = vld [vmem:[#allocation12 + $0x368] sm:$0xff]
    %v2473 = vld [vmem:[#allocation12 + $0x370] sm:$0xff]
    %v2474 = vld [vmem:[#allocation12 + $0x378] sm:$0xff]
    %v2475 = vld [vmem:[#allocation12 + $0x380] sm:$0xff]
    %v2476 = vld [vmem:[#allocation12 + $0x388] sm:$0xff]
    %v2477 = vld [vmem:[#allocation12 + $0x390] sm:$0xff]
    %v2478 = vld [vmem:[#allocation12 + $0x398] sm:$0xff]
    %v2479 = vld [vmem:[#allocation12 + $0x3a0] sm:$0xff]
    %v2480 = vld [vmem:[#allocation12 + $0x3a8] sm:$0xff]
    %v2481 = vld [vmem:[#allocation12 + $0x3b0] sm:$0xff]
    %v2482 = vld [vmem:[#allocation12 + $0x3b8] sm:$0xff]
    %v2483 = vld [vmem:[#allocation12 + $0x3c0] sm:$0xff]
    %v2484 = vld [vmem:[#allocation12 + $0x3c8] sm:$0xff]
    %v2485 = vld [vmem:[#allocation12 + $0x3d0] sm:$0xff]
    %v2486 = vld [vmem:[#allocation12 + $0x3d8] sm:$0xff]
    %v2487 = vld [vmem:[#allocation12 + $0x3e0] sm:$0xff]
    %v2488 = vld [vmem:[#allocation12 + $0x3e8] sm:$0xff]
    %v2489 = vld [vmem:[#allocation12 + $0x3f0] sm:$0xff]
    %v2490 = vld [vmem:[#allocation12 + $0x3f8] sm:$0xff]
    %v2491 = vunpack.c.0.s8 %v2363
    %v2492 = vunpack.c.0.s8 %v2364
    %v2493 = vunpack.c.0.s8 %v2365
    %v2494 = vunpack.c.0.s8 %v2366
    %v2495 = vunpack.c.0.s8 %v2367
    %v2496 = vunpack.c.0.s8 %v2368
    %v2497 = vunpack.c.0.s8 %v2369
    %v2498 = vunpack.c.0.s8 %v2370
    %v2499 = vunpack.c.1.s8 %v2363
    %v2500 = vunpack.c.1.s8 %v2364
    %v2501 = vunpack.c.1.s8 %v2365
    %v2502 = vunpack.c.1.s8 %v2366
    %v2503 = vunpack.c.1.s8 %v2367
    %v2504 = vunpack.c.1.s8 %v2368
    %v2505 = vunpack.c.1.s8 %v2369
    %v2506 = vunpack.c.1.s8 %v2370
    %v2507 = vunpack.c.2.s8 %v2363
    %v2508 = vunpack.c.2.s8 %v2364
    %v2509 = vunpack.c.2.s8 %v2365
    %v2510 = vunpack.c.2.s8 %v2366
    %v2511 = vunpack.c.2.s8 %v2367
    %v2512 = vunpack.c.2.s8 %v2368
    %v2513 = vunpack.c.2.s8 %v2369
    %v2514 = vunpack.c.2.s8 %v2370
    %v2515 = vunpack.c.3.s8 %v2363
    %v2516 = vunpack.c.3.s8 %v2364
    %v2517 = vunpack.c.3.s8 %v2365
    %v2518 = vunpack.c.3.s8 %v2366
    %v2519 = vunpack.c.3.s8 %v2367
    %v2520 = vunpack.c.3.s8 %v2368
    %v2521 = vunpack.c.3.s8 %v2369
    %v2522 = vunpack.c.3.s8 %v2370
    %v2523 = vunpack.c.0.s8 %v2371
    %v2524 = vunpack.c.0.s8 %v2372
    %v2525 = vunpack.c.0.s8 %v2373
    %v2526 = vunpack.c.0.s8 %v2374
    %v2527 = vunpack.c.0.s8 %v2375
    %v2528 = vunpack.c.0.s8 %v2376
    %v2529 = vunpack.c.0.s8 %v2377
    %v2530 = vunpack.c.0.s8 %v2378
    %v2531 = vunpack.c.1.s8 %v2371
    %v2532 = vunpack.c.1.s8 %v2372
    %v2533 = vunpack.c.1.s8 %v2373
    %v2534 = vunpack.c.1.s8 %v2374
    %v2535 = vunpack.c.1.s8 %v2375
    %v2536 = vunpack.c.1.s8 %v2376
    %v2537 = vunpack.c.1.s8 %v2377
    %v2538 = vunpack.c.1.s8 %v2378
    %v2539 = vunpack.c.2.s8 %v2371
    %v2540 = vunpack.c.2.s8 %v2372
    %v2541 = vunpack.c.2.s8 %v2373
    %v2542 = vunpack.c.2.s8 %v2374
    %v2543 = vunpack.c.2.s8 %v2375
    %v2544 = vunpack.c.2.s8 %v2376
    %v2545 = vunpack.c.2.s8 %v2377
    %v2546 = vunpack.c.2.s8 %v2378
    %v2547 = vunpack.c.3.s8 %v2371
    %v2548 = vunpack.c.3.s8 %v2372
    %v2549 = vunpack.c.3.s8 %v2373
    %v2550 = vunpack.c.3.s8 %v2374
    %v2551 = vunpack.c.3.s8 %v2375
    %v2552 = vunpack.c.3.s8 %v2376
    %v2553 = vunpack.c.3.s8 %v2377
    %v2554 = vunpack.c.3.s8 %v2378
    %v2555 = vunpack.c.0.s8 %v2379
    %v2556 = vunpack.c.0.s8 %v2380
    %v2557 = vunpack.c.0.s8 %v2381
    %v2558 = vunpack.c.0.s8 %v2382
    %v2559 = vunpack.c.0.s8 %v2383
    %v2560 = vunpack.c.0.s8 %v2384
    %v2561 = vunpack.c.0.s8 %v2385
    %v2562 = vunpack.c.0.s8 %v2386
    %v2563 = vunpack.c.1.s8 %v2379
    %v2564 = vunpack.c.1.s8 %v2380
    %v2565 = vunpack.c.1.s8 %v2381
    %v2566 = vunpack.c.1.s8 %v2382
    %v2567 = vunpack.c.1.s8 %v2383
    %v2568 = vunpack.c.1.s8 %v2384
    %v2569 = vunpack.c.1.s8 %v2385
    %v2570 = vunpack.c.1.s8 %v2386
    %v2571 = vunpack.c.2.s8 %v2379
    %v2572 = vunpack.c.2.s8 %v2380
    %v2573 = vunpack.c.2.s8 %v2381
    %v2574 = vunpack.c.2.s8 %v2382
    %v2575 = vunpack.c.2.s8 %v2383
    %v2576 = vunpack.c.2.s8 %v2384
    %v2577 = vunpack.c.2.s8 %v2385
    %v2578 = vunpack.c.2.s8 %v2386
    %v2579 = vunpack.c.3.s8 %v2379
    %v2580 = vunpack.c.3.s8 %v2380
    %v2581 = vunpack.c.3.s8 %v2381
    %v2582 = vunpack.c.3.s8 %v2382
    %v2583 = vunpack.c.3.s8 %v2383
    %v2584 = vunpack.c.3.s8 %v2384
    %v2585 = vunpack.c.3.s8 %v2385
    %v2586 = vunpack.c.3.s8 %v2386
    %v2587 = vunpack.c.0.s8 %v2387
    %v2588 = vunpack.c.0.s8 %v2388
    %v2589 = vunpack.c.0.s8 %v2389
    %v2590 = vunpack.c.0.s8 %v2390
    %v2591 = vunpack.c.0.s8 %v2391
    %v2592 = vunpack.c.0.s8 %v2392
    %v2593 = vunpack.c.0.s8 %v2393
    %v2594 = vunpack.c.0.s8 %v2394
    %v2595 = vunpack.c.1.s8 %v2387
    %v2596 = vunpack.c.1.s8 %v2388
    %v2597 = vunpack.c.1.s8 %v2389
    %v2598 = vunpack.c.1.s8 %v2390
    %v2599 = vunpack.c.1.s8 %v2391
    %v2600 = vunpack.c.1.s8 %v2392
    %v2601 = vunpack.c.1.s8 %v2393
    %v2602 = vunpack.c.1.s8 %v2394
    %v2603 = vunpack.c.2.s8 %v2387
    %v2604 = vunpack.c.2.s8 %v2388
    %v2605 = vunpack.c.2.s8 %v2389
    %v2606 = vunpack.c.2.s8 %v2390
    %v2607 = vunpack.c.2.s8 %v2391
    %v2608 = vunpack.c.2.s8 %v2392
    %v2609 = vunpack.c.2.s8 %v2393
    %v2610 = vunpack.c.2.s8 %v2394
    %v2611 = vunpack.c.3.s8 %v2387
    %v2612 = vunpack.c.3.s8 %v2388
    %v2613 = vunpack.c.3.s8 %v2389
    %v2614 = vunpack.c.3.s8 %v2390
    %v2615 = vunpack.c.3.s8 %v2391
    %v2616 = vunpack.c.3.s8 %v2392
    %v2617 = vunpack.c.3.s8 %v2393
    %v2618 = vunpack.c.3.s8 %v2394
    %v2619 = vunpack.c.0.s8 %v2395
    %v2620 = vunpack.c.0.s8 %v2396
    %v2621 = vunpack.c.0.s8 %v2397
    %v2622 = vunpack.c.0.s8 %v2398
    %v2623 = vunpack.c.0.s8 %v2399
    %v2624 = vunpack.c.0.s8 %v2400
    %v2625 = vunpack.c.0.s8 %v2401
    %v2626 = vunpack.c.0.s8 %v2402
    %v2627 = vunpack.c.1.s8 %v2395
    %v2628 = vunpack.c.1.s8 %v2396
    %v2629 = vunpack.c.1.s8 %v2397
    %v2630 = vunpack.c.1.s8 %v2398
    %v2631 = vunpack.c.1.s8 %v2399
    %v2632 = vunpack.c.1.s8 %v2400
    %v2633 = vunpack.c.1.s8 %v2401
    %v2634 = vunpack.c.1.s8 %v2402
    %v2635 = vunpack.c.2.s8 %v2395
    %v2636 = vunpack.c.2.s8 %v2396
    %v2637 = vunpack.c.2.s8 %v2397
    %v2638 = vunpack.c.2.s8 %v2398
    %v2639 = vunpack.c.2.s8 %v2399
    %v2640 = vunpack.c.2.s8 %v2400
    %v2641 = vunpack.c.2.s8 %v2401
    %v2642 = vunpack.c.2.s8 %v2402
    %v2643 = vunpack.c.3.s8 %v2395
    %v2644 = vunpack.c.3.s8 %v2396
    %v2645 = vunpack.c.3.s8 %v2397
    %v2646 = vunpack.c.3.s8 %v2398
    %v2647 = vunpack.c.3.s8 %v2399
    %v2648 = vunpack.c.3.s8 %v2400
    %v2649 = vunpack.c.3.s8 %v2401
    %v2650 = vunpack.c.3.s8 %v2402
    %v2651 = vunpack.c.0.s8 %v2403
    %v2652 = vunpack.c.0.s8 %v2404
    %v2653 = vunpack.c.0.s8 %v2405
    %v2654 = vunpack.c.0.s8 %v2406
    %v2655 = vunpack.c.0.s8 %v2407
    %v2656 = vunpack.c.0.s8 %v2408
    %v2657 = vunpack.c.0.s8 %v2409
    %v2658 = vunpack.c.0.s8 %v2410
    %v2659 = vunpack.c.1.s8 %v2403
    %v2660 = vunpack.c.1.s8 %v2404
    %v2661 = vunpack.c.1.s8 %v2405
    %v2662 = vunpack.c.1.s8 %v2406
    %v2663 = vunpack.c.1.s8 %v2407
    %v2664 = vunpack.c.1.s8 %v2408
    %v2665 = vunpack.c.1.s8 %v2409
    %v2666 = vunpack.c.1.s8 %v2410
    %v2667 = vunpack.c.2.s8 %v2403
    %v2668 = vunpack.c.2.s8 %v2404
    %v2669 = vunpack.c.2.s8 %v2405
    %v2670 = vunpack.c.2.s8 %v2406
    %v2671 = vunpack.c.2.s8 %v2407
    %v2672 = vunpack.c.2.s8 %v2408
    %v2673 = vunpack.c.2.s8 %v2409
    %v2674 = vunpack.c.2.s8 %v2410
    %v2675 = vunpack.c.3.s8 %v2403
    %v2676 = vunpack.c.3.s8 %v2404
    %v2677 = vunpack.c.3.s8 %v2405
    %v2678 = vunpack.c.3.s8 %v2406
    %v2679 = vunpack.c.3.s8 %v2407
    %v2680 = vunpack.c.3.s8 %v2408
    %v2681 = vunpack.c.3.s8 %v2409
    %v2682 = vunpack.c.3.s8 %v2410
    %v2683 = vunpack.c.0.s8 %v2411
    %v2684 = vunpack.c.0.s8 %v2412
    %v2685 = vunpack.c.0.s8 %v2413
    %v2686 = vunpack.c.0.s8 %v2414
    %v2687 = vunpack.c.0.s8 %v2415
    %v2688 = vunpack.c.0.s8 %v2416
    %v2689 = vunpack.c.0.s8 %v2417
    %v2690 = vunpack.c.0.s8 %v2418
    %v2691 = vunpack.c.1.s8 %v2411
    %v2692 = vunpack.c.1.s8 %v2412
    %v2693 = vunpack.c.1.s8 %v2413
    %v2694 = vunpack.c.1.s8 %v2414
    %v2695 = vunpack.c.1.s8 %v2415
    %v2696 = vunpack.c.1.s8 %v2416
    %v2697 = vunpack.c.1.s8 %v2417
    %v2698 = vunpack.c.1.s8 %v2418
    %v2699 = vunpack.c.2.s8 %v2411
    %v2700 = vunpack.c.2.s8 %v2412
    %v2701 = vunpack.c.2.s8 %v2413
    %v2702 = vunpack.c.2.s8 %v2414
    %v2703 = vunpack.c.2.s8 %v2415
    %v2704 = vunpack.c.2.s8 %v2416
    %v2705 = vunpack.c.2.s8 %v2417
    %v2706 = vunpack.c.2.s8 %v2418
    %v2707 = vunpack.c.3.s8 %v2411
    %v2708 = vunpack.c.3.s8 %v2412
    %v2709 = vunpack.c.3.s8 %v2413
    %v2710 = vunpack.c.3.s8 %v2414
    %v2711 = vunpack.c.3.s8 %v2415
    %v2712 = vunpack.c.3.s8 %v2416
    %v2713 = vunpack.c.3.s8 %v2417
    %v2714 = vunpack.c.3.s8 %v2418
    %v2715 = vunpack.c.0.s8 %v2419
    %v2716 = vunpack.c.0.s8 %v2420
    %v2717 = vunpack.c.0.s8 %v2421
    %v2718 = vunpack.c.0.s8 %v2422
    %v2719 = vunpack.c.0.s8 %v2423
    %v2720 = vunpack.c.0.s8 %v2424
    %v2721 = vunpack.c.0.s8 %v2425
    %v2722 = vunpack.c.0.s8 %v2426
    %v2723 = vunpack.c.1.s8 %v2419
    %v2724 = vunpack.c.1.s8 %v2420
    %v2725 = vunpack.c.1.s8 %v2421
    %v2726 = vunpack.c.1.s8 %v2422
    %v2727 = vunpack.c.1.s8 %v2423
    %v2728 = vunpack.c.1.s8 %v2424
    %v2729 = vunpack.c.1.s8 %v2425
    %v2730 = vunpack.c.1.s8 %v2426
    %v2731 = vunpack.c.2.s8 %v2419
    %v2732 = vunpack.c.2.s8 %v2420
    %v2733 = vunpack.c.2.s8 %v2421
    %v2734 = vunpack.c.2.s8 %v2422
    %v2735 = vunpack.c.2.s8 %v2423
    %v2736 = vunpack.c.2.s8 %v2424
    %v2737 = vunpack.c.2.s8 %v2425
    %v2738 = vunpack.c.2.s8 %v2426
    %v2739 = vunpack.c.3.s8 %v2419
    %v2740 = vunpack.c.3.s8 %v2420
    %v2741 = vunpack.c.3.s8 %v2421
    %v2742 = vunpack.c.3.s8 %v2422
    %v2743 = vunpack.c.3.s8 %v2423
    %v2744 = vunpack.c.3.s8 %v2424
    %v2745 = vunpack.c.3.s8 %v2425
    %v2746 = vunpack.c.3.s8 %v2426
    %v2747 = vunpack.c.0.s8 %v2427
    %v2748 = vunpack.c.0.s8 %v2428
    %v2749 = vunpack.c.0.s8 %v2429
    %v2750 = vunpack.c.0.s8 %v2430
    %v2751 = vunpack.c.0.s8 %v2431
    %v2752 = vunpack.c.0.s8 %v2432
    %v2753 = vunpack.c.0.s8 %v2433
    %v2754 = vunpack.c.0.s8 %v2434
    %v2755 = vunpack.c.1.s8 %v2427
    %v2756 = vunpack.c.1.s8 %v2428
    %v2757 = vunpack.c.1.s8 %v2429
    %v2758 = vunpack.c.1.s8 %v2430
    %v2759 = vunpack.c.1.s8 %v2431
    %v2760 = vunpack.c.1.s8 %v2432
    %v2761 = vunpack.c.1.s8 %v2433
    %v2762 = vunpack.c.1.s8 %v2434
    %v2763 = vunpack.c.2.s8 %v2427
    %v2764 = vunpack.c.2.s8 %v2428
    %v2765 = vunpack.c.2.s8 %v2429
    %v2766 = vunpack.c.2.s8 %v2430
    %v2767 = vunpack.c.2.s8 %v2431
    %v2768 = vunpack.c.2.s8 %v2432
    %v2769 = vunpack.c.2.s8 %v2433
    %v2770 = vunpack.c.2.s8 %v2434
    %v2771 = vunpack.c.3.s8 %v2427
    %v2772 = vunpack.c.3.s8 %v2428
    %v2773 = vunpack.c.3.s8 %v2429
    %v2774 = vunpack.c.3.s8 %v2430
    %v2775 = vunpack.c.3.s8 %v2431
    %v2776 = vunpack.c.3.s8 %v2432
    %v2777 = vunpack.c.3.s8 %v2433
    %v2778 = vunpack.c.3.s8 %v2434
    %v2779 = vunpack.c.0.s8 %v2435
    %v2780 = vunpack.c.0.s8 %v2436
    %v2781 = vunpack.c.0.s8 %v2437
    %v2782 = vunpack.c.0.s8 %v2438
    %v2783 = vunpack.c.0.s8 %v2439
    %v2784 = vunpack.c.0.s8 %v2440
    %v2785 = vunpack.c.0.s8 %v2441
    %v2786 = vunpack.c.0.s8 %v2442
    %v2787 = vunpack.c.1.s8 %v2435
    %v2788 = vunpack.c.1.s8 %v2436
    %v2789 = vunpack.c.1.s8 %v2437
    %v2790 = vunpack.c.1.s8 %v2438
    %v2791 = vunpack.c.1.s8 %v2439
    %v2792 = vunpack.c.1.s8 %v2440
    %v2793 = vunpack.c.1.s8 %v2441
    %v2794 = vunpack.c.1.s8 %v2442
    %v2795 = vunpack.c.2.s8 %v2435
    %v2796 = vunpack.c.2.s8 %v2436
    %v2797 = vunpack.c.2.s8 %v2437
    %v2798 = vunpack.c.2.s8 %v2438
    %v2799 = vunpack.c.2.s8 %v2439
    %v2800 = vunpack.c.2.s8 %v2440
    %v2801 = vunpack.c.2.s8 %v2441
    %v2802 = vunpack.c.2.s8 %v2442
    %v2803 = vunpack.c.3.s8 %v2435
    %v2804 = vunpack.c.3.s8 %v2436
    %v2805 = vunpack.c.3.s8 %v2437
    %v2806 = vunpack.c.3.s8 %v2438
    %v2807 = vunpack.c.3.s8 %v2439
    %v2808 = vunpack.c.3.s8 %v2440
    %v2809 = vunpack.c.3.s8 %v2441
    %v2810 = vunpack.c.3.s8 %v2442
    %v2811 = vunpack.c.0.s8 %v2443
    %v2812 = vunpack.c.0.s8 %v2444
    %v2813 = vunpack.c.0.s8 %v2445
    %v2814 = vunpack.c.0.s8 %v2446
    %v2815 = vunpack.c.0.s8 %v2447
    %v2816 = vunpack.c.0.s8 %v2448
    %v2817 = vunpack.c.0.s8 %v2449
    %v2818 = vunpack.c.0.s8 %v2450
    %v2819 = vunpack.c.1.s8 %v2443
    %v2820 = vunpack.c.1.s8 %v2444
    %v2821 = vunpack.c.1.s8 %v2445
    %v2822 = vunpack.c.1.s8 %v2446
    %v2823 = vunpack.c.1.s8 %v2447
    %v2824 = vunpack.c.1.s8 %v2448
    %v2825 = vunpack.c.1.s8 %v2449
    %v2826 = vunpack.c.1.s8 %v2450
    %v2827 = vunpack.c.2.s8 %v2443
    %v2828 = vunpack.c.2.s8 %v2444
    %v2829 = vunpack.c.2.s8 %v2445
    %v2830 = vunpack.c.2.s8 %v2446
    %v2831 = vunpack.c.2.s8 %v2447
    %v2832 = vunpack.c.2.s8 %v2448
    %v2833 = vunpack.c.2.s8 %v2449
    %v2834 = vunpack.c.2.s8 %v2450
    %v2835 = vunpack.c.3.s8 %v2443
    %v2836 = vunpack.c.3.s8 %v2444
    %v2837 = vunpack.c.3.s8 %v2445
    %v2838 = vunpack.c.3.s8 %v2446
    %v2839 = vunpack.c.3.s8 %v2447
    %v2840 = vunpack.c.3.s8 %v2448
    %v2841 = vunpack.c.3.s8 %v2449
    %v2842 = vunpack.c.3.s8 %v2450
    %v2843 = vunpack.c.0.s8 %v2451
    %v2844 = vunpack.c.0.s8 %v2452
    %v2845 = vunpack.c.0.s8 %v2453
    %v2846 = vunpack.c.0.s8 %v2454
    %v2847 = vunpack.c.0.s8 %v2455
    %v2848 = vunpack.c.0.s8 %v2456
    %v2849 = vunpack.c.0.s8 %v2457
    %v2850 = vunpack.c.0.s8 %v2458
    %v2851 = vunpack.c.1.s8 %v2451
    %v2852 = vunpack.c.1.s8 %v2452
    %v2853 = vunpack.c.1.s8 %v2453
    %v2854 = vunpack.c.1.s8 %v2454
    %v2855 = vunpack.c.1.s8 %v2455
    %v2856 = vunpack.c.1.s8 %v2456
    %v2857 = vunpack.c.1.s8 %v2457
    %v2858 = vunpack.c.1.s8 %v2458
    %v2859 = vunpack.c.2.s8 %v2451
    %v2860 = vunpack.c.2.s8 %v2452
    %v2861 = vunpack.c.2.s8 %v2453
    %v2862 = vunpack.c.2.s8 %v2454
    %v2863 = vunpack.c.2.s8 %v2455
    %v2864 = vunpack.c.2.s8 %v2456
    %v2865 = vunpack.c.2.s8 %v2457
    %v2866 = vunpack.c.2.s8 %v2458
    %v2867 = vunpack.c.3.s8 %v2451
    %v2868 = vunpack.c.3.s8 %v2452
    %v2869 = vunpack.c.3.s8 %v2453
    %v2870 = vunpack.c.3.s8 %v2454
    %v2871 = vunpack.c.3.s8 %v2455
    %v2872 = vunpack.c.3.s8 %v2456
    %v2873 = vunpack.c.3.s8 %v2457
    %v2874 = vunpack.c.3.s8 %v2458
    %v2875 = vunpack.c.0.s8 %v2459
    %v2876 = vunpack.c.0.s8 %v2460
    %v2877 = vunpack.c.0.s8 %v2461
    %v2878 = vunpack.c.0.s8 %v2462
    %v2879 = vunpack.c.0.s8 %v2463
    %v2880 = vunpack.c.0.s8 %v2464
    %v2881 = vunpack.c.0.s8 %v2465
    %v2882 = vunpack.c.0.s8 %v2466
    %v2883 = vunpack.c.1.s8 %v2459
    %v2884 = vunpack.c.1.s8 %v2460
    %v2885 = vunpack.c.1.s8 %v2461
    %v2886 = vunpack.c.1.s8 %v2462
    %v2887 = vunpack.c.1.s8 %v2463
    %v2888 = vunpack.c.1.s8 %v2464
    %v2889 = vunpack.c.1.s8 %v2465
    %v2890 = vunpack.c.1.s8 %v2466
    %v2891 = vunpack.c.2.s8 %v2459
    %v2892 = vunpack.c.2.s8 %v2460
    %v2893 = vunpack.c.2.s8 %v2461
    %v2894 = vunpack.c.2.s8 %v2462
    %v2895 = vunpack.c.2.s8 %v2463
    %v2896 = vunpack.c.2.s8 %v2464
    %v2897 = vunpack.c.2.s8 %v2465
    %v2898 = vunpack.c.2.s8 %v2466
    %v2899 = vunpack.c.3.s8 %v2459
    %v2900 = vunpack.c.3.s8 %v2460
    %v2901 = vunpack.c.3.s8 %v2461
    %v2902 = vunpack.c.3.s8 %v2462
    %v2903 = vunpack.c.3.s8 %v2463
    %v2904 = vunpack.c.3.s8 %v2464
    %v2905 = vunpack.c.3.s8 %v2465
    %v2906 = vunpack.c.3.s8 %v2466
    %v2907 = vunpack.c.0.s8 %v2467
    %v2908 = vunpack.c.0.s8 %v2468
    %v2909 = vunpack.c.0.s8 %v2469
    %v2910 = vunpack.c.0.s8 %v2470
    %v2911 = vunpack.c.0.s8 %v2471
    %v2912 = vunpack.c.0.s8 %v2472
    %v2913 = vunpack.c.0.s8 %v2473
    %v2914 = vunpack.c.0.s8 %v2474
    %v2915 = vunpack.c.1.s8 %v2467
    %v2916 = vunpack.c.1.s8 %v2468
    %v2917 = vunpack.c.1.s8 %v2469
    %v2918 = vunpack.c.1.s8 %v2470
    %v2919 = vunpack.c.1.s8 %v2471
    %v2920 = vunpack.c.1.s8 %v2472
    %v2921 = vunpack.c.1.s8 %v2473
    %v2922 = vunpack.c.1.s8 %v2474
    %v2923 = vunpack.c.2.s8 %v2467
    %v2924 = vunpack.c.2.s8 %v2468
    %v2925 = vunpack.c.2.s8 %v2469
    %v2926 = vunpack.c.2.s8 %v2470
    %v2927 = vunpack.c.2.s8 %v2471
    %v2928 = vunpack.c.2.s8 %v2472
    %v2929 = vunpack.c.2.s8 %v2473
    %v2930 = vunpack.c.2.s8 %v2474
    %v2931 = vunpack.c.3.s8 %v2467
    %v2932 = vunpack.c.3.s8 %v2468
    %v2933 = vunpack.c.3.s8 %v2469
    %v2934 = vunpack.c.3.s8 %v2470
    %v2935 = vunpack.c.3.s8 %v2471
    %v2936 = vunpack.c.3.s8 %v2472
    %v2937 = vunpack.c.3.s8 %v2473
    %v2938 = vunpack.c.3.s8 %v2474
    %v2939 = vunpack.c.0.s8 %v2475
    %v2940 = vunpack.c.0.s8 %v2476
    %v2941 = vunpack.c.0.s8 %v2477
    %v2942 = vunpack.c.0.s8 %v2478
    %v2943 = vunpack.c.0.s8 %v2479
    %v2944 = vunpack.c.0.s8 %v2480
    %v2945 = vunpack.c.0.s8 %v2481
    %v2946 = vunpack.c.0.s8 %v2482
    %v2947 = vunpack.c.1.s8 %v2475
    %v2948 = vunpack.c.1.s8 %v2476
    %v2949 = vunpack.c.1.s8 %v2477
    %v2950 = vunpack.c.1.s8 %v2478
    %v2951 = vunpack.c.1.s8 %v2479
    %v2952 = vunpack.c.1.s8 %v2480
    %v2953 = vunpack.c.1.s8 %v2481
    %v2954 = vunpack.c.1.s8 %v2482
    %v2955 = vunpack.c.2.s8 %v2475
    %v2956 = vunpack.c.2.s8 %v2476
    %v2957 = vunpack.c.2.s8 %v2477
    %v2958 = vunpack.c.2.s8 %v2478
    %v2959 = vunpack.c.2.s8 %v2479
    %v2960 = vunpack.c.2.s8 %v2480
    %v2961 = vunpack.c.2.s8 %v2481
    %v2962 = vunpack.c.2.s8 %v2482
    %v2963 = vunpack.c.3.s8 %v2475
    %v2964 = vunpack.c.3.s8 %v2476
    %v2965 = vunpack.c.3.s8 %v2477
    %v2966 = vunpack.c.3.s8 %v2478
    %v2967 = vunpack.c.3.s8 %v2479
    %v2968 = vunpack.c.3.s8 %v2480
    %v2969 = vunpack.c.3.s8 %v2481
    %v2970 = vunpack.c.3.s8 %v2482
    %v2971 = vunpack.c.0.s8 %v2483
    %v2972 = vunpack.c.0.s8 %v2484
    %v2973 = vunpack.c.0.s8 %v2485
    %v2974 = vunpack.c.0.s8 %v2486
    %v2975 = vunpack.c.0.s8 %v2487
    %v2976 = vunpack.c.0.s8 %v2488
    %v2977 = vunpack.c.0.s8 %v2489
    %v2978 = vunpack.c.0.s8 %v2490
    %v2979 = vunpack.c.1.s8 %v2483
    %v2980 = vunpack.c.1.s8 %v2484
    %v2981 = vunpack.c.1.s8 %v2485
    %v2982 = vunpack.c.1.s8 %v2486
    %v2983 = vunpack.c.1.s8 %v2487
    %v2984 = vunpack.c.1.s8 %v2488
    %v2985 = vunpack.c.1.s8 %v2489
    %v2986 = vunpack.c.1.s8 %v2490
    %v2987 = vunpack.c.2.s8 %v2483
    %v2988 = vunpack.c.2.s8 %v2484
    %v2989 = vunpack.c.2.s8 %v2485
    %v2990 = vunpack.c.2.s8 %v2486
    %v2991 = vunpack.c.2.s8 %v2487
    %v2992 = vunpack.c.2.s8 %v2488
    %v2993 = vunpack.c.2.s8 %v2489
    %v2994 = vunpack.c.2.s8 %v2490
    %v2995 = vunpack.c.3.s8 %v2483
    %v2996 = vunpack.c.3.s8 %v2484
    %v2997 = vunpack.c.3.s8 %v2485
    %v2998 = vunpack.c.3.s8 %v2486
    %v2999 = vunpack.c.3.s8 %v2487
    %v3000 = vunpack.c.3.s8 %v2488
    %v3001 = vunpack.c.3.s8 %v2489
    %v3002 = vunpack.c.3.s8 %v2490
    %v3003 = vcvt.s32.f32 %v2491
    %v3004 = vcvt.s32.f32 %v2492
    %v3005 = vcvt.s32.f32 %v2493
    %v3006 = vcvt.s32.f32 %v2494
    %v3007 = vcvt.s32.f32 %v2495
    %v3008 = vcvt.s32.f32 %v2496
    %v3009 = vcvt.s32.f32 %v2497
    %v3010 = vcvt.s32.f32 %v2498
    %v3011 = vcvt.s32.f32 %v2499
    %v3012 = vcvt.s32.f32 %v2500
    %v3013 = vcvt.s32.f32 %v2501
    %v3014 = vcvt.s32.f32 %v2502
    %v3015 = vcvt.s32.f32 %v2503
    %v3016 = vcvt.s32.f32 %v2504
    %v3017 = vcvt.s32.f32 %v2505
    %v3018 = vcvt.s32.f32 %v2506
    %v3019 = vcvt.s32.f32 %v2507
    %v3020 = vcvt.s32.f32 %v2508
    %v3021 = vcvt.s32.f32 %v2509
    %v3022 = vcvt.s32.f32 %v2510
    %v3023 = vcvt.s32.f32 %v2511
    %v3024 = vcvt.s32.f32 %v2512
    %v3025 = vcvt.s32.f32 %v2513
    %v3026 = vcvt.s32.f32 %v2514
    %v3027 = vcvt.s32.f32 %v2515
    %v3028 = vcvt.s32.f32 %v2516
    %v3029 = vcvt.s32.f32 %v2517
    %v3030 = vcvt.s32.f32 %v2518
    %v3031 = vcvt.s32.f32 %v2519
    %v3032 = vcvt.s32.f32 %v2520
    %v3033 = vcvt.s32.f32 %v2521
    %v3034 = vcvt.s32.f32 %v2522
    %v3035 = vcvt.s32.f32 %v2523
    %v3036 = vcvt.s32.f32 %v2524
    %v3037 = vcvt.s32.f32 %v2525
    %v3038 = vcvt.s32.f32 %v2526
    %v3039 = vcvt.s32.f32 %v2527
    %v3040 = vcvt.s32.f32 %v2528
    %v3041 = vcvt.s32.f32 %v2529
    %v3042 = vcvt.s32.f32 %v2530
    %v3043 = vcvt.s32.f32 %v2531
    %v3044 = vcvt.s32.f32 %v2532
    %v3045 = vcvt.s32.f32 %v2533
    %v3046 = vcvt.s32.f32 %v2534
    %v3047 = vcvt.s32.f32 %v2535
    %v3048 = vcvt.s32.f32 %v2536
    %v3049 = vcvt.s32.f32 %v2537
    %v3050 = vcvt.s32.f32 %v2538
    %v3051 = vcvt.s32.f32 %v2539
    %v3052 = vcvt.s32.f32 %v2540
    %v3053 = vcvt.s32.f32 %v2541
    %v3054 = vcvt.s32.f32 %v2542
    %v3055 = vcvt.s32.f32 %v2543
    %v3056 = vcvt.s32.f32 %v2544
    %v3057 = vcvt.s32.f32 %v2545
    %v3058 = vcvt.s32.f32 %v2546
    %v3059 = vcvt.s32.f32 %v2547
    %v3060 = vcvt.s32.f32 %v2548
    %v3061 = vcvt.s32.f32 %v2549
    %v3062 = vcvt.s32.f32 %v2550
    %v3063 = vcvt.s32.f32 %v2551
    %v3064 = vcvt.s32.f32 %v2552
    %v3065 = vcvt.s32.f32 %v2553
    %v3066 = vcvt.s32.f32 %v2554
    %v3067 = vcvt.s32.f32 %v2555
    %v3068 = vcvt.s32.f32 %v2556
    %v3069 = vcvt.s32.f32 %v2557
    %v3070 = vcvt.s32.f32 %v2558
    %v3071 = vcvt.s32.f32 %v2559
    %v3072 = vcvt.s32.f32 %v2560
    %v3073 = vcvt.s32.f32 %v2561
    %v3074 = vcvt.s32.f32 %v2562
    %v3075 = vcvt.s32.f32 %v2563
    %v3076 = vcvt.s32.f32 %v2564
    %v3077 = vcvt.s32.f32 %v2565
    %v3078 = vcvt.s32.f32 %v2566
    %v3079 = vcvt.s32.f32 %v2567
    %v3080 = vcvt.s32.f32 %v2568
    %v3081 = vcvt.s32.f32 %v2569
    %v3082 = vcvt.s32.f32 %v2570
    %v3083 = vcvt.s32.f32 %v2571
    %v3084 = vcvt.s32.f32 %v2572
    %v3085 = vcvt.s32.f32 %v2573
    %v3086 = vcvt.s32.f32 %v2574
    %v3087 = vcvt.s32.f32 %v2575
    %v3088 = vcvt.s32.f32 %v2576
    %v3089 = vcvt.s32.f32 %v2577
    %v3090 = vcvt.s32.f32 %v2578
    %v3091 = vcvt.s32.f32 %v2579
    %v3092 = vcvt.s32.f32 %v2580
    %v3093 = vcvt.s32.f32 %v2581
    %v3094 = vcvt.s32.f32 %v2582
    %v3095 = vcvt.s32.f32 %v2583
    %v3096 = vcvt.s32.f32 %v2584
    %v3097 = vcvt.s32.f32 %v2585
    %v3098 = vcvt.s32.f32 %v2586
    %v3099 = vcvt.s32.f32 %v2587
    %v3100 = vcvt.s32.f32 %v2588
    %v3101 = vcvt.s32.f32 %v2589
    %v3102 = vcvt.s32.f32 %v2590
    %v3103 = vcvt.s32.f32 %v2591
    %v3104 = vcvt.s32.f32 %v2592
    %v3105 = vcvt.s32.f32 %v2593
    %v3106 = vcvt.s32.f32 %v2594
    %v3107 = vcvt.s32.f32 %v2595
    %v3108 = vcvt.s32.f32 %v2596
    %v3109 = vcvt.s32.f32 %v2597
    %v3110 = vcvt.s32.f32 %v2598
    %v3111 = vcvt.s32.f32 %v2599
    %v3112 = vcvt.s32.f32 %v2600
    %v3113 = vcvt.s32.f32 %v2601
    %v3114 = vcvt.s32.f32 %v2602
    %v3115 = vcvt.s32.f32 %v2603
    %v3116 = vcvt.s32.f32 %v2604
    %v3117 = vcvt.s32.f32 %v2605
    %v3118 = vcvt.s32.f32 %v2606
    %v3119 = vcvt.s32.f32 %v2607
    %v3120 = vcvt.s32.f32 %v2608
    %v3121 = vcvt.s32.f32 %v2609
    %v3122 = vcvt.s32.f32 %v2610
    %v3123 = vcvt.s32.f32 %v2611
    %v3124 = vcvt.s32.f32 %v2612
    %v3125 = vcvt.s32.f32 %v2613
    %v3126 = vcvt.s32.f32 %v2614
    %v3127 = vcvt.s32.f32 %v2615
    %v3128 = vcvt.s32.f32 %v2616
    %v3129 = vcvt.s32.f32 %v2617
    %v3130 = vcvt.s32.f32 %v2618
    %v3131 = vcvt.s32.f32 %v2619
    %v3132 = vcvt.s32.f32 %v2620
    %v3133 = vcvt.s32.f32 %v2621
    %v3134 = vcvt.s32.f32 %v2622
    %v3135 = vcvt.s32.f32 %v2623
    %v3136 = vcvt.s32.f32 %v2624
    %v3137 = vcvt.s32.f32 %v2625
    %v3138 = vcvt.s32.f32 %v2626
    %v3139 = vcvt.s32.f32 %v2627
    %v3140 = vcvt.s32.f32 %v2628
    %v3141 = vcvt.s32.f32 %v2629
    %v3142 = vcvt.s32.f32 %v2630
    %v3143 = vcvt.s32.f32 %v2631
    %v3144 = vcvt.s32.f32 %v2632
    %v3145 = vcvt.s32.f32 %v2633
    %v3146 = vcvt.s32.f32 %v2634
    %v3147 = vcvt.s32.f32 %v2635
    %v3148 = vcvt.s32.f32 %v2636
    %v3149 = vcvt.s32.f32 %v2637
    %v3150 = vcvt.s32.f32 %v2638
    %v3151 = vcvt.s32.f32 %v2639
    %v3152 = vcvt.s32.f32 %v2640
    %v3153 = vcvt.s32.f32 %v2641
    %v3154 = vcvt.s32.f32 %v2642
    %v3155 = vcvt.s32.f32 %v2643
    %v3156 = vcvt.s32.f32 %v2644
    %v3157 = vcvt.s32.f32 %v2645
    %v3158 = vcvt.s32.f32 %v2646
    %v3159 = vcvt.s32.f32 %v2647
    %v3160 = vcvt.s32.f32 %v2648
    %v3161 = vcvt.s32.f32 %v2649
    %v3162 = vcvt.s32.f32 %v2650
    %v3163 = vcvt.s32.f32 %v2651
    %v3164 = vcvt.s32.f32 %v2652
    %v3165 = vcvt.s32.f32 %v2653
    %v3166 = vcvt.s32.f32 %v2654
    %v3167 = vcvt.s32.f32 %v2655
    %v3168 = vcvt.s32.f32 %v2656
    %v3169 = vcvt.s32.f32 %v2657
    %v3170 = vcvt.s32.f32 %v2658
    %v3171 = vcvt.s32.f32 %v2659
    %v3172 = vcvt.s32.f32 %v2660
    %v3173 = vcvt.s32.f32 %v2661
    %v3174 = vcvt.s32.f32 %v2662
    %v3175 = vcvt.s32.f32 %v2663
    %v3176 = vcvt.s32.f32 %v2664
    %v3177 = vcvt.s32.f32 %v2665
    %v3178 = vcvt.s32.f32 %v2666
    %v3179 = vcvt.s32.f32 %v2667
    %v3180 = vcvt.s32.f32 %v2668
    %v3181 = vcvt.s32.f32 %v2669
    %v3182 = vcvt.s32.f32 %v2670
    %v3183 = vcvt.s32.f32 %v2671
    %v3184 = vcvt.s32.f32 %v2672
    %v3185 = vcvt.s32.f32 %v2673
    %v3186 = vcvt.s32.f32 %v2674
    %v3187 = vcvt.s32.f32 %v2675
    %v3188 = vcvt.s32.f32 %v2676
    %v3189 = vcvt.s32.f32 %v2677
    %v3190 = vcvt.s32.f32 %v2678
    %v3191 = vcvt.s32.f32 %v2679
    %v3192 = vcvt.s32.f32 %v2680
    %v3193 = vcvt.s32.f32 %v2681
    %v3194 = vcvt.s32.f32 %v2682
    %v3195 = vcvt.s32.f32 %v2683
    %v3196 = vcvt.s32.f32 %v2684
    %v3197 = vcvt.s32.f32 %v2685
    %v3198 = vcvt.s32.f32 %v2686
    %v3199 = vcvt.s32.f32 %v2687
    %v3200 = vcvt.s32.f32 %v2688
    %v3201 = vcvt.s32.f32 %v2689
    %v3202 = vcvt.s32.f32 %v2690
    %v3203 = vcvt.s32.f32 %v2691
    %v3204 = vcvt.s32.f32 %v2692
    %v3205 = vcvt.s32.f32 %v2693
    %v3206 = vcvt.s32.f32 %v2694
    %v3207 = vcvt.s32.f32 %v2695
    %v3208 = vcvt.s32.f32 %v2696
    %v3209 = vcvt.s32.f32 %v2697
    %v3210 = vcvt.s32.f32 %v2698
    %v3211 = vcvt.s32.f32 %v2699
    %v3212 = vcvt.s32.f32 %v2700
    %v3213 = vcvt.s32.f32 %v2701
    %v3214 = vcvt.s32.f32 %v2702
    %v3215 = vcvt.s32.f32 %v2703
    %v3216 = vcvt.s32.f32 %v2704
    %v3217 = vcvt.s32.f32 %v2705
    %v3218 = vcvt.s32.f32 %v2706
    %v3219 = vcvt.s32.f32 %v2707
    %v3220 = vcvt.s32.f32 %v2708
    %v3221 = vcvt.s32.f32 %v2709
    %v3222 = vcvt.s32.f32 %v2710
    %v3223 = vcvt.s32.f32 %v2711
    %v3224 = vcvt.s32.f32 %v2712
    %v3225 = vcvt.s32.f32 %v2713
    %v3226 = vcvt.s32.f32 %v2714
    %v3227 = vcvt.s32.f32 %v2715
    %v3228 = vcvt.s32.f32 %v2716
    %v3229 = vcvt.s32.f32 %v2717
    %v3230 = vcvt.s32.f32 %v2718
    %v3231 = vcvt.s32.f32 %v2719
    %v3232 = vcvt.s32.f32 %v2720
    %v3233 = vcvt.s32.f32 %v2721
    %v3234 = vcvt.s32.f32 %v2722
    %v3235 = vcvt.s32.f32 %v2723
    %v3236 = vcvt.s32.f32 %v2724
    %v3237 = vcvt.s32.f32 %v2725
    %v3238 = vcvt.s32.f32 %v2726
    %v3239 = vcvt.s32.f32 %v2727
    %v3240 = vcvt.s32.f32 %v2728
    %v3241 = vcvt.s32.f32 %v2729
    %v3242 = vcvt.s32.f32 %v2730
    %v3243 = vcvt.s32.f32 %v2731
    %v3244 = vcvt.s32.f32 %v2732
    %v3245 = vcvt.s32.f32 %v2733
    %v3246 = vcvt.s32.f32 %v2734
    %v3247 = vcvt.s32.f32 %v2735
    %v3248 = vcvt.s32.f32 %v2736
    %v3249 = vcvt.s32.f32 %v2737
    %v3250 = vcvt.s32.f32 %v2738
    %v3251 = vcvt.s32.f32 %v2739
    %v3252 = vcvt.s32.f32 %v2740
    %v3253 = vcvt.s32.f32 %v2741
    %v3254 = vcvt.s32.f32 %v2742
    %v3255 = vcvt.s32.f32 %v2743
    %v3256 = vcvt.s32.f32 %v2744
    %v3257 = vcvt.s32.f32 %v2745
    %v3258 = vcvt.s32.f32 %v2746
    %v3259 = vcvt.s32.f32 %v2747
    %v3260 = vcvt.s32.f32 %v2748
    %v3261 = vcvt.s32.f32 %v2749
    %v3262 = vcvt.s32.f32 %v2750
    %v3263 = vcvt.s32.f32 %v2751
    %v3264 = vcvt.s32.f32 %v2752
    %v3265 = vcvt.s32.f32 %v2753
    %v3266 = vcvt.s32.f32 %v2754
    %v3267 = vcvt.s32.f32 %v2755
    %v3268 = vcvt.s32.f32 %v2756
    %v3269 = vcvt.s32.f32 %v2757
    %v3270 = vcvt.s32.f32 %v2758
    %v3271 = vcvt.s32.f32 %v2759
    %v3272 = vcvt.s32.f32 %v2760
    %v3273 = vcvt.s32.f32 %v2761
    %v3274 = vcvt.s32.f32 %v2762
    %v3275 = vcvt.s32.f32 %v2763
    %v3276 = vcvt.s32.f32 %v2764
    %v3277 = vcvt.s32.f32 %v2765
    %v3278 = vcvt.s32.f32 %v2766
    %v3279 = vcvt.s32.f32 %v2767
    %v3280 = vcvt.s32.f32 %v2768
    %v3281 = vcvt.s32.f32 %v2769
    %v3282 = vcvt.s32.f32 %v2770
    %v3283 = vcvt.s32.f32 %v2771
    %v3284 = vcvt.s32.f32 %v2772
    %v3285 = vcvt.s32.f32 %v2773
    %v3286 = vcvt.s32.f32 %v2774
    %v3287 = vcvt.s32.f32 %v2775
    %v3288 = vcvt.s32.f32 %v2776
    %v3289 = vcvt.s32.f32 %v2777
    %v3290 = vcvt.s32.f32 %v2778
    %v3291 = vcvt.s32.f32 %v2779
    %v3292 = vcvt.s32.f32 %v2780
    %v3293 = vcvt.s32.f32 %v2781
    %v3294 = vcvt.s32.f32 %v2782
    %v3295 = vcvt.s32.f32 %v2783
    %v3296 = vcvt.s32.f32 %v2784
    %v3297 = vcvt.s32.f32 %v2785
    %v3298 = vcvt.s32.f32 %v2786
    %v3299 = vcvt.s32.f32 %v2787
    %v3300 = vcvt.s32.f32 %v2788
    %v3301 = vcvt.s32.f32 %v2789
    %v3302 = vcvt.s32.f32 %v2790
    %v3303 = vcvt.s32.f32 %v2791
    %v3304 = vcvt.s32.f32 %v2792
    %v3305 = vcvt.s32.f32 %v2793
    %v3306 = vcvt.s32.f32 %v2794
    %v3307 = vcvt.s32.f32 %v2795
    %v3308 = vcvt.s32.f32 %v2796
    %v3309 = vcvt.s32.f32 %v2797
    %v3310 = vcvt.s32.f32 %v2798
    %v3311 = vcvt.s32.f32 %v2799
    %v3312 = vcvt.s32.f32 %v2800
    %v3313 = vcvt.s32.f32 %v2801
    %v3314 = vcvt.s32.f32 %v2802
    %v3315 = vcvt.s32.f32 %v2803
    %v3316 = vcvt.s32.f32 %v2804
    %v3317 = vcvt.s32.f32 %v2805
    %v3318 = vcvt.s32.f32 %v2806
    %v3319 = vcvt.s32.f32 %v2807
    %v3320 = vcvt.s32.f32 %v2808
    %v3321 = vcvt.s32.f32 %v2809
    %v3322 = vcvt.s32.f32 %v2810
    %v3323 = vcvt.s32.f32 %v2811
    %v3324 = vcvt.s32.f32 %v2812
    %v3325 = vcvt.s32.f32 %v2813
    %v3326 = vcvt.s32.f32 %v2814
    %v3327 = vcvt.s32.f32 %v2815
    %v3328 = vcvt.s32.f32 %v2816
    %v3329 = vcvt.s32.f32 %v2817
    %v3330 = vcvt.s32.f32 %v2818
    %v3331 = vcvt.s32.f32 %v2819
    %v3332 = vcvt.s32.f32 %v2820
    %v3333 = vcvt.s32.f32 %v2821
    %v3334 = vcvt.s32.f32 %v2822
    %v3335 = vcvt.s32.f32 %v2823
    %v3336 = vcvt.s32.f32 %v2824
    %v3337 = vcvt.s32.f32 %v2825
    %v3338 = vcvt.s32.f32 %v2826
    %v3339 = vcvt.s32.f32 %v2827
    %v3340 = vcvt.s32.f32 %v2828
    %v3341 = vcvt.s32.f32 %v2829
    %v3342 = vcvt.s32.f32 %v2830
    %v3343 = vcvt.s32.f32 %v2831
    %v3344 = vcvt.s32.f32 %v2832
    %v3345 = vcvt.s32.f32 %v2833
    %v3346 = vcvt.s32.f32 %v2834
    %v3347 = vcvt.s32.f32 %v2835
    %v3348 = vcvt.s32.f32 %v2836
    %v3349 = vcvt.s32.f32 %v2837
    %v3350 = vcvt.s32.f32 %v2838
    %v3351 = vcvt.s32.f32 %v2839
    %v3352 = vcvt.s32.f32 %v2840
    %v3353 = vcvt.s32.f32 %v2841
    %v3354 = vcvt.s32.f32 %v2842
    %v3355 = vcvt.s32.f32 %v2843
    %v3356 = vcvt.s32.f32 %v2844
    %v3357 = vcvt.s32.f32 %v2845
    %v3358 = vcvt.s32.f32 %v2846
    %v3359 = vcvt.s32.f32 %v2847
    %v3360 = vcvt.s32.f32 %v2848
    %v3361 = vcvt.s32.f32 %v2849
    %v3362 = vcvt.s32.f32 %v2850
    %v3363 = vcvt.s32.f32 %v2851
    %v3364 = vcvt.s32.f32 %v2852
    %v3365 = vcvt.s32.f32 %v2853
    %v3366 = vcvt.s32.f32 %v2854
    %v3367 = vcvt.s32.f32 %v2855
    %v3368 = vcvt.s32.f32 %v2856
    %v3369 = vcvt.s32.f32 %v2857
    %v3370 = vcvt.s32.f32 %v2858
    %v3371 = vcvt.s32.f32 %v2859
    %v3372 = vcvt.s32.f32 %v2860
    %v3373 = vcvt.s32.f32 %v2861
    %v3374 = vcvt.s32.f32 %v2862
    %v3375 = vcvt.s32.f32 %v2863
    %v3376 = vcvt.s32.f32 %v2864
    %v3377 = vcvt.s32.f32 %v2865
    %v3378 = vcvt.s32.f32 %v2866
    %v3379 = vcvt.s32.f32 %v2867
    %v3380 = vcvt.s32.f32 %v2868
    %v3381 = vcvt.s32.f32 %v2869
    %v3382 = vcvt.s32.f32 %v2870
    %v3383 = vcvt.s32.f32 %v2871
    %v3384 = vcvt.s32.f32 %v2872
    %v3385 = vcvt.s32.f32 %v2873
    %v3386 = vcvt.s32.f32 %v2874
    %v3387 = vcvt.s32.f32 %v2875
    %v3388 = vcvt.s32.f32 %v2876
    %v3389 = vcvt.s32.f32 %v2877
    %v3390 = vcvt.s32.f32 %v2878
    %v3391 = vcvt.s32.f32 %v2879
    %v3392 = vcvt.s32.f32 %v2880
    %v3393 = vcvt.s32.f32 %v2881
    %v3394 = vcvt.s32.f32 %v2882
    %v3395 = vcvt.s32.f32 %v2883
    %v3396 = vcvt.s32.f32 %v2884
    %v3397 = vcvt.s32.f32 %v2885
    %v3398 = vcvt.s32.f32 %v2886
    %v3399 = vcvt.s32.f32 %v2887
    %v3400 = vcvt.s32.f32 %v2888
    %v3401 = vcvt.s32.f32 %v2889
    %v3402 = vcvt.s32.f32 %v2890
    %v3403 = vcvt.s32.f32 %v2891
    %v3404 = vcvt.s32.f32 %v2892
    %v3405 = vcvt.s32.f32 %v2893
    %v3406 = vcvt.s32.f32 %v2894
    %v3407 = vcvt.s32.f32 %v2895
    %v3408 = vcvt.s32.f32 %v2896
    %v3409 = vcvt.s32.f32 %v2897
    %v3410 = vcvt.s32.f32 %v2898
    %v3411 = vcvt.s32.f32 %v2899
    %v3412 = vcvt.s32.f32 %v2900
    %v3413 = vcvt.s32.f32 %v2901
    %v3414 = vcvt.s32.f32 %v2902
    %v3415 = vcvt.s32.f32 %v2903
    %v3416 = vcvt.s32.f32 %v2904
    %v3417 = vcvt.s32.f32 %v2905
    %v3418 = vcvt.s32.f32 %v2906
    %v3419 = vcvt.s32.f32 %v2907
    %v3420 = vcvt.s32.f32 %v2908
    %v3421 = vcvt.s32.f32 %v2909
    %v3422 = vcvt.s32.f32 %v2910
    %v3423 = vcvt.s32.f32 %v2911
    %v3424 = vcvt.s32.f32 %v2912
    %v3425 = vcvt.s32.f32 %v2913
    %v3426 = vcvt.s32.f32 %v2914
    %v3427 = vcvt.s32.f32 %v2915
    %v3428 = vcvt.s32.f32 %v2916
    %v3429 = vcvt.s32.f32 %v2917
    %v3430 = vcvt.s32.f32 %v2918
    %v3431 = vcvt.s32.f32 %v2919
    %v3432 = vcvt.s32.f32 %v2920
    %v3433 = vcvt.s32.f32 %v2921
    %v3434 = vcvt.s32.f32 %v2922
    %v3435 = vcvt.s32.f32 %v2923
    %v3436 = vcvt.s32.f32 %v2924
    %v3437 = vcvt.s32.f32 %v2925
    %v3438 = vcvt.s32.f32 %v2926
    %v3439 = vcvt.s32.f32 %v2927
    %v3440 = vcvt.s32.f32 %v2928
    %v3441 = vcvt.s32.f32 %v2929
    %v3442 = vcvt.s32.f32 %v2930
    %v3443 = vcvt.s32.f32 %v2931
    %v3444 = vcvt.s32.f32 %v2932
    %v3445 = vcvt.s32.f32 %v2933
    %v3446 = vcvt.s32.f32 %v2934
    %v3447 = vcvt.s32.f32 %v2935
    %v3448 = vcvt.s32.f32 %v2936
    %v3449 = vcvt.s32.f32 %v2937
    %v3450 = vcvt.s32.f32 %v2938
    %v3451 = vcvt.s32.f32 %v2939
    %v3452 = vcvt.s32.f32 %v2940
    %v3453 = vcvt.s32.f32 %v2941
    %v3454 = vcvt.s32.f32 %v2942
    %v3455 = vcvt.s32.f32 %v2943
    %v3456 = vcvt.s32.f32 %v2944
    %v3457 = vcvt.s32.f32 %v2945
    %v3458 = vcvt.s32.f32 %v2946
    %v3459 = vcvt.s32.f32 %v2947
    %v3460 = vcvt.s32.f32 %v2948
    %v3461 = vcvt.s32.f32 %v2949
    %v3462 = vcvt.s32.f32 %v2950
    %v3463 = vcvt.s32.f32 %v2951
    %v3464 = vcvt.s32.f32 %v2952
    %v3465 = vcvt.s32.f32 %v2953
    %v3466 = vcvt.s32.f32 %v2954
    %v3467 = vcvt.s32.f32 %v2955
    %v3468 = vcvt.s32.f32 %v2956
    %v3469 = vcvt.s32.f32 %v2957
    %v3470 = vcvt.s32.f32 %v2958
    %v3471 = vcvt.s32.f32 %v2959
    %v3472 = vcvt.s32.f32 %v2960
    %v3473 = vcvt.s32.f32 %v2961
    %v3474 = vcvt.s32.f32 %v2962
    %v3475 = vcvt.s32.f32 %v2963
    %v3476 = vcvt.s32.f32 %v2964
    %v3477 = vcvt.s32.f32 %v2965
    %v3478 = vcvt.s32.f32 %v2966
    %v3479 = vcvt.s32.f32 %v2967
    %v3480 = vcvt.s32.f32 %v2968
    %v3481 = vcvt.s32.f32 %v2969
    %v3482 = vcvt.s32.f32 %v2970
    %v3483 = vcvt.s32.f32 %v2971
    %v3484 = vcvt.s32.f32 %v2972
    %v3485 = vcvt.s32.f32 %v2973
    %v3486 = vcvt.s32.f32 %v2974
    %v3487 = vcvt.s32.f32 %v2975
    %v3488 = vcvt.s32.f32 %v2976
    %v3489 = vcvt.s32.f32 %v2977
    %v3490 = vcvt.s32.f32 %v2978
    %v3491 = vcvt.s32.f32 %v2979
    %v3492 = vcvt.s32.f32 %v2980
    %v3493 = vcvt.s32.f32 %v2981
    %v3494 = vcvt.s32.f32 %v2982
    %v3495 = vcvt.s32.f32 %v2983
    %v3496 = vcvt.s32.f32 %v2984
    %v3497 = vcvt.s32.f32 %v2985
    %v3498 = vcvt.s32.f32 %v2986
    %v3499 = vcvt.s32.f32 %v2987
    %v3500 = vcvt.s32.f32 %v2988
    %v3501 = vcvt.s32.f32 %v2989
    %v3502 = vcvt.s32.f32 %v2990
    %v3503 = vcvt.s32.f32 %v2991
    %v3504 = vcvt.s32.f32 %v2992
    %v3505 = vcvt.s32.f32 %v2993
    %v3506 = vcvt.s32.f32 %v2994
    %v3507 = vcvt.s32.f32 %v2995
    %v3508 = vcvt.s32.f32 %v2996
    %v3509 = vcvt.s32.f32 %v2997
    %v3510 = vcvt.s32.f32 %v2998
    %v3511 = vcvt.s32.f32 %v2999
    %v3512 = vcvt.s32.f32 %v3000
    %v3513 = vcvt.s32.f32 %v3001
    %v3514 = vcvt.s32.f32 %v3002
    %v3515 = vpack.c.bf16 %v3011, %v3003
    %v3516 = vpack.c.bf16 %v3012, %v3004
    %v3517 = vpack.c.bf16 %v3013, %v3005
    %v3518 = vpack.c.bf16 %v3014, %v3006
    %v3519 = vpack.c.bf16 %v3015, %v3007
    %v3520 = vpack.c.bf16 %v3016, %v3008
    %v3521 = vpack.c.bf16 %v3017, %v3009
    %v3522 = vpack.c.bf16 %v3018, %v3010
    %v3523 = vpack.c.bf16 %v3027, %v3019
    %v3524 = vpack.c.bf16 %v3028, %v3020
    %v3525 = vpack.c.bf16 %v3029, %v3021
    %v3526 = vpack.c.bf16 %v3030, %v3022
    %v3527 = vpack.c.bf16 %v3031, %v3023
    %v3528 = vpack.c.bf16 %v3032, %v3024
    %v3529 = vpack.c.bf16 %v3033, %v3025
    %v3530 = vpack.c.bf16 %v3034, %v3026
    %v3531 = vpack.c.bf16 %v3043, %v3035
    %v3532 = vpack.c.bf16 %v3044, %v3036
    %v3533 = vpack.c.bf16 %v3045, %v3037
    %v3534 = vpack.c.bf16 %v3046, %v3038
    %v3535 = vpack.c.bf16 %v3047, %v3039
    %v3536 = vpack.c.bf16 %v3048, %v3040
    %v3537 = vpack.c.bf16 %v3049, %v3041
    %v3538 = vpack.c.bf16 %v3050, %v3042
    %v3539 = vpack.c.bf16 %v3059, %v3051
    %v3540 = vpack.c.bf16 %v3060, %v3052
    %v3541 = vpack.c.bf16 %v3061, %v3053
    %v3542 = vpack.c.bf16 %v3062, %v3054
    %v3543 = vpack.c.bf16 %v3063, %v3055
    %v3544 = vpack.c.bf16 %v3064, %v3056
    %v3545 = vpack.c.bf16 %v3065, %v3057
    %v3546 = vpack.c.bf16 %v3066, %v3058
    %v3547 = vpack.c.bf16 %v3075, %v3067
    %v3548 = vpack.c.bf16 %v3076, %v3068
    %v3549 = vpack.c.bf16 %v3077, %v3069
    %v3550 = vpack.c.bf16 %v3078, %v3070
    %v3551 = vpack.c.bf16 %v3079, %v3071
    %v3552 = vpack.c.bf16 %v3080, %v3072
    %v3553 = vpack.c.bf16 %v3081, %v3073
    %v3554 = vpack.c.bf16 %v3082, %v3074
    %v3555 = vpack.c.bf16 %v3091, %v3083
    %v3556 = vpack.c.bf16 %v3092, %v3084
    %v3557 = vpack.c.bf16 %v3093, %v3085
    %v3558 = vpack.c.bf16 %v3094, %v3086
    %v3559 = vpack.c.bf16 %v3095, %v3087
    %v3560 = vpack.c.bf16 %v3096, %v3088
    %v3561 = vpack.c.bf16 %v3097, %v3089
    %v3562 = vpack.c.bf16 %v3098, %v3090
    %v3563 = vpack.c.bf16 %v3107, %v3099
    %v3564 = vpack.c.bf16 %v3108, %v3100
    %v3565 = vpack.c.bf16 %v3109, %v3101
    %v3566 = vpack.c.bf16 %v3110, %v3102
    %v3567 = vpack.c.bf16 %v3111, %v3103
    %v3568 = vpack.c.bf16 %v3112, %v3104
    %v3569 = vpack.c.bf16 %v3113, %v3105
    %v3570 = vpack.c.bf16 %v3114, %v3106
    %v3571 = vpack.c.bf16 %v3123, %v3115
    %v3572 = vpack.c.bf16 %v3124, %v3116
    %v3573 = vpack.c.bf16 %v3125, %v3117
    %v3574 = vpack.c.bf16 %v3126, %v3118
    %v3575 = vpack.c.bf16 %v3127, %v3119
    %v3576 = vpack.c.bf16 %v3128, %v3120
    %v3577 = vpack.c.bf16 %v3129, %v3121
    %v3578 = vpack.c.bf16 %v3130, %v3122
    %v3579 = vpack.c.bf16 %v3139, %v3131
    %v3580 = vpack.c.bf16 %v3140, %v3132
    %v3581 = vpack.c.bf16 %v3141, %v3133
    %v3582 = vpack.c.bf16 %v3142, %v3134
    %v3583 = vpack.c.bf16 %v3143, %v3135
    %v3584 = vpack.c.bf16 %v3144, %v3136
    %v3585 = vpack.c.bf16 %v3145, %v3137
    %v3586 = vpack.c.bf16 %v3146, %v3138
    %v3587 = vpack.c.bf16 %v3155, %v3147
    %v3588 = vpack.c.bf16 %v3156, %v3148
    %v3589 = vpack.c.bf16 %v3157, %v3149
    %v3590 = vpack.c.bf16 %v3158, %v3150
    %v3591 = vpack.c.bf16 %v3159, %v3151
    %v3592 = vpack.c.bf16 %v3160, %v3152
    %v3593 = vpack.c.bf16 %v3161, %v3153
    %v3594 = vpack.c.bf16 %v3162, %v3154
    %v3595 = vpack.c.bf16 %v3171, %v3163
    %v3596 = vpack.c.bf16 %v3172, %v3164
    %v3597 = vpack.c.bf16 %v3173, %v3165
    %v3598 = vpack.c.bf16 %v3174, %v3166
    %v3599 = vpack.c.bf16 %v3175, %v3167
    %v3600 = vpack.c.bf16 %v3176, %v3168
    %v3601 = vpack.c.bf16 %v3177, %v3169
    %v3602 = vpack.c.bf16 %v3178, %v3170
    %v3603 = vpack.c.bf16 %v3187, %v3179
    %v3604 = vpack.c.bf16 %v3188, %v3180
    %v3605 = vpack.c.bf16 %v3189, %v3181
    %v3606 = vpack.c.bf16 %v3190, %v3182
    %v3607 = vpack.c.bf16 %v3191, %v3183
    %v3608 = vpack.c.bf16 %v3192, %v3184
    %v3609 = vpack.c.bf16 %v3193, %v3185
    %v3610 = vpack.c.bf16 %v3194, %v3186
    %v3611 = vpack.c.bf16 %v3203, %v3195
    %v3612 = vpack.c.bf16 %v3204, %v3196
    %v3613 = vpack.c.bf16 %v3205, %v3197
    %v3614 = vpack.c.bf16 %v3206, %v3198
    %v3615 = vpack.c.bf16 %v3207, %v3199
    %v3616 = vpack.c.bf16 %v3208, %v3200
    %v3617 = vpack.c.bf16 %v3209, %v3201
    %v3618 = vpack.c.bf16 %v3210, %v3202
    %v3619 = vpack.c.bf16 %v3219, %v3211
    %v3620 = vpack.c.bf16 %v3220, %v3212
    %v3621 = vpack.c.bf16 %v3221, %v3213
    %v3622 = vpack.c.bf16 %v3222, %v3214
    %v3623 = vpack.c.bf16 %v3223, %v3215
    %v3624 = vpack.c.bf16 %v3224, %v3216
    %v3625 = vpack.c.bf16 %v3225, %v3217
    %v3626 = vpack.c.bf16 %v3226, %v3218
    %v3627 = vpack.c.bf16 %v3235, %v3227
    %v3628 = vpack.c.bf16 %v3236, %v3228
    %v3629 = vpack.c.bf16 %v3237, %v3229
    %v3630 = vpack.c.bf16 %v3238, %v3230
    %v3631 = vpack.c.bf16 %v3239, %v3231
    %v3632 = vpack.c.bf16 %v3240, %v3232
    %v3633 = vpack.c.bf16 %v3241, %v3233
    %v3634 = vpack.c.bf16 %v3242, %v3234
    %v3635 = vpack.c.bf16 %v3251, %v3243
    %v3636 = vpack.c.bf16 %v3252, %v3244
    %v3637 = vpack.c.bf16 %v3253, %v3245
    %v3638 = vpack.c.bf16 %v3254, %v3246
    %v3639 = vpack.c.bf16 %v3255, %v3247
    %v3640 = vpack.c.bf16 %v3256, %v3248
    %v3641 = vpack.c.bf16 %v3257, %v3249
    %v3642 = vpack.c.bf16 %v3258, %v3250
    %v3643 = vpack.c.bf16 %v3267, %v3259
    %v3644 = vpack.c.bf16 %v3268, %v3260
    %v3645 = vpack.c.bf16 %v3269, %v3261
    %v3646 = vpack.c.bf16 %v3270, %v3262
    %v3647 = vpack.c.bf16 %v3271, %v3263
    %v3648 = vpack.c.bf16 %v3272, %v3264
    %v3649 = vpack.c.bf16 %v3273, %v3265
    %v3650 = vpack.c.bf16 %v3274, %v3266
    %v3651 = vpack.c.bf16 %v3283, %v3275
    %v3652 = vpack.c.bf16 %v3284, %v3276
    %v3653 = vpack.c.bf16 %v3285, %v3277
    %v3654 = vpack.c.bf16 %v3286, %v3278
    %v3655 = vpack.c.bf16 %v3287, %v3279
    %v3656 = vpack.c.bf16 %v3288, %v3280
    %v3657 = vpack.c.bf16 %v3289, %v3281
    %v3658 = vpack.c.bf16 %v3290, %v3282
    %v3659 = vpack.c.bf16 %v3299, %v3291
    %v3660 = vpack.c.bf16 %v3300, %v3292
    %v3661 = vpack.c.bf16 %v3301, %v3293
    %v3662 = vpack.c.bf16 %v3302, %v3294
    %v3663 = vpack.c.bf16 %v3303, %v3295
    %v3664 = vpack.c.bf16 %v3304, %v3296
    %v3665 = vpack.c.bf16 %v3305, %v3297
    %v3666 = vpack.c.bf16 %v3306, %v3298
    %v3667 = vpack.c.bf16 %v3315, %v3307
    %v3668 = vpack.c.bf16 %v3316, %v3308
    %v3669 = vpack.c.bf16 %v3317, %v3309
    %v3670 = vpack.c.bf16 %v3318, %v3310
    %v3671 = vpack.c.bf16 %v3319, %v3311
    %v3672 = vpack.c.bf16 %v3320, %v3312
    %v3673 = vpack.c.bf16 %v3321, %v3313
    %v3674 = vpack.c.bf16 %v3322, %v3314
    %v3675 = vpack.c.bf16 %v3331, %v3323
    %v3676 = vpack.c.bf16 %v3332, %v3324
    %v3677 = vpack.c.bf16 %v3333, %v3325
    %v3678 = vpack.c.bf16 %v3334, %v3326
    %v3679 = vpack.c.bf16 %v3335, %v3327
    %v3680 = vpack.c.bf16 %v3336, %v3328
    %v3681 = vpack.c.bf16 %v3337, %v3329
    %v3682 = vpack.c.bf16 %v3338, %v3330
    %v3683 = vpack.c.bf16 %v3347, %v3339
    %v3684 = vpack.c.bf16 %v3348, %v3340
    %v3685 = vpack.c.bf16 %v3349, %v3341
    %v3686 = vpack.c.bf16 %v3350, %v3342
    %v3687 = vpack.c.bf16 %v3351, %v3343
    %v3688 = vpack.c.bf16 %v3352, %v3344
    %v3689 = vpack.c.bf16 %v3353, %v3345
    %v3690 = vpack.c.bf16 %v3354, %v3346
    %v3691 = vpack.c.bf16 %v3363, %v3355
    %v3692 = vpack.c.bf16 %v3364, %v3356
    %v3693 = vpack.c.bf16 %v3365, %v3357
    %v3694 = vpack.c.bf16 %v3366, %v3358
    %v3695 = vpack.c.bf16 %v3367, %v3359
    %v3696 = vpack.c.bf16 %v3368, %v3360
    %v3697 = vpack.c.bf16 %v3369, %v3361
    %v3698 = vpack.c.bf16 %v3370, %v3362
    %v3699 = vpack.c.bf16 %v3379, %v3371
    %v3700 = vpack.c.bf16 %v3380, %v3372
    %v3701 = vpack.c.bf16 %v3381, %v3373
    %v3702 = vpack.c.bf16 %v3382, %v3374
    %v3703 = vpack.c.bf16 %v3383, %v3375
    %v3704 = vpack.c.bf16 %v3384, %v3376
    %v3705 = vpack.c.bf16 %v3385, %v3377
    %v3706 = vpack.c.bf16 %v3386, %v3378
    %v3707 = vpack.c.bf16 %v3395, %v3387
    %v3708 = vpack.c.bf16 %v3396, %v3388
    %v3709 = vpack.c.bf16 %v3397, %v3389
    %v3710 = vpack.c.bf16 %v3398, %v3390
    %v3711 = vpack.c.bf16 %v3399, %v3391
    %v3712 = vpack.c.bf16 %v3400, %v3392
    %v3713 = vpack.c.bf16 %v3401, %v3393
    %v3714 = vpack.c.bf16 %v3402, %v3394
    %v3715 = vpack.c.bf16 %v3411, %v3403
    %v3716 = vpack.c.bf16 %v3412, %v3404
    %v3717 = vpack.c.bf16 %v3413, %v3405
    %v3718 = vpack.c.bf16 %v3414, %v3406
    %v3719 = vpack.c.bf16 %v3415, %v3407
    %v3720 = vpack.c.bf16 %v3416, %v3408
    %v3721 = vpack.c.bf16 %v3417, %v3409
    %v3722 = vpack.c.bf16 %v3418, %v3410
    %v3723 = vpack.c.bf16 %v3427, %v3419
    %v3724 = vpack.c.bf16 %v3428, %v3420
    %v3725 = vpack.c.bf16 %v3429, %v3421
    %v3726 = vpack.c.bf16 %v3430, %v3422
    %v3727 = vpack.c.bf16 %v3431, %v3423
    %v3728 = vpack.c.bf16 %v3432, %v3424
    %v3729 = vpack.c.bf16 %v3433, %v3425
    %v3730 = vpack.c.bf16 %v3434, %v3426
    %v3731 = vpack.c.bf16 %v3443, %v3435
    %v3732 = vpack.c.bf16 %v3444, %v3436
    %v3733 = vpack.c.bf16 %v3445, %v3437
    %v3734 = vpack.c.bf16 %v3446, %v3438
    %v3735 = vpack.c.bf16 %v3447, %v3439
    %v3736 = vpack.c.bf16 %v3448, %v3440
    %v3737 = vpack.c.bf16 %v3449, %v3441
    %v3738 = vpack.c.bf16 %v3450, %v3442
    %v3739 = vpack.c.bf16 %v3459, %v3451
    %v3740 = vpack.c.bf16 %v3460, %v3452
    %v3741 = vpack.c.bf16 %v3461, %v3453
    %v3742 = vpack.c.bf16 %v3462, %v3454
    %v3743 = vpack.c.bf16 %v3463, %v3455
    %v3744 = vpack.c.bf16 %v3464, %v3456
    %v3745 = vpack.c.bf16 %v3465, %v3457
    %v3746 = vpack.c.bf16 %v3466, %v3458
    %v3747 = vpack.c.bf16 %v3475, %v3467
    %v3748 = vpack.c.bf16 %v3476, %v3468
    %v3749 = vpack.c.bf16 %v3477, %v3469
    %v3750 = vpack.c.bf16 %v3478, %v3470
    %v3751 = vpack.c.bf16 %v3479, %v3471
    %v3752 = vpack.c.bf16 %v3480, %v3472
    %v3753 = vpack.c.bf16 %v3481, %v3473
    %v3754 = vpack.c.bf16 %v3482, %v3474
    %v3755 = vpack.c.bf16 %v3491, %v3483
    %v3756 = vpack.c.bf16 %v3492, %v3484
    %v3757 = vpack.c.bf16 %v3493, %v3485
    %v3758 = vpack.c.bf16 %v3494, %v3486
    %v3759 = vpack.c.bf16 %v3495, %v3487
    %v3760 = vpack.c.bf16 %v3496, %v3488
    %v3761 = vpack.c.bf16 %v3497, %v3489
    %v3762 = vpack.c.bf16 %v3498, %v3490
    %v3763 = vpack.c.bf16 %v3507, %v3499
    %v3764 = vpack.c.bf16 %v3508, %v3500
    %v3765 = vpack.c.bf16 %v3509, %v3501
    %v3766 = vpack.c.bf16 %v3510, %v3502
    %v3767 = vpack.c.bf16 %v3511, %v3503
    %v3768 = vpack.c.bf16 %v3512, %v3504
    %v3769 = vpack.c.bf16 %v3513, %v3505
    %v3770 = vpack.c.bf16 %v3514, %v3506
    %v3771 = vld [vmem:[#allocation2] sm:$0xf]
    %3773 = vst [vmem:[#allocation1] ss:$9 sm:$0xff] %v3771
    %v3774 = vld [vmem:[#allocation1] sm:$0xff]
    %v3775 = vld [vmem:[#allocation1 + $0x9] sm:$0xff]
    %v3776 = vld [vmem:[#allocation1 + $0x12] sm:$0xff]
    %v3777 = vld [vmem:[#allocation1 + $0x1b] sm:$0xff]
    %3782 = vmatpush.bf16.msra.mxu0 %v3571
    %3783 = vmatpush.bf16.msra.mxu0 %v3563
    %3784 = vmatpush.bf16.msra.mxu0 %v3555
    %3785 = vmatpush.bf16.msra.mxu0 %v3547
    %3786 = vmatpush.bf16.msra.mxu0 %v3539
    %3787 = vmatpush.bf16.msra.mxu0 %v3531
    %3788 = vmatpush.bf16.msra.mxu0 %v3523
    %3789 = vmatpush.bf16.msra.mxu0 %v3515
    %3790 = vmatmul.bf16.gmra.mxu0 %v3774
    %v3791 = vpop.f32.mrf.mxu0
    %v3792 = vadd.f32 0.0, %v3791
    %v3793 = vpop.f32.mrf.mxu0
    %3794 = vdwg.mxu0
    %3795 = vmatpush.bf16.msra.mxu0 %v3635
    %3796 = vmatpush.bf16.msra.mxu0 %v3627
    %3797 = vmatpush.bf16.msra.mxu0 %v3619
    %3798 = vmatpush.bf16.msra.mxu0 %v3611
    %3799 = vmatpush.bf16.msra.mxu0 %v3603
    %3800 = vmatpush.bf16.msra.mxu0 %v3595
    %3801 = vmatpush.bf16.msra.mxu0 %v3587
    %3802 = vmatpush.bf16.msra.mxu0 %v3579
    %3803 = vmatmul.bf16.gmra.mxu0 %v3775
    %v3804 = vpop.f32.mrf.mxu0
    %v3805 = vadd.f32 %v3792, %v3804
    %v3806 = vpop.f32.mrf.mxu0
    %3807 = vdwg.mxu0
    %3808 = vmatpush.bf16.msra.mxu0 %v3699
    %3809 = vmatpush.bf16.msra.mxu0 %v3691
    %3810 = vmatpush.bf16.msra.mxu0 %v3683
    %3811 = vmatpush.bf16.msra.mxu0 %v3675
    %3812 = vmatpush.bf16.msra.mxu0 %v3667
    %3813 = vmatpush.bf16.msra.mxu0 %v3659
    %3814 = vmatpush.bf16.msra.mxu0 %v3651
    %3815 = vmatpush.bf16.msra.mxu0 %v3643
    %3816 = vmatmul.bf16.gmra.mxu0 %v3776
    %v3817 = vpop.f32.mrf.mxu0
    %v3818 = vadd.f32 %v3805, %v3817
    %v3819 = vpop.f32.mrf.mxu0
    %3820 = vdwg.mxu0
    %3821 = vmatpush.bf16.msra.mxu0 %v3763
    %3822 = vmatpush.bf16.msra.mxu0 %v3755
    %3823 = vmatpush.bf16.msra.mxu0 %v3747
    %3824 = vmatpush.bf16.msra.mxu0 %v3739
    %3825 = vmatpush.bf16.msra.mxu0 %v3731
    %3826 = vmatpush.bf16.msra.mxu0 %v3723
    %3827 = vmatpush.bf16.msra.mxu0 %v3715
    %3828 = vmatpush.bf16.msra.mxu0 %v3707
    %3829 = vmatmul.bf16.gmra.mxu0 %v3777
    %v3830 = vpop.f32.mrf.mxu0
    %v3831 = vadd.f32 %v3818, %v3830
    %v3832 = vpop.f32.mrf.mxu0
    %3833 = vdwg.mxu0
    %3834 = vmatpush.bf16.msra.mxu0 %v3572
    %3835 = vmatpush.bf16.msra.mxu0 %v3564
    %3836 = vmatpush.bf16.msra.mxu0 %v3556
    %3837 = vmatpush.bf16.msra.mxu0 %v3548
    %3838 = vmatpush.bf16.msra.mxu0 %v3540
    %3839 = vmatpush.bf16.msra.mxu0 %v3532
    %3840 = vmatpush.bf16.msra.mxu0 %v3524
    %3841 = vmatpush.bf16.msra.mxu0 %v3516
    %3842 = vmatmul.bf16.gmra.mxu0 %v3774
    %v3843 = vpop.f32.mrf.mxu0
    %v3844 = vadd.f32 0.0, %v3843
    %v3845 = vpop.f32.mrf.mxu0
    %3846 = vdwg.mxu0
    %3847 = vmatpush.bf16.msra.mxu0 %v3636
    %3848 = vmatpush.bf16.msra.mxu0 %v3628
    %3849 = vmatpush.bf16.msra.mxu0 %v3620
    %3850 = vmatpush.bf16.msra.mxu0 %v3612
    %3851 = vmatpush.bf16.msra.mxu0 %v3604
    %3852 = vmatpush.bf16.msra.mxu0 %v3596
    %3853 = vmatpush.bf16.msra.mxu0 %v3588
    %3854 = vmatpush.bf16.msra.mxu0 %v3580
    %3855 = vmatmul.bf16.gmra.mxu0 %v3775
    %v3856 = vpop.f32.mrf.mxu0
    %v3857 = vadd.f32 %v3844, %v3856
    %v3858 = vpop.f32.mrf.mxu0
    %3859 = vdwg.mxu0
    %3860 = vmatpush.bf16.msra.mxu0 %v3700
    %3861 = vmatpush.bf16.msra.mxu0 %v3692
    %3862 = vmatpush.bf16.msra.mxu0 %v3684
    %3863 = vmatpush.bf16.msra.mxu0 %v3676
    %3864 = vmatpush.bf16.msra.mxu0 %v3668
    %3865 = vmatpush.bf16.msra.mxu0 %v3660
    %3866 = vmatpush.bf16.msra.mxu0 %v3652
    %3867 = vmatpush.bf16.msra.mxu0 %v3644
    %3868 = vmatmul.bf16.gmra.mxu0 %v3776
    %v3869 = vpop.f32.mrf.mxu0
    %v3870 = vadd.f32 %v3857, %v3869
    %v3871 = vpop.f32.mrf.mxu0
    %3872 = vdwg.mxu0
    %3873 = vmatpush.bf16.msra.mxu0 %v3764
    %3874 = vmatpush.bf16.msra.mxu0 %v3756
    %3875 = vmatpush.bf16.msra.mxu0 %v3748
    %3876 = vmatpush.bf16.msra.mxu0 %v3740
    %3877 = vmatpush.bf16.msra.mxu0 %v3732
    %3878 = vmatpush.bf16.msra.mxu0 %v3724
    %3879 = vmatpush.bf16.msra.mxu0 %v3716
    %3880 = vmatpush.bf16.msra.mxu0 %v3708
    %3881 = vmatmul.bf16.gmra.mxu0 %v3777
    %v3882 = vpop.f32.mrf.mxu0
    %v3883 = vadd.f32 %v3870, %v3882
    %v3884 = vpop.f32.mrf.mxu0
    %3885 = vdwg.mxu0
    %3886 = vmatpush.bf16.msra.mxu0 %v3573
    %3887 = vmatpush.bf16.msra.mxu0 %v3565
    %3888 = vmatpush.bf16.msra.mxu0 %v3557
    %3889 = vmatpush.bf16.msra.mxu0 %v3549
    %3890 = vmatpush.bf16.msra.mxu0 %v3541
    %3891 = vmatpush.bf16.msra.mxu0 %v3533
    %3892 = vmatpush.bf16.msra.mxu0 %v3525
    %3893 = vmatpush.bf16.msra.mxu0 %v3517
    %3894 = vmatmul.bf16.gmra.mxu0 %v3774
    %v3895 = vpop.f32.mrf.mxu0
    %v3896 = vadd.f32 0.0, %v3895
    %v3897 = vpop.f32.mrf.mxu0
    %3898 = vdwg.mxu0
    %3899 = vmatpush.bf16.msra.mxu0 %v3637
    %3900 = vmatpush.bf16.msra.mxu0 %v3629
    %3901 = vmatpush.bf16.msra.mxu0 %v3621
    %3902 = vmatpush.bf16.msra.mxu0 %v3613
    %3903 = vmatpush.bf16.msra.mxu0 %v3605
    %3904 = vmatpush.bf16.msra.mxu0 %v3597
    %3905 = vmatpush.bf16.msra.mxu0 %v3589
    %3906 = vmatpush.bf16.msra.mxu0 %v3581
    %3907 = vmatmul.bf16.gmra.mxu0 %v3775
    %v3908 = vpop.f32.mrf.mxu0
    %v3909 = vadd.f32 %v3896, %v3908
    %v3910 = vpop.f32.mrf.mxu0
    %3911 = vdwg.mxu0
    %3912 = vmatpush.bf16.msra.mxu0 %v3701
    %3913 = vmatpush.bf16.msra.mxu0 %v3693
    %3914 = vmatpush.bf16.msra.mxu0 %v3685
    %3915 = vmatpush.bf16.msra.mxu0 %v3677
    %3916 = vmatpush.bf16.msra.mxu0 %v3669
    %3917 = vmatpush.bf16.msra.mxu0 %v3661
    %3918 = vmatpush.bf16.msra.mxu0 %v3653
    %3919 = vmatpush.bf16.msra.mxu0 %v3645
    %3920 = vmatmul.bf16.gmra.mxu0 %v3776
    %v3921 = vpop.f32.mrf.mxu0
    %v3922 = vadd.f32 %v3909, %v3921
    %v3923 = vpop.f32.mrf.mxu0
    %3924 = vdwg.mxu0
    %3925 = vmatpush.bf16.msra.mxu0 %v3765
    %3926 = vmatpush.bf16.msra.mxu0 %v3757
    %3927 = vmatpush.bf16.msra.mxu0 %v3749
    %3928 = vmatpush.bf16.msra.mxu0 %v3741
    %3929 = vmatpush.bf16.msra.mxu0 %v3733
    %3930 = vmatpush.bf16.msra.mxu0 %v3725
    %3931 = vmatpush.bf16.msra.mxu0 %v3717
    %3932 = vmatpush.bf16.msra.mxu0 %v3709
    %3933 = vmatmul.bf16.gmra.mxu0 %v3777
    %v3934 = vpop.f32.mrf.mxu0
    %v3935 = vadd.f32 %v3922, %v3934
    %v3936 = vpop.f32.mrf.mxu0
    %3937 = vdwg.mxu0
    %3938 = vmatpush.bf16.msra.mxu0 %v3574
    %3939 = vmatpush.bf16.msra.mxu0 %v3566
    %3940 = vmatpush.bf16.msra.mxu0 %v3558
    %3941 = vmatpush.bf16.msra.mxu0 %v3550
    %3942 = vmatpush.bf16.msra.mxu0 %v3542
    %3943 = vmatpush.bf16.msra.mxu0 %v3534
    %3944 = vmatpush.bf16.msra.mxu0 %v3526
    %3945 = vmatpush.bf16.msra.mxu0 %v3518
    %3946 = vmatmul.bf16.gmra.mxu0 %v3774
    %v3947 = vpop.f32.mrf.mxu0
    %v3948 = vadd.f32 0.0, %v3947
    %v3949 = vpop.f32.mrf.mxu0
    %3950 = vdwg.mxu0
    %3951 = vmatpush.bf16.msra.mxu0 %v3638
    %3952 = vmatpush.bf16.msra.mxu0 %v3630
    %3953 = vmatpush.bf16.msra.mxu0 %v3622
    %3954 = vmatpush.bf16.msra.mxu0 %v3614
    %3955 = vmatpush.bf16.msra.mxu0 %v3606
    %3956 = vmatpush.bf16.msra.mxu0 %v3598
    %3957 = vmatpush.bf16.msra.mxu0 %v3590
    %3958 = vmatpush.bf16.msra.mxu0 %v3582
    %3959 = vmatmul.bf16.gmra.mxu0 %v3775
    %v3960 = vpop.f32.mrf.mxu0
    %v3961 = vadd.f32 %v3948, %v3960
    %v3962 = vpop.f32.mrf.mxu0
    %3963 = vdwg.mxu0
    %3964 = vmatpush.bf16.msra.mxu0 %v3702
    %3965 = vmatpush.bf16.msra.mxu0 %v3694
    %3966 = vmatpush.bf16.msra.mxu0 %v3686
    %3967 = vmatpush.bf16.msra.mxu0 %v3678
    %3968 = vmatpush.bf16.msra.mxu0 %v3670
    %3969 = vmatpush.bf16.msra.mxu0 %v3662
    %3970 = vmatpush.bf16.msra.mxu0 %v3654
    %3971 = vmatpush.bf16.msra.mxu0 %v3646
    %3972 = vmatmul.bf16.gmra.mxu0 %v3776
    %v3973 = vpop.f32.mrf.mxu0
    %v3974 = vadd.f32 %v3961, %v3973
    %v3975 = vpop.f32.mrf.mxu0
    %3976 = vdwg.mxu0
    %3977 = vmatpush.bf16.msra.mxu0 %v3766
    %3978 = vmatpush.bf16.msra.mxu0 %v3758
    %3979 = vmatpush.bf16.msra.mxu0 %v3750
    %3980 = vmatpush.bf16.msra.mxu0 %v3742
    %3981 = vmatpush.bf16.msra.mxu0 %v3734
    %3982 = vmatpush.bf16.msra.mxu0 %v3726
    %3983 = vmatpush.bf16.msra.mxu0 %v3718
    %3984 = vmatpush.bf16.msra.mxu0 %v3710
    %3985 = vmatmul.bf16.gmra.mxu0 %v3777
    %v3986 = vpop.f32.mrf.mxu0
    %v3987 = vadd.f32 %v3974, %v3986
    %v3988 = vpop.f32.mrf.mxu0
    %3989 = vdwg.mxu0
    %3990 = vmatpush.bf16.msra.mxu0 %v3575
    %3991 = vmatpush.bf16.msra.mxu0 %v3567
    %3992 = vmatpush.bf16.msra.mxu0 %v3559
    %3993 = vmatpush.bf16.msra.mxu0 %v3551
    %3994 = vmatpush.bf16.msra.mxu0 %v3543
    %3995 = vmatpush.bf16.msra.mxu0 %v3535
    %3996 = vmatpush.bf16.msra.mxu0 %v3527
    %3997 = vmatpush.bf16.msra.mxu0 %v3519
    %3998 = vmatmul.bf16.gmra.mxu0 %v3774
    %v3999 = vpop.f32.mrf.mxu0
    %v4000 = vadd.f32 0.0, %v3999
    %v4001 = vpop.f32.mrf.mxu0
    %4002 = vdwg.mxu0
    %4003 = vmatpush.bf16.msra.mxu0 %v3639
    %4004 = vmatpush.bf16.msra.mxu0 %v3631
    %4005 = vmatpush.bf16.msra.mxu0 %v3623
    %4006 = vmatpush.bf16.msra.mxu0 %v3615
    %4007 = vmatpush.bf16.msra.mxu0 %v3607
    %4008 = vmatpush.bf16.msra.mxu0 %v3599
    %4009 = vmatpush.bf16.msra.mxu0 %v3591
    %4010 = vmatpush.bf16.msra.mxu0 %v3583
    %4011 = vmatmul.bf16.gmra.mxu0 %v3775
    %v4012 = vpop.f32.mrf.mxu0
    %v4013 = vadd.f32 %v4000, %v4012
    %v4014 = vpop.f32.mrf.mxu0
    %4015 = vdwg.mxu0
    %4016 = vmatpush.bf16.msra.mxu0 %v3703
    %4017 = vmatpush.bf16.msra.mxu0 %v3695
    %4018 = vmatpush.bf16.msra.mxu0 %v3687
    %4019 = vmatpush.bf16.msra.mxu0 %v3679
    %4020 = vmatpush.bf16.msra.mxu0 %v3671
    %4021 = vmatpush.bf16.msra.mxu0 %v3663
    %4022 = vmatpush.bf16.msra.mxu0 %v3655
    %4023 = vmatpush.bf16.msra.mxu0 %v3647
    %4024 = vmatmul.bf16.gmra.mxu0 %v3776
    %v4025 = vpop.f32.mrf.mxu0
    %v4026 = vadd.f32 %v4013, %v4025
    %v4027 = vpop.f32.mrf.mxu0
    %4028 = vdwg.mxu0
    %4029 = vmatpush.bf16.msra.mxu0 %v3767
    %4030 = vmatpush.bf16.msra.mxu0 %v3759
    %4031 = vmatpush.bf16.msra.mxu0 %v3751
    %4032 = vmatpush.bf16.msra.mxu0 %v3743
    %4033 = vmatpush.bf16.msra.mxu0 %v3735
    %4034 = vmatpush.bf16.msra.mxu0 %v3727
    %4035 = vmatpush.bf16.msra.mxu0 %v3719
    %4036 = vmatpush.bf16.msra.mxu0 %v3711
    %4037 = vmatmul.bf16.gmra.mxu0 %v3777
    %v4038 = vpop.f32.mrf.mxu0
    %v4039 = vadd.f32 %v4026, %v4038
    %v4040 = vpop.f32.mrf.mxu0
    %4041 = vdwg.mxu0
    %4042 = vmatpush.bf16.msra.mxu0 %v3576
    %4043 = vmatpush.bf16.msra.mxu0 %v3568
    %4044 = vmatpush.bf16.msra.mxu0 %v3560
    %4045 = vmatpush.bf16.msra.mxu0 %v3552
    %4046 = vmatpush.bf16.msra.mxu0 %v3544
    %4047 = vmatpush.bf16.msra.mxu0 %v3536
    %4048 = vmatpush.bf16.msra.mxu0 %v3528
    %4049 = vmatpush.bf16.msra.mxu0 %v3520
    %4050 = vmatmul.bf16.gmra.mxu0 %v3774
    %v4051 = vpop.f32.mrf.mxu0
    %v4052 = vadd.f32 0.0, %v4051
    %v4053 = vpop.f32.mrf.mxu0
    %4054 = vdwg.mxu0
    %4055 = vmatpush.bf16.msra.mxu0 %v3640
    %4056 = vmatpush.bf16.msra.mxu0 %v3632
    %4057 = vmatpush.bf16.msra.mxu0 %v3624
    %4058 = vmatpush.bf16.msra.mxu0 %v3616
    %4059 = vmatpush.bf16.msra.mxu0 %v3608
    %4060 = vmatpush.bf16.msra.mxu0 %v3600
    %4061 = vmatpush.bf16.msra.mxu0 %v3592
    %4062 = vmatpush.bf16.msra.mxu0 %v3584
    %4063 = vmatmul.bf16.gmra.mxu0 %v3775
    %v4064 = vpop.f32.mrf.mxu0
    %v4065 = vadd.f32 %v4052, %v4064
    %v4066 = vpop.f32.mrf.mxu0
    %4067 = vdwg.mxu0
    %4068 = vmatpush.bf16.msra.mxu0 %v3704
    %4069 = vmatpush.bf16.msra.mxu0 %v3696
    %4070 = vmatpush.bf16.msra.mxu0 %v3688
    %4071 = vmatpush.bf16.msra.mxu0 %v3680
    %4072 = vmatpush.bf16.msra.mxu0 %v3672
    %4073 = vmatpush.bf16.msra.mxu0 %v3664
    %4074 = vmatpush.bf16.msra.mxu0 %v3656
    %4075 = vmatpush.bf16.msra.mxu0 %v3648
    %4076 = vmatmul.bf16.gmra.mxu0 %v3776
    %v4077 = vpop.f32.mrf.mxu0
    %v4078 = vadd.f32 %v4065, %v4077
    %v4079 = vpop.f32.mrf.mxu0
    %4080 = vdwg.mxu0
    %4081 = vmatpush.bf16.msra.mxu0 %v3768
    %4082 = vmatpush.bf16.msra.mxu0 %v3760
    %4083 = vmatpush.bf16.msra.mxu0 %v3752
    %4084 = vmatpush.bf16.msra.mxu0 %v3744
    %4085 = vmatpush.bf16.msra.mxu0 %v3736
    %4086 = vmatpush.bf16.msra.mxu0 %v3728
    %4087 = vmatpush.bf16.msra.mxu0 %v3720
    %4088 = vmatpush.bf16.msra.mxu0 %v3712
    %4089 = vmatmul.bf16.gmra.mxu0 %v3777
    %v4090 = vpop.f32.mrf.mxu0
    %v4091 = vadd.f32 %v4078, %v4090
    %v4092 = vpop.f32.mrf.mxu0
    %4093 = vdwg.mxu0
    %4094 = vmatpush.bf16.msra.mxu0 %v3577
    %4095 = vmatpush.bf16.msra.mxu0 %v3569
    %4096 = vmatpush.bf16.msra.mxu0 %v3561
    %4097 = vmatpush.bf16.msra.mxu0 %v3553
    %4098 = vmatpush.bf16.msra.mxu0 %v3545
    %4099 = vmatpush.bf16.msra.mxu0 %v3537
    %4100 = vmatpush.bf16.msra.mxu0 %v3529
    %4101 = vmatpush.bf16.msra.mxu0 %v3521
    %4102 = vmatmul.bf16.gmra.mxu0 %v3774
    %v4103 = vpop.f32.mrf.mxu0
    %v4104 = vadd.f32 0.0, %v4103
    %v4105 = vpop.f32.mrf.mxu0
    %4106 = vdwg.mxu0
    %4107 = vmatpush.bf16.msra.mxu0 %v3641
    %4108 = vmatpush.bf16.msra.mxu0 %v3633
    %4109 = vmatpush.bf16.msra.mxu0 %v3625
    %4110 = vmatpush.bf16.msra.mxu0 %v3617
    %4111 = vmatpush.bf16.msra.mxu0 %v3609
    %4112 = vmatpush.bf16.msra.mxu0 %v3601
    %4113 = vmatpush.bf16.msra.mxu0 %v3593
    %4114 = vmatpush.bf16.msra.mxu0 %v3585
    %4115 = vmatmul.bf16.gmra.mxu0 %v3775
    %v4116 = vpop.f32.mrf.mxu0
    %v4117 = vadd.f32 %v4104, %v4116
    %v4118 = vpop.f32.mrf.mxu0
    %4119 = vdwg.mxu0
    %4120 = vmatpush.bf16.msra.mxu0 %v3705
    %4121 = vmatpush.bf16.msra.mxu0 %v3697
    %4122 = vmatpush.bf16.msra.mxu0 %v3689
    %4123 = vmatpush.bf16.msra.mxu0 %v3681
    %4124 = vmatpush.bf16.msra.mxu0 %v3673
    %4125 = vmatpush.bf16.msra.mxu0 %v3665
    %4126 = vmatpush.bf16.msra.mxu0 %v3657
    %4127 = vmatpush.bf16.msra.mxu0 %v3649
    %4128 = vmatmul.bf16.gmra.mxu0 %v3776
    %v4129 = vpop.f32.mrf.mxu0
    %v4130 = vadd.f32 %v4117, %v4129
    %v4131 = vpop.f32.mrf.mxu0
    %4132 = vdwg.mxu0
    %4133 = vmatpush.bf16.msra.mxu0 %v3769
    %4134 = vmatpush.bf16.msra.mxu0 %v3761
    %4135 = vmatpush.bf16.msra.mxu0 %v3753
    %4136 = vmatpush.bf16.msra.mxu0 %v3745
    %4137 = vmatpush.bf16.msra.mxu0 %v3737
    %4138 = vmatpush.bf16.msra.mxu0 %v3729
    %4139 = vmatpush.bf16.msra.mxu0 %v3721
    %4140 = vmatpush.bf16.msra.mxu0 %v3713
    %4141 = vmatmul.bf16.gmra.mxu0 %v3777
    %v4142 = vpop.f32.mrf.mxu0
    %v4143 = vadd.f32 %v4130, %v4142
    %v4144 = vpop.f32.mrf.mxu0
    %4145 = vdwg.mxu0
    %4146 = vmatpush.bf16.msra.mxu0 %v3578
    %4147 = vmatpush.bf16.msra.mxu0 %v3570
    %4148 = vmatpush.bf16.msra.mxu0 %v3562
    %4149 = vmatpush.bf16.msra.mxu0 %v3554
    %4150 = vmatpush.bf16.msra.mxu0 %v3546
    %4151 = vmatpush.bf16.msra.mxu0 %v3538
    %4152 = vmatpush.bf16.msra.mxu0 %v3530
    %4153 = vmatpush.bf16.msra.mxu0 %v3522
    %4154 = vmatmul.bf16.gmra.mxu0 %v3774
    %v4155 = vpop.f32.mrf.mxu0
    %v4156 = vadd.f32 0.0, %v4155
    %v4157 = vpop.f32.mrf.mxu0
    %4158 = vdwg.mxu0
    %4159 = vmatpush.bf16.msra.mxu0 %v3642
    %4160 = vmatpush.bf16.msra.mxu0 %v3634
    %4161 = vmatpush.bf16.msra.mxu0 %v3626
    %4162 = vmatpush.bf16.msra.mxu0 %v3618
    %4163 = vmatpush.bf16.msra.mxu0 %v3610
    %4164 = vmatpush.bf16.msra.mxu0 %v3602
    %4165 = vmatpush.bf16.msra.mxu0 %v3594
    %4166 = vmatpush.bf16.msra.mxu0 %v3586
    %4167 = vmatmul.bf16.gmra.mxu0 %v3775
    %v4168 = vpop.f32.mrf.mxu0
    %v4169 = vadd.f32 %v4156, %v4168
    %v4170 = vpop.f32.mrf.mxu0
    %4171 = vdwg.mxu0
    %4172 = vmatpush.bf16.msra.mxu0 %v3706
    %4173 = vmatpush.bf16.msra.mxu0 %v3698
    %4174 = vmatpush.bf16.msra.mxu0 %v3690
    %4175 = vmatpush.bf16.msra.mxu0 %v3682
    %4176 = vmatpush.bf16.msra.mxu0 %v3674
    %4177 = vmatpush.bf16.msra.mxu0 %v3666
    %4178 = vmatpush.bf16.msra.mxu0 %v3658
    %4179 = vmatpush.bf16.msra.mxu0 %v3650
    %4180 = vmatmul.bf16.gmra.mxu0 %v3776
    %v4181 = vpop.f32.mrf.mxu0
    %v4182 = vadd.f32 %v4169, %v4181
    %v4183 = vpop.f32.mrf.mxu0
    %4184 = vdwg.mxu0
    %4185 = vmatpush.bf16.msra.mxu0 %v3770
    %4186 = vmatpush.bf16.msra.mxu0 %v3762
    %4187 = vmatpush.bf16.msra.mxu0 %v3754
    %4188 = vmatpush.bf16.msra.mxu0 %v3746
    %4189 = vmatpush.bf16.msra.mxu0 %v3738
    %4190 = vmatpush.bf16.msra.mxu0 %v3730
    %4191 = vmatpush.bf16.msra.mxu0 %v3722
    %4192 = vmatpush.bf16.msra.mxu0 %v3714
    %4193 = vmatmul.bf16.gmra.mxu0 %v3777
    %v4194 = vpop.f32.mrf.mxu0
    %v4195 = vadd.f32 %v4182, %v4194
    %v4196 = vpop.f32.mrf.mxu0
    %4197 = vdwg.mxu0
    %v4198 = vld [vmem:[#allocation14] sm:$0xff]
    %v4200 = vperm.slane %v4198, 0
    %v4201 = vperm.slane %v4198, 1
    %v4202 = vperm.slane %v4198, 2
    %v4203 = vperm.slane %v4198, 3
    %v4204 = vperm.slane %v4198, 4
    %v4205 = vperm.slane %v4198, 5
    %v4206 = vperm.slane %v4198, 6
    %v4207 = vperm.slane %v4198, 7
    %v4216 = vmul.f32 %v3831, %v4200
    %v4217 = vmul.f32 %v3883, %v4201
    %v4218 = vmul.f32 %v3935, %v4202
    %v4219 = vmul.f32 %v3987, %v4203
    %v4220 = vmul.f32 %v4039, %v4204
    %v4221 = vmul.f32 %v4091, %v4205
    %v4222 = vmul.f32 %v4143, %v4206
    %v4223 = vmul.f32 %v4195, %v4207
    %v4224 = vld [vmem:[#allocation15] sm:$0xff]
    %v4226 = vperm.slane %v4224, 0
    %v4227 = vperm.slane %v4224, 1
    %v4228 = vperm.slane %v4224, 2
    %v4229 = vperm.slane %v4224, 3
    %v4230 = vperm.slane %v4224, 4
    %v4231 = vperm.slane %v4224, 5
    %v4232 = vperm.slane %v4224, 6
    %v4233 = vperm.slane %v4224, 7
    %v4242 = vadd.f32 %v4216, %v4226
    %v4243 = vadd.f32 %v4217, %v4227
    %v4244 = vadd.f32 %v4218, %v4228
    %v4245 = vadd.f32 %v4219, %v4229
    %v4246 = vadd.f32 %v4220, %v4230
    %v4247 = vadd.f32 %v4221, %v4231
    %v4248 = vadd.f32 %v4222, %v4232
    %v4249 = vadd.f32 %v4223, %v4233
    %v4250 = vtanh.pop %v4242
    %v4251 = vtanh.pop %v4243
    %v4252 = vtanh.pop %v4244
    %v4253 = vtanh.pop %v4245
    %v4254 = vtanh.pop %v4246
    %v4255 = vtanh.pop %v4247
    %v4256 = vtanh.pop %v4248
    %v4257 = vtanh.pop %v4249
    %v4266 = vrot.slane %v4251, 6
    %v4267 = vrot.slane %v4252, 4
    %v4268 = vrot.slane %v4253, 2
    %v4269 = vrot.slane %v4255, 6
    %v4270 = vrot.slane %v4256, 4
    %v4271 = vrot.slane %v4257, 2
    %vm4272 = vcmask 1041408
    %v4273 = vsel %vm4272, %v4250, %v4266
    %vm4274 = vcmask 1045508
    %v4275 = vsel %vm4274, %v4267, %v4268
    %vm4276 = vcmask 1043456
    %v4277 = vsel %vm4276, %v4273, %v4275
    %v4278 = vsel %vm4272, %v4254, %v4269
    %v4279 = vsel %vm4274, %v4270, %v4271
    %v4280 = vsel %vm4276, %v4278, %v4279
    %4283 = vst [vmem:[#allocation17] sm:$0xff] %v4277
    %4284 = vst [vmem:[#allocation17 + $0x8] sm:$0xff] %v4280
    // Predicated region
    $region74: #{tpu_custom_call.1} parent=1 // pred_check
      _
    $region75: #{tpu_custom_call.1} parent=1 // pred_check_branch
      %4286 = sbr.rel (0) target = $region77
    $region76: #{tpu_custom_call.1} parent=1 // pred_region
      %4288 = vsyncadd [#allocation5], 0
      %s4290 = sshll.u32 [#allocation17], 4
      %s4291 = int_to_ptr.vmem [resolvable:$true] %s4290
      %s4292 = sshll.u32 %s9, 4
      %s4293 = int_to_ptr.hbm [resolvable:$true] %s4292
      %4295 = dma.vmem_to_hbm [thread:$0]  %s4291, 256, %s4293, [#allocation5]
    $region77: #{tpu_custom_call.1} parent=1 // pred_fallthru
      _
    // Predicated region
    $region78: #{tpu_custom_call.1} parent=1 // pred_check
      _
    $region79: #{tpu_custom_call.1} parent=1 // pred_check_branch
      %4297 = sbr.rel (0) target = $region81
    $region80: #{tpu_custom_call.1} parent=1 // pred_region
      %4299 = dma.done [#allocation5], 256
    $region81: #{tpu_custom_call.1} parent=1 // pred_fallthru
      _
    %4300 = vsyncpa [#allocation4], 1
    %4301 = vsyncpa [#allocation7], 1
    %4302 = vsyncpa [#allocation10], 1
    %4303 = vsyncpa [#allocation13], 1
    %4304 = vsyncpa [#allocation16], 1
    %4305 = vsyncpa [#allocation5], 1

</llo_original>
